<compile_context>
chip_gen: v7x
topology: tpu7x:2x2x1
jax: 0.10.0
libtpu: 0.0.40
codegen_flags: <defaults>
</compile_context>

<pallas_src>
import numpy as np
import jax
import jax.numpy as jnp
from jax import lax
from jax.experimental import pallas as pl
from jax.experimental.pallas import tpu as pltpu


# ----------------------------- kernel -----------------------------

def ffm_kernel(hi_ref, lo_ref, ah3_ref, aw3_ref, dwk_ref, dwb_ref,
               wl_ref, wh_ref, bias_ref, out_ref):
    TH, h = ah3_ref.shape[1], ah3_ref.shape[2]
    W, w = aw3_ref.shape[1], aw3_ref.shape[2]
    Cl = dwk_ref.shape[1]

    lo = lo_ref[...]                                            # (h, w*Cl)
    dwk = dwk_ref[...]                                          # (9, Cl), BN scale folded

    # 1) height part of the x4 bilinear upsample: three row-shifted variants.
    #    t[di][i, ww, c] == up[band_row i + (di-1), low-res col ww, c]
    #    (zero outside the image -- the shift/zero rows are baked into ah3).
    t = [jnp.dot(ah3_ref[di], lo,
                 preferred_element_type=jnp.float32).reshape(TH, w, Cl)
         for di in range(3)]

    # 2) depthwise 3x3 conv fused with the width part of the upsample.
    #    For each column tap dj: combine the three row taps (cheap FMAs on the
    #    small (TH, w, Cl) tile), then apply the col-shifted width-interp matrix
    #    as a batched MXU matmul.
    acc = jnp.zeros((TH, W, Cl), jnp.float32)
    for dj in range(3):
        s = (t[0] * dwk[dj:dj + 1, :]
             + t[1] * dwk[3 + dj:4 + dj, :]
             + t[2] * dwk[6 + dj:7 + dj, :])                    # (TH, w, Cl)
        aw = jnp.broadcast_to(aw3_ref[dj], (TH, W, w))          # (TH, W, w)
        acc = acc + jnp.einsum("rWk,rkc->rWc", aw, s,
                               preferred_element_type=jnp.float32)
    dw = jnp.maximum(acc + dwb_ref[...], 0.0).reshape(TH * W, Cl)   # _DWConv out

    # 3+4+5) both 1x1 convs (BN scales pre-folded into weights), shared bias,
    #        add, ReLU.
    low = jnp.dot(dw, wl_ref[...], preferred_element_type=jnp.float32)
    high = jnp.dot(hi_ref[...], wh_ref[...], preferred_element_type=jnp.float32)
    out_ref[...] = jnp.maximum(low + high + bias_ref[...], 0.0).astype(out_ref.dtype)


# ----------------------------- wrapper -----------------------------

def feature_fusion_module(hi_nhwc, lo_nhwc, params, tile_h=None):
    """hi_nhwc: (N, H, W, Ch) higher-res feature; lo_nhwc: (N, h, w, Cl) lower-res."""
    N, H, W, Ch = hi_nhwc.shape
    _, h, w, Cl = lo_nhwc.shape
    C = params["wl_f"].shape[1]
    if Cl != C or params["wl_f"].shape[0] != C:
        # FastSCNN's _DWConv uses groups == lower_in_channels; the plain-depthwise
        # formulation here requires out_channels == lower_in_channels.
        raise ValueError("FFM kernel assumes out_channels == lower_in_channels")

    if tile_h is None:
        tile_h = next((th for th in (32, 16, 8) if H % th == 0 and th < H), H)
    assert H % tile_h == 0
    n_bands = H // tile_h

    hi_flat = hi_nhwc.reshape(N, H * W, Ch)
    lo_flat = lo_nhwc.reshape(N, h, w * Cl)

    grid_spec = pltpu.PrefetchScalarGridSpec(
        num_scalar_prefetch=0,
        grid=(N, n_bands),
        in_specs=[
            pl.BlockSpec((pl.Squeezed(), tile_h * W, Ch), lambda n, r: (n, r, 0)),
            pl.BlockSpec((pl.Squeezed(), h, w * Cl),      lambda n, r: (n, 0, 0)),
            pl.BlockSpec((3, tile_h, h),                  lambda n, r: (0, r, 0)),
            pl.BlockSpec((3, W, w),                       lambda n, r: (0, 0, 0)),
            pl.BlockSpec((9, Cl),                         lambda n, r: (0, 0)),
            pl.BlockSpec((1, Cl),                         lambda n, r: (0, 0)),
            pl.BlockSpec((Cl, C),                         lambda n, r: (0, 0)),
            pl.BlockSpec((Ch, C),                         lambda n, r: (0, 0)),
            pl.BlockSpec((1, C),                          lambda n, r: (0, 0)),
        ],
        out_specs=pl.BlockSpec((pl.Squeezed(), tile_h * W, C),
                               lambda n, r: (n, r, 0)),
    )

    flops = N * (3 * 2 * H * h * w * Cl          # height-interp matmuls
                 + 9 * 2 * H * w * Cl            # depthwise tap FMAs
                 + 3 * 2 * H * W * w * Cl        # width-interp batched matmuls
                 + 2 * H * W * (Cl * C + Ch * C) # 1x1 convs
                 + 4 * H * W * C)                # bias + add + ReLUs
    bytes_accessed = 4 * (N * H * W * Ch + N * h * w * Cl + N * H * W * C
                          + 3 * H * h + 3 * W * w + 9 * Cl + Cl
                          + Cl * C + Ch * C + C)

    out = pl.pallas_call(
        ffm_kernel,
        out_shape=jax.ShapeDtypeStruct((N, H * W, C), jnp.float32),
        grid_spec=grid_spec,
        compiler_params=pltpu.CompilerParams(
            dimension_semantics=("parallel", "parallel")),
        cost_estimate=pl.CostEstimate(flops=flops, transcendentals=0,
                                      bytes_accessed=bytes_accessed),
    )(hi_flat, lo_flat, params["ah3"], params["aw3"], params["dwk"],
      params["dwb"], params["wl_f"], params["wh_f"], params["bias"])

    return out.reshape(N, H, W, C)


# ------------------- glue: interpolation matrices, params, reference -------------------

def _interp_matrix(out_size, in_size):
    """Dense matrix for 1-D bilinear interpolation, align_corners=True."""
    A = np.zeros((out_size, in_size), np.float32)
    for i in range(out_size):
        src = 0.0 if out_size == 1 else i * (in_size - 1) / (out_size - 1)
        i0 = min(int(np.floor(src)), in_size - 1)
        i1 = min(i0 + 1, in_size - 1)
        f = src - i0
        A[i, i0] += 1.0 - f
        A[i, i1] += f
    return A


def _row_shift(A, d):
    """S[i, :] = A[i + d, :] if 0 <= i + d < rows else 0 (zero padding=1)."""
    S = np.zeros_like(A)
    n = A.shape[0]
    lo_i, hi_i = max(0, -d), min(n, n - d)
    S[lo_i:hi_i] = A[lo_i + d:hi_i + d]
    return S


def _bn_fold(kg, kb, km, kv, c, eps=1e-5):
    gamma = 1.0 + 0.1 * jax.random.normal(kg, (c,), jnp.float32)
    beta = 0.1 * jax.random.normal(kb, (c,), jnp.float32)
    mean = 0.1 * jax.random.normal(km, (c,), jnp.float32)
    var = 1.0 + 0.1 * jax.random.uniform(kv, (c,), jnp.float32)
    scale = gamma / jnp.sqrt(var + eps)
    shift = beta - mean * scale
    return scale, shift


def _reference(hi, lo, raw, H, W):
    """Pure-JAX reference of the same forward pass (eval-mode BN)."""
    N, h, w, Cl = lo.shape
    B = jnp.asarray(np.kron(_interp_matrix(H, h), _interp_matrix(W, w)))
    up = jnp.einsum("pq,nqc->npc", B, lo.reshape(N, h * w, Cl)).reshape(N, H, W, Cl)
    dwkern = raw["dww"].reshape(3, 3, Cl)[:, :, None, :]              # HWIO, I=1
    dw = lax.conv_general_dilated(up, dwkern, (1, 1), "SAME",
                                  dimension_numbers=("NHWC", "HWIO", "NHWC"),
                                  feature_group_count=Cl)
    dw = jnp.maximum(dw * raw["dws"] + raw["dwb"], 0.0)
    low = (jnp.einsum("nhwc,cd->nhwd", dw, raw["wl"]) + raw["bl"]) * raw["ls"] + raw["lb0"]
    high = (jnp.einsum("nhwc,cd->nhwd", hi, raw["wh"]) + raw["bh"]) * raw["hs"] + raw["hb0"]
    return jnp.maximum(low + high, 0.0)


if __name__ == "__main__":
    # Small shapes: higher_in_channels = lower_in_channels = out_channels = 8
    N, H, W = 2, 16, 16
    Ch, Cl, C = 8, 8, 8
    h, w = H // 4, W // 4            # forward hardcodes scale_factor=4

    key = jax.random.PRNGKey(0)
    ks = jax.random.split(key, 20)

    hi = jax.random.normal(ks[0], (N, H, W, Ch), jnp.float32)   # NHWC (== NCHW [2,8,16,16])
    lo = jax.random.normal(ks[1], (N, h, w, Cl), jnp.float32)   # NHWC (== NCHW [2,8,4,4])

    # ---- synthetic module parameters (eval-mode BN as scale/shift) ----
    dww = 0.1 * jax.random.normal(ks[2], (9, Cl), jnp.float32)          # depthwise 3x3, no bias
    dws, dwb = _bn_fold(ks[3], ks[4], ks[5], ks[6], C)

    wl = 0.1 * jax.random.normal(ks[7], (C, C), jnp.float32)            # 1x1 conv (lower)
    bl = 0.1 * jax.random.normal(ks[8], (C,), jnp.float32)
    ls, lb0 = _bn_fold(ks[9], ks[10], ks[11], ks[12], C)

    wh = 0.1 * jax.random.normal(ks[13], (Ch, C), jnp.float32)          # 1x1 conv (higher)
    bh = 0.1 * jax.random.normal(ks[14], (C,), jnp.float32)
    hs, hb0 = _bn_fold(ks[15], ks[16], ks[17], ks[18], C)

    # ---- offline folding for the kernel ----
    AH = _interp_matrix(H, h)
    AW = _interp_matrix(W, w)
    ah3 = jnp.asarray(np.stack([_row_shift(AH, d) for d in (-1, 0, 1)]))  # (3, H, h)
    aw3 = jnp.asarray(np.stack([_row_shift(AW, d) for d in (-1, 0, 1)]))  # (3, W, w)

    params = {
        "ah3": ah3,
        "aw3": aw3,
        "dwk": dww * dws[None, :],                         # BN scale folded into DW taps
        "dwb": dwb.reshape(1, C),                          # DW-block BN shift
        "wl_f": wl * ls[None, :],                          # BN scale folded into 1x1
        "wh_f": wh * hs[None, :],
        "bias": ((bl * ls + lb0) + (bh * hs + hb0)).reshape(1, C),
    }

    out = feature_fusion_module(hi, lo, params)
    out = jax.block_until_ready(out)

    raw = {"dww": dww, "dws": dws, "dwb": dwb,
           "wl": wl, "bl": bl, "ls": ls, "lb0": lb0,
           "wh": wh, "bh": bh, "hs": hs, "hb0": hb0}
    ref = jax.block_until_ready(_reference(hi, lo, raw, H, W))
    np.testing.assert_allclose(np.asarray(out), np.asarray(ref), rtol=2e-2, atol=2e-2)

    print("KERNEL_OK")
</pallas_src>

<mosaic_0001>
module attributes {stable_mosaic.version = 11 : i64} {
  func.func @ffm_kernel(%arg0: i32, %arg1: i32, %arg2: memref<1x128x8xf32, #tpu.memory_space<vmem>>, %arg3: memref<1x4x32xf32, #tpu.memory_space<vmem>>, %arg4: memref<3x8x4xf32, #tpu.memory_space<vmem>>, %arg5: memref<3x16x4xf32, #tpu.memory_space<vmem>>, %arg6: memref<9x8xf32, #tpu.memory_space<vmem>>, %arg7: memref<1x8xf32, #tpu.memory_space<vmem>>, %arg8: memref<8x8xf32, #tpu.memory_space<vmem>>, %arg9: memref<8x8xf32, #tpu.memory_space<vmem>>, %arg10: memref<1x8xf32, #tpu.memory_space<vmem>>, %arg11: memref<1x128x8xf32, #tpu.memory_space<vmem>>) attributes {dimension_semantics = [#tpu.dimension_semantics<parallel>, #tpu.dimension_semantics<parallel>], iteration_bounds = array<i64: 2, 2>, scalar_prefetch = 0 : i64, scratch_operands = 0 : i64, tpu.core_type = #tpu.core_type<tc>, window_params = [{transform_indices = @transform_0, window_bounds = array<i64: 1, 128, 8>}, {transform_indices = @transform_1, window_bounds = array<i64: 1, 4, 32>}, {transform_indices = @transform_2, window_bounds = array<i64: 3, 8, 4>}, {pipeline_mode = #tpu.pipeline_mode<synchronous>, transform_indices = @transform_3, window_bounds = array<i64: 3, 16, 4>}, {pipeline_mode = #tpu.pipeline_mode<synchronous>, transform_indices = @transform_4, window_bounds = array<i64: 9, 8>}, {pipeline_mode = #tpu.pipeline_mode<synchronous>, transform_indices = @transform_5, window_bounds = array<i64: 1, 8>}, {pipeline_mode = #tpu.pipeline_mode<synchronous>, transform_indices = @transform_6, window_bounds = array<i64: 8, 8>}, {pipeline_mode = #tpu.pipeline_mode<synchronous>, transform_indices = @transform_7, window_bounds = array<i64: 8, 8>}, {pipeline_mode = #tpu.pipeline_mode<synchronous>, transform_indices = @transform_8, window_bounds = array<i64: 1, 8>}, {transform_indices = @transform_9, window_bounds = array<i64: 1, 128, 8>}]} {
    %c0 = arith.constant 0 : index
    %c0_0 = arith.constant 0 : index
    %c0_1 = arith.constant 0 : index
    %0 = vector.load %arg3[%c0, %c0_0, %c0_1] : memref<1x4x32xf32, #tpu.memory_space<vmem>>, vector<1x4x32xf32>
    %1 = vector.shape_cast %0 : vector<1x4x32xf32> to vector<4x32xf32>
    %c0_2 = arith.constant 0 : index
    %c0_3 = arith.constant 0 : index
    %2 = vector.load %arg6[%c0_2, %c0_3] : memref<9x8xf32, #tpu.memory_space<vmem>>, vector<9x8xf32>
    %c0_4 = arith.constant 0 : index
    %c0_5 = arith.constant 0 : index
    %c0_6 = arith.constant 0 : index
    %3 = vector.load %arg4[%c0_4, %c0_5, %c0_6] : memref<3x8x4xf32, #tpu.memory_space<vmem>>, vector<1x8x4xf32>
    %4 = vector.shape_cast %3 : vector<1x8x4xf32> to vector<8x4xf32>
    %cst = arith.constant dense<0.000000e+00> : vector<8x32xf32>
    %5 = tpu.matmul %4, %1, %cst {dimension_numbers = #tpu.dot_dimension_numbers<[1], [0], [0], [1], [0, 0, 1, 1], [], []>} : vector<8x4xf32>, vector<4x32xf32>, vector<8x32xf32> -> vector<8x32xf32>
    %6 = vector.shape_cast %5 : vector<8x32xf32> to vector<8x4x8xf32>
    %c1 = arith.constant 1 : index
    %c0_7 = arith.constant 0 : index
    %c0_8 = arith.constant 0 : index
    %7 = vector.load %arg4[%c1, %c0_7, %c0_8] : memref<3x8x4xf32, #tpu.memory_space<vmem>>, vector<1x8x4xf32>
    %8 = vector.shape_cast %7 : vector<1x8x4xf32> to vector<8x4xf32>
    %cst_9 = arith.constant dense<0.000000e+00> : vector<8x32xf32>
    %9 = tpu.matmul %8, %1, %cst_9 {dimension_numbers = #tpu.dot_dimension_numbers<[1], [0], [0], [1], [0, 0, 1, 1], [], []>} : vector<8x4xf32>, vector<4x32xf32>, vector<8x32xf32> -> vector<8x32xf32>
    %10 = vector.shape_cast %9 : vector<8x32xf32> to vector<8x4x8xf32>
    %c2 = arith.constant 2 : index
    %c0_10 = arith.constant 0 : index
    %c0_11 = arith.constant 0 : index
    %11 = vector.load %arg4[%c2, %c0_10, %c0_11] : memref<3x8x4xf32, #tpu.memory_space<vmem>>, vector<1x8x4xf32>
    %12 = vector.shape_cast %11 : vector<1x8x4xf32> to vector<8x4xf32>
    %cst_12 = arith.constant dense<0.000000e+00> : vector<8x32xf32>
    %13 = tpu.matmul %12, %1, %cst_12 {dimension_numbers = #tpu.dot_dimension_numbers<[1], [0], [0], [1], [0, 0, 1, 1], [], []>} : vector<8x4xf32>, vector<4x32xf32>, vector<8x32xf32> -> vector<8x32xf32>
    %14 = vector.shape_cast %13 : vector<8x32xf32> to vector<8x4x8xf32>
    %cst_13 = arith.constant 0.000000e+00 : f32
    %15 = vector.broadcast %cst_13 : f32 to vector<8x16x8xf32>
    %16 = vector.extract_strided_slice %2 {offsets = [0, 0], sizes = [1, 8], strides = [1, 1]} : vector<9x8xf32> to vector<1x8xf32>
    %17 = vector.shape_cast %16 : vector<1x8xf32> to vector<1x1x8xf32>
    %18 = vector.broadcast %17 : vector<1x1x8xf32> to vector<8x4x8xf32>
    %19 = arith.mulf %6, %18 : vector<8x4x8xf32>
    %20 = vector.extract_strided_slice %2 {offsets = [3, 0], sizes = [1, 8], strides = [1, 1]} : vector<9x8xf32> to vector<1x8xf32>
    %21 = vector.shape_cast %20 : vector<1x8xf32> to vector<1x1x8xf32>
    %22 = vector.broadcast %21 : vector<1x1x8xf32> to vector<8x4x8xf32>
    %23 = arith.mulf %10, %22 : vector<8x4x8xf32>
    %24 = arith.addf %19, %23 : vector<8x4x8xf32>
    %25 = vector.extract_strided_slice %2 {offsets = [6, 0], sizes = [1, 8], strides = [1, 1]} : vector<9x8xf32> to vector<1x8xf32>
    %26 = vector.shape_cast %25 : vector<1x8xf32> to vector<1x1x8xf32>
    %27 = vector.broadcast %26 : vector<1x1x8xf32> to vector<8x4x8xf32>
    %28 = arith.mulf %14, %27 : vector<8x4x8xf32>
    %29 = arith.addf %24, %28 : vector<8x4x8xf32>
    %c0_14 = arith.constant 0 : index
    %c0_15 = arith.constant 0 : index
    %c0_16 = arith.constant 0 : index
    %30 = vector.load %arg5[%c0_14, %c0_15, %c0_16] : memref<3x16x4xf32, #tpu.memory_space<vmem>>, vector<1x16x4xf32>
    %31 = vector.shape_cast %30 : vector<1x16x4xf32> to vector<16x4xf32>
    %32 = vector.shape_cast %31 : vector<16x4xf32> to vector<1x16x4xf32>
    %33 = vector.broadcast %32 : vector<1x16x4xf32> to vector<8x16x4xf32>
    "tpu.trace_start"() <{level = 10 : i32, message = "rWk,rkc->rWc"}> : () -> ()
    %cst_17 = arith.constant dense<0.000000e+00> : vector<8x16x8xf32>
    %34 = tpu.matmul %33, %29, %cst_17 {dimension_numbers = #tpu.dot_dimension_numbers<[2], [1], [1], [2], [0, 0, 0, 1, 1, 2], [0], [0]>} : vector<8x16x4xf32>, vector<8x4x8xf32>, vector<8x16x8xf32> -> vector<8x16x8xf32>
    "tpu.trace_stop"() : () -> ()
    %35 = arith.addf %15, %34 : vector<8x16x8xf32>
    %36 = vector.extract_strided_slice %2 {offsets = [1, 0], sizes = [1, 8], strides = [1, 1]} : vector<9x8xf32> to vector<1x8xf32>
    %37 = vector.shape_cast %36 : vector<1x8xf32> to vector<1x1x8xf32>
    %38 = vector.broadcast %37 : vector<1x1x8xf32> to vector<8x4x8xf32>
    %39 = arith.mulf %6, %38 : vector<8x4x8xf32>
    %40 = vector.extract_strided_slice %2 {offsets = [4, 0], sizes = [1, 8], strides = [1, 1]} : vector<9x8xf32> to vector<1x8xf32>
    %41 = vector.shape_cast %40 : vector<1x8xf32> to vector<1x1x8xf32>
    %42 = vector.broadcast %41 : vector<1x1x8xf32> to vector<8x4x8xf32>
    %43 = arith.mulf %10, %42 : vector<8x4x8xf32>
    %44 = arith.addf %39, %43 : vector<8x4x8xf32>
    %45 = vector.extract_strided_slice %2 {offsets = [7, 0], sizes = [1, 8], strides = [1, 1]} : vector<9x8xf32> to vector<1x8xf32>
    %46 = vector.shape_cast %45 : vector<1x8xf32> to vector<1x1x8xf32>
    %47 = vector.broadcast %46 : vector<1x1x8xf32> to vector<8x4x8xf32>
    %48 = arith.mulf %14, %47 : vector<8x4x8xf32>
    %49 = arith.addf %44, %48 : vector<8x4x8xf32>
    %c1_18 = arith.constant 1 : index
    %c0_19 = arith.constant 0 : index
    %c0_20 = arith.constant 0 : index
    %50 = vector.load %arg5[%c1_18, %c0_19, %c0_20] : memref<3x16x4xf32, #tpu.memory_space<vmem>>, vector<1x16x4xf32>
    %51 = vector.shape_cast %50 : vector<1x16x4xf32> to vector<16x4xf32>
    %52 = vector.shape_cast %51 : vector<16x4xf32> to vector<1x16x4xf32>
    %53 = vector.broadcast %52 : vector<1x16x4xf32> to vector<8x16x4xf32>
    "tpu.trace_start"() <{level = 10 : i32, message = "rWk,rkc->rWc"}> : () -> ()
    %cst_21 = arith.constant dense<0.000000e+00> : vector<8x16x8xf32>
    %54 = tpu.matmul %53, %49, %cst_21 {dimension_numbers = #tpu.dot_dimension_numbers<[2], [1], [1], [2], [0, 0, 0, 1, 1, 2], [0], [0]>} : vector<8x16x4xf32>, vector<8x4x8xf32>, vector<8x16x8xf32> -> vector<8x16x8xf32>
    "tpu.trace_stop"() : () -> ()
    %55 = arith.addf %35, %54 : vector<8x16x8xf32>
    %56 = vector.extract_strided_slice %2 {offsets = [2, 0], sizes = [1, 8], strides = [1, 1]} : vector<9x8xf32> to vector<1x8xf32>
    %57 = vector.shape_cast %56 : vector<1x8xf32> to vector<1x1x8xf32>
    %58 = vector.broadcast %57 : vector<1x1x8xf32> to vector<8x4x8xf32>
    %59 = arith.mulf %6, %58 : vector<8x4x8xf32>
    %60 = vector.extract_strided_slice %2 {offsets = [5, 0], sizes = [1, 8], strides = [1, 1]} : vector<9x8xf32> to vector<1x8xf32>
    %61 = vector.shape_cast %60 : vector<1x8xf32> to vector<1x1x8xf32>
    %62 = vector.broadcast %61 : vector<1x1x8xf32> to vector<8x4x8xf32>
    %63 = arith.mulf %10, %62 : vector<8x4x8xf32>
    %64 = arith.addf %59, %63 : vector<8x4x8xf32>
    %65 = vector.extract_strided_slice %2 {offsets = [8, 0], sizes = [1, 8], strides = [1, 1]} : vector<9x8xf32> to vector<1x8xf32>
    %66 = vector.shape_cast %65 : vector<1x8xf32> to vector<1x1x8xf32>
    %67 = vector.broadcast %66 : vector<1x1x8xf32> to vector<8x4x8xf32>
    %68 = arith.mulf %14, %67 : vector<8x4x8xf32>
    %69 = arith.addf %64, %68 : vector<8x4x8xf32>
    %c2_22 = arith.constant 2 : index
    %c0_23 = arith.constant 0 : index
    %c0_24 = arith.constant 0 : index
    %70 = vector.load %arg5[%c2_22, %c0_23, %c0_24] : memref<3x16x4xf32, #tpu.memory_space<vmem>>, vector<1x16x4xf32>
    %71 = vector.shape_cast %70 : vector<1x16x4xf32> to vector<16x4xf32>
    %72 = vector.shape_cast %71 : vector<16x4xf32> to vector<1x16x4xf32>
    %73 = vector.broadcast %72 : vector<1x16x4xf32> to vector<8x16x4xf32>
    "tpu.trace_start"() <{level = 10 : i32, message = "rWk,rkc->rWc"}> : () -> ()
    %cst_25 = arith.constant dense<0.000000e+00> : vector<8x16x8xf32>
    %74 = tpu.matmul %73, %69, %cst_25 {dimension_numbers = #tpu.dot_dimension_numbers<[2], [1], [1], [2], [0, 0, 0, 1, 1, 2], [0], [0]>} : vector<8x16x4xf32>, vector<8x4x8xf32>, vector<8x16x8xf32> -> vector<8x16x8xf32>
    "tpu.trace_stop"() : () -> ()
    %75 = arith.addf %55, %74 : vector<8x16x8xf32>
    %c0_26 = arith.constant 0 : index
    %c0_27 = arith.constant 0 : index
    %76 = vector.load %arg7[%c0_26, %c0_27] : memref<1x8xf32, #tpu.memory_space<vmem>>, vector<1x8xf32>
    %77 = vector.shape_cast %76 : vector<1x8xf32> to vector<1x1x8xf32>
    %78 = vector.broadcast %77 : vector<1x1x8xf32> to vector<8x16x8xf32>
    %79 = arith.addf %75, %78 : vector<8x16x8xf32>
    %cst_28 = arith.constant 0.000000e+00 : f32
    %80 = vector.broadcast %cst_28 : f32 to vector<8x16x8xf32>
    %81 = arith.maximumf %79, %80 : vector<8x16x8xf32>
    %82 = vector.shape_cast %81 : vector<8x16x8xf32> to vector<128x8xf32>
    %c0_29 = arith.constant 0 : index
    %c0_30 = arith.constant 0 : index
    %83 = vector.load %arg8[%c0_29, %c0_30] : memref<8x8xf32, #tpu.memory_space<vmem>>, vector<8x8xf32>
    %cst_31 = arith.constant dense<0.000000e+00> : vector<128x8xf32>
    %84 = tpu.matmul %82, %83, %cst_31 {dimension_numbers = #tpu.dot_dimension_numbers<[1], [0], [0], [1], [0, 0, 1, 1], [], []>} : vector<128x8xf32>, vector<8x8xf32>, vector<128x8xf32> -> vector<128x8xf32>
    %c0_32 = arith.constant 0 : index
    %c0_33 = arith.constant 0 : index
    %c0_34 = arith.constant 0 : index
    %85 = vector.load %arg2[%c0_32, %c0_33, %c0_34] : memref<1x128x8xf32, #tpu.memory_space<vmem>>, vector<1x128x8xf32>
    %86 = vector.shape_cast %85 : vector<1x128x8xf32> to vector<128x8xf32>
    %c0_35 = arith.constant 0 : index
    %c0_36 = arith.constant 0 : index
    %87 = vector.load %arg9[%c0_35, %c0_36] : memref<8x8xf32, #tpu.memory_space<vmem>>, vector<8x8xf32>
    %cst_37 = arith.constant dense<0.000000e+00> : vector<128x8xf32>
    %88 = tpu.matmul %86, %87, %cst_37 {dimension_numbers = #tpu.dot_dimension_numbers<[1], [0], [0], [1], [0, 0, 1, 1], [], []>} : vector<128x8xf32>, vector<8x8xf32>, vector<128x8xf32> -> vector<128x8xf32>
    %89 = arith.addf %84, %88 : vector<128x8xf32>
    %c0_38 = arith.constant 0 : index
    %c0_39 = arith.constant 0 : index
    %90 = vector.load %arg10[%c0_38, %c0_39] : memref<1x8xf32, #tpu.memory_space<vmem>>, vector<1x8xf32>
    %91 = vector.broadcast %90 : vector<1x8xf32> to vector<128x8xf32>
    %92 = arith.addf %89, %91 : vector<128x8xf32>
    %cst_40 = arith.constant 0.000000e+00 : f32
    %93 = vector.broadcast %cst_40 : f32 to vector<128x8xf32>
    %94 = arith.maximumf %92, %93 : vector<128x8xf32>
    %c0_41 = arith.constant 0 : index
    %c0_42 = arith.constant 0 : index
    %c0_43 = arith.constant 0 : index
    %95 = vector.load %arg11[%c0_41, %c0_42, %c0_43] : memref<1x128x8xf32, #tpu.memory_space<vmem>>, vector<1x128x8xf32>
    %96 = vector.shape_cast %95 : vector<1x128x8xf32> to vector<128x8xf32>
    %97 = vector.shape_cast %94 : vector<128x8xf32> to vector<1x128x8xf32>
    tpu.vector_store %arg11[%c0_41, %c0_42, %c0_43], %97 {strides = array<i32>} : memref<1x128x8xf32, #tpu.memory_space<vmem>>, vector<1x128x8xf32>,
    return
  }
  func.func @transform_0(%arg0: i32, %arg1: i32) -> (i32, i32, i32) {
    %c0_i32 = arith.constant 0 : i32
    %c0_i32_0 = arith.constant 0 : i32
    return %arg0, %arg1, %c0_i32 : i32, i32, i32
  }
  func.func @transform_1(%arg0: i32, %arg1: i32) -> (i32, i32, i32) {
    %c0_i32 = arith.constant 0 : i32
    %c0_i32_0 = arith.constant 0 : i32
    %c0_i32_1 = arith.constant 0 : i32
    return %arg0, %c0_i32, %c0_i32_0 : i32, i32, i32
  }
  func.func @transform_2(%arg0: i32, %arg1: i32) -> (i32, i32, i32) {
    %c0_i32 = arith.constant 0 : i32
    %c0_i32_0 = arith.constant 0 : i32
    %c0_i32_1 = arith.constant 0 : i32
    return %c0_i32, %arg1, %c0_i32_0 : i32, i32, i32
  }
  func.func @transform_3(%arg0: i32, %arg1: i32) -> (i32, i32, i32) {
    %c0_i32 = arith.constant 0 : i32
    %c0_i32_0 = arith.constant 0 : i32
    %c0_i32_1 = arith.constant 0 : i32
    %c0_i32_2 = arith.constant 0 : i32
    return %c0_i32, %c0_i32_0, %c0_i32_1 : i32, i32, i32
  }
  func.func @transform_4(%arg0: i32, %arg1: i32) -> (i32, i32) {
    %c0_i32 = arith.constant 0 : i32
    %c0_i32_0 = arith.constant 0 : i32
    %c0_i32_1 = arith.constant 0 : i32
    return %c0_i32, %c0_i32_0 : i32, i32
  }
  func.func @transform_5(%arg0: i32, %arg1: i32) -> (i32, i32) {
    %c0_i32 = arith.constant 0 : i32
    %c0_i32_0 = arith.constant 0 : i32
    %c0_i32_1 = arith.constant 0 : i32
    return %c0_i32, %c0_i32_0 : i32, i32
  }
  func.func @transform_6(%arg0: i32, %arg1: i32) -> (i32, i32) {
    %c0_i32 = arith.constant 0 : i32
    %c0_i32_0 = arith.constant 0 : i32
    %c0_i32_1 = arith.constant 0 : i32
    return %c0_i32, %c0_i32_0 : i32, i32
  }
  func.func @transform_7(%arg0: i32, %arg1: i32) -> (i32, i32) {
    %c0_i32 = arith.constant 0 : i32
    %c0_i32_0 = arith.constant 0 : i32
    %c0_i32_1 = arith.constant 0 : i32
    return %c0_i32, %c0_i32_0 : i32, i32
  }
  func.func @transform_8(%arg0: i32, %arg1: i32) -> (i32, i32) {
    %c0_i32 = arith.constant 0 : i32
    %c0_i32_0 = arith.constant 0 : i32
    %c0_i32_1 = arith.constant 0 : i32
    return %c0_i32, %c0_i32_0 : i32, i32
  }
  func.func @transform_9(%arg0: i32, %arg1: i32) -> (i32, i32, i32) {
    %c0_i32 = arith.constant 0 : i32
    %c0_i32_0 = arith.constant 0 : i32
    return %arg0, %arg1, %c0_i32 : i32, i32, i32
  }
}

</mosaic_0001>

<llo_original>
// kernel: tpu_custom_call.1
$region0: #{tpu_custom_call.1}
  #allocation0 [shape = 'u32[]', space=smem, size = 0x4, offset = 0x4, fixed_abs, tag = 'smem constant byte address 0x4 - core index']
  #allocation1 [shape = 'u32[144,128]{1,0:T(1,128)}', space=vmem, size = 0x12000, scoped, tag = 'internal scratch']
  %s0 = inlined_call_operand.vmem [shape: f32[2,256,8], index: 0, kind: input, shape index: {}]
  %s1 = inlined_call_operand.vmem [shape: f32[2,4,32], index: 1, kind: input, shape index: {}]
  %s2 = inlined_call_operand.vmem [shape: f32[3,16,4], index: 2, kind: input, shape index: {}]
  %s3 = inlined_call_operand.vmem [shape: f32[3,16,4], index: 3, kind: input, shape index: {}]
  %s4 = inlined_call_operand.vmem [shape: f32[9,8], index: 4, kind: input, shape index: {}]
  %s5 = inlined_call_operand.vmem [shape: f32[1,8], index: 5, kind: input, shape index: {}]
  %s6 = inlined_call_operand.vmem [shape: f32[8,8], index: 6, kind: input, shape index: {}]
  %s7 = inlined_call_operand.vmem [shape: f32[8,8], index: 7, kind: input, shape index: {}]
  %s8 = inlined_call_operand.vmem [shape: f32[1,8], index: 8, kind: input, shape index: {}]
  %s9 = inlined_call_operand.vmem [shape: f32[2,256,8], index: 9, kind: output, shape index: {}]
  %s10 = sld [smem:[#allocation0]]
  $region107: #{tpu_custom_call.1} parent=0
    _
  %s12 = ssub.s32 1, %s10
  %s13 = scalar_select 0, %s12, %s10
  $region1: #{tpu_custom_call.1} parent=0
    #allocation2 [shape = 'u8[24576]{0}', space=vmem, size = 0x6000, scoped, tag = 'input window, operand 2']
    loop: start=0, step=1, limit=6
    $region2: #{tpu_custom_call.1} parent=1 // loop_pre_header
      _
    $region3: #{tpu_custom_call.1} parent=1 // loop_header
      %s15 = sphi 0, %s19
      %p16 = scmp.ge.s32.totalorder %s15, 6
      %s22 = sphi 0, %s34
      %s23 = sphi 0, %s30
      %s24 = sphi 0, %s22
      %s25 = sphi 0, %s23
      %s26 = sphi 0, %s24
      %s27 = sphi 0, %s25
      %s39 = sphi 0, %s41
      %s42 = sphi 0, %s39
      %s43 = sphi 0, %s42
      %s59 = sphi 0, %s43
      %s65 = sphi 0, %s67
      %s68 = sphi 0, %s65
      %s69 = sphi 0, %s68
      %s85 = sphi 0, %s69
      %s91 = sphi 0, %s93
      %s94 = sphi 0, %s91
      %s95 = sphi 0, %s94
      %s111 = sphi 0, %s95
      %s115 = sphi 0, %s115
      %s117 = sphi 0, %s115
      %s118 = sphi 0, %s117
      %s132 = sphi 0, %s118
      %s136 = sphi 0, %s136
      %s138 = sphi 0, %s136
      %s139 = sphi 0, %s138
      %s153 = sphi 0, %s139
      %s157 = sphi 0, %s157
      %s159 = sphi 0, %s157
      %s160 = sphi 0, %s159
      %s174 = sphi 0, %s160
      %s178 = sphi 0, %s178
      %s180 = sphi 0, %s178
      %s181 = sphi 0, %s180
      %s195 = sphi 0, %s181
      %s199 = sphi 0, %s199
      %s201 = sphi 0, %s199
      %s202 = sphi 0, %s201
      %s216 = sphi 0, %s202
      %s220 = sphi 0, %s220
      %s222 = sphi 0, %s220
      %s223 = sphi 0, %s222
      %s237 = sphi 0, %s223
      %s245 = sphi 0, %s247
      %s248 = sphi 0, %s245
      %s249 = sphi 0, %s248
      %s265 = sphi 0, %s249
    $region4: #{tpu_custom_call.1} parent=1 // loop_header_branch
      %18 = sbr.rel (%p16) target = $region8
    $region5: #{tpu_custom_call.1} parent=1 // loop_body
      %s20 = ssub.s32 %s15, 1
      %s21 = ssub.s32 %s15, 2
      %s28 = sadd.s32 1, %s23
      %p29 = scmp.ge.s32.totalorder %s28, 2
      %s30 = scalar_select %p29, 0, %s28
      %s31 = sadd.s32 1, %s22
      %s32 = scalar_select %p29, %s31, %s22
      %p33 = scmp.ge.s32.totalorder %s32, 2
      %s34 = scalar_select %p33, 0, %s32
      %s35 = ssub.s32 %s22, %s34
      %s36 = ssub.s32 %s23, %s30
      %s37 = sor.u32 %s35, %s36
      %p38 = scmp.eq.s32.totalorder %s37, 0
      %s40 = sadd.s32 %s39, 1
      %s41 = scalar_select %p38, %s39, %s40
      %p44 = pneg %p38
      %p45 = scmp.eq.s32.totalorder %s15, 3
      %p46 = por %p44, %p45
      %p47 = scmp.ne.s32.totalorder %s39, %s42
      %p48 = scmp.eq.s32.totalorder %s15, 0
      %p49 = por %p47, %p48
      %p50 = scmp.ne.s32.totalorder %s39, %s42
      %p51 = scmp.eq.s32.totalorder %s20, 3
      %p52 = por %p50, %p51
      %p53 = scmp.ne.s32.totalorder %s42, %s43
      %p54 = scmp.eq.s32.totalorder %s20, 0
      %p55 = por %p53, %p54
      %p56 = scmp.ne.s32.totalorder %s42, %s43
      %p57 = scmp.eq.s32.totalorder %s21, 3
      %p58 = por %p56, %p57
      %p60 = scmp.ne.s32.totalorder %s43, %s59
      %p61 = scmp.eq.s32.totalorder %s21, 0
      %p62 = por %p60, %p61
      %s63 = ssub.s32 %s22, %s34
      %p64 = scmp.eq.s32.totalorder %s63, 0
      %s66 = sadd.s32 %s65, 1
      %s67 = scalar_select %p64, %s65, %s66
      %p70 = pneg %p64
      %p71 = scmp.eq.s32.totalorder %s15, 3
      %p72 = por %p70, %p71
      %p73 = scmp.ne.s32.totalorder %s65, %s68
      %p74 = scmp.eq.s32.totalorder %s15, 0
      %p75 = por %p73, %p74
      %p76 = scmp.ne.s32.totalorder %s65, %s68
      %p77 = scmp.eq.s32.totalorder %s20, 3
      %p78 = por %p76, %p77
      %p79 = scmp.ne.s32.totalorder %s68, %s69
      %p80 = scmp.eq.s32.totalorder %s20, 0
      %p81 = por %p79, %p80
      %p82 = scmp.ne.s32.totalorder %s68, %s69
      %p83 = scmp.eq.s32.totalorder %s21, 3
      %p84 = por %p82, %p83
      %p86 = scmp.ne.s32.totalorder %s69, %s85
      %p87 = scmp.eq.s32.totalorder %s21, 0
      %p88 = por %p86, %p87
      %s89 = ssub.s32 %s23, %s30
      %p90 = scmp.eq.s32.totalorder %s89, 0
      %s92 = sadd.s32 %s91, 1
      %s93 = scalar_select %p90, %s91, %s92
      %p96 = pneg %p90
      %p97 = scmp.eq.s32.totalorder %s15, 3
      %p98 = por %p96, %p97
      %p99 = scmp.ne.s32.totalorder %s91, %s94
      %p100 = scmp.eq.s32.totalorder %s15, 0
      %p101 = por %p99, %p100
      %p102 = scmp.ne.s32.totalorder %s91, %s94
      %p103 = scmp.eq.s32.totalorder %s20, 3
      %p104 = por %p102, %p103
      %p105 = scmp.ne.s32.totalorder %s94, %s95
      %p106 = scmp.eq.s32.totalorder %s20, 0
      %p107 = por %p105, %p106
      %p108 = scmp.ne.s32.totalorder %s94, %s95
      %p109 = scmp.eq.s32.totalorder %s21, 3
      %p110 = por %p108, %p109
      %p112 = scmp.ne.s32.totalorder %s95, %s111
      %p113 = scmp.eq.s32.totalorder %s21, 0
      %p114 = por %p112, %p113
      %s116 = sadd.s32 %s115, 1
      %p119 = scmp.eq.s32.totalorder %s15, 3
      %p120 = scmp.ne.s32.totalorder %s115, %s117
      %p121 = scmp.eq.s32.totalorder %s15, 0
      %p122 = por %p120, %p121
      %p123 = scmp.ne.s32.totalorder %s115, %s117
      %p124 = scmp.eq.s32.totalorder %s20, 3
      %p125 = por %p123, %p124
      %p126 = scmp.ne.s32.totalorder %s117, %s118
      %p127 = scmp.eq.s32.totalorder %s20, 0
      %p128 = por %p126, %p127
      %p129 = scmp.ne.s32.totalorder %s117, %s118
      %p130 = scmp.eq.s32.totalorder %s21, 3
      %p131 = por %p129, %p130
      %p133 = scmp.ne.s32.totalorder %s118, %s132
      %p134 = scmp.eq.s32.totalorder %s21, 0
      %p135 = por %p133, %p134
      %s137 = sadd.s32 %s136, 1
      %p140 = scmp.eq.s32.totalorder %s15, 3
      %p141 = scmp.ne.s32.totalorder %s136, %s138
      %p142 = scmp.eq.s32.totalorder %s15, 0
      %p143 = por %p141, %p142
      %p144 = scmp.ne.s32.totalorder %s136, %s138
      %p145 = scmp.eq.s32.totalorder %s20, 3
      %p146 = por %p144, %p145
      %p147 = scmp.ne.s32.totalorder %s138, %s139
      %p148 = scmp.eq.s32.totalorder %s20, 0
      %p149 = por %p147, %p148
      %p150 = scmp.ne.s32.totalorder %s138, %s139
      %p151 = scmp.eq.s32.totalorder %s21, 3
      %p152 = por %p150, %p151
      %p154 = scmp.ne.s32.totalorder %s139, %s153
      %p155 = scmp.eq.s32.totalorder %s21, 0
      %p156 = por %p154, %p155
      %s158 = sadd.s32 %s157, 1
      %p161 = scmp.eq.s32.totalorder %s15, 3
      %p162 = scmp.ne.s32.totalorder %s157, %s159
      %p163 = scmp.eq.s32.totalorder %s15, 0
      %p164 = por %p162, %p163
      %p165 = scmp.ne.s32.totalorder %s157, %s159
      %p166 = scmp.eq.s32.totalorder %s20, 3
      %p167 = por %p165, %p166
      %p168 = scmp.ne.s32.totalorder %s159, %s160
      %p169 = scmp.eq.s32.totalorder %s20, 0
      %p170 = por %p168, %p169
      %p171 = scmp.ne.s32.totalorder %s159, %s160
      %p172 = scmp.eq.s32.totalorder %s21, 3
      %p173 = por %p171, %p172
      %p175 = scmp.ne.s32.totalorder %s160, %s174
      %p176 = scmp.eq.s32.totalorder %s21, 0
      %p177 = por %p175, %p176
      %s179 = sadd.s32 %s178, 1
      %p182 = scmp.eq.s32.totalorder %s15, 3
      %p183 = scmp.ne.s32.totalorder %s178, %s180
      %p184 = scmp.eq.s32.totalorder %s15, 0
      %p185 = por %p183, %p184
      %p186 = scmp.ne.s32.totalorder %s178, %s180
      %p187 = scmp.eq.s32.totalorder %s20, 3
      %p188 = por %p186, %p187
      %p189 = scmp.ne.s32.totalorder %s180, %s181
      %p190 = scmp.eq.s32.totalorder %s20, 0
      %p191 = por %p189, %p190
      %p192 = scmp.ne.s32.totalorder %s180, %s181
      %p193 = scmp.eq.s32.totalorder %s21, 3
      %p194 = por %p192, %p193
      %p196 = scmp.ne.s32.totalorder %s181, %s195
      %p197 = scmp.eq.s32.totalorder %s21, 0
      %p198 = por %p196, %p197
      %s200 = sadd.s32 %s199, 1
      %p203 = scmp.eq.s32.totalorder %s15, 3
      %p204 = scmp.ne.s32.totalorder %s199, %s201
      %p205 = scmp.eq.s32.totalorder %s15, 0
      %p206 = por %p204, %p205
      %p207 = scmp.ne.s32.totalorder %s199, %s201
      %p208 = scmp.eq.s32.totalorder %s20, 3
      %p209 = por %p207, %p208
      %p210 = scmp.ne.s32.totalorder %s201, %s202
      %p211 = scmp.eq.s32.totalorder %s20, 0
      %p212 = por %p210, %p211
      %p213 = scmp.ne.s32.totalorder %s201, %s202
      %p214 = scmp.eq.s32.totalorder %s21, 3
      %p215 = por %p213, %p214
      %p217 = scmp.ne.s32.totalorder %s202, %s216
      %p218 = scmp.eq.s32.totalorder %s21, 0
      %p219 = por %p217, %p218
      %s221 = sadd.s32 %s220, 1
      %p224 = scmp.eq.s32.totalorder %s15, 3
      %p225 = scmp.ne.s32.totalorder %s220, %s222
      %p226 = scmp.eq.s32.totalorder %s15, 0
      %p227 = por %p225, %p226
      %p228 = scmp.ne.s32.totalorder %s220, %s222
      %p229 = scmp.eq.s32.totalorder %s20, 3
      %p230 = por %p228, %p229
      %p231 = scmp.ne.s32.totalorder %s222, %s223
      %p232 = scmp.eq.s32.totalorder %s20, 0
      %p233 = por %p231, %p232
      %p234 = scmp.ne.s32.totalorder %s222, %s223
      %p235 = scmp.eq.s32.totalorder %s21, 3
      %p236 = por %p234, %p235
      %p238 = scmp.ne.s32.totalorder %s223, %s237
      %p239 = scmp.eq.s32.totalorder %s21, 0
      %p240 = por %p238, %p239
      %s241 = ssub.s32 %s22, %s34
      %s242 = ssub.s32 %s23, %s30
      %s243 = sor.u32 %s241, %s242
      %p244 = scmp.eq.s32.totalorder %s243, 0
      %s246 = sadd.s32 %s245, 1
      %s247 = scalar_select %p244, %s245, %s246
      %p250 = pneg %p244
      %p251 = scmp.eq.s32.totalorder %s15, 3
      %p252 = por %p250, %p251
      %p253 = scmp.ne.s32.totalorder %s245, %s248
      %p254 = scmp.eq.s32.totalorder %s15, 0
      %p255 = por %p253, %p254
      %p256 = scmp.ne.s32.totalorder %s245, %s248
      %p257 = scmp.eq.s32.totalorder %s20, 3
      %p258 = por %p256, %p257
      %p259 = scmp.ne.s32.totalorder %s248, %s249
      %p260 = scmp.eq.s32.totalorder %s20, 0
      %p261 = por %p259, %p260
      %p262 = scmp.ne.s32.totalorder %s248, %s249
      %p263 = scmp.eq.s32.totalorder %s21, 3
      %p264 = por %p262, %p263
      %p266 = scmp.ne.s32.totalorder %s249, %s265
      %p267 = scmp.eq.s32.totalorder %s21, 0
      %p268 = por %p266, %p267
      %p269 = scmp.le.s32.totalorder 1, %s15
      %p270 = scmp.lt.s32.totalorder %s15, 5
      %p271 = pnand %p269, %p270
      %p272 = pneg %p271
      // Predicated region
      $region9: #{tpu_custom_call.1} parent=5 // pred_check
        _
      $region10: #{tpu_custom_call.1} parent=5 // pred_check_branch
        %274 = sbr.rel (%p271) target = $region12
      $region11: #{tpu_custom_call.1} parent=5 // pred_region
        %s275 = ssub.s32 %s15, 1
        // Predicated region
        $region13: #{tpu_custom_call.1} parent=11 // pred_check
          %p276 = pneg %p128
        $region14: #{tpu_custom_call.1} parent=11 // pred_check_branch
          %278 = sbr.rel (%p276) target = $region16
        $region15: #{tpu_custom_call.1} parent=11 // pred_region
          _
        $region16: #{tpu_custom_call.1} parent=11 // pred_fallthru
          _
        // Predicated region
        $region17: #{tpu_custom_call.1} parent=11 // pred_check
          %p279 = pneg %p149
        $region18: #{tpu_custom_call.1} parent=11 // pred_check_branch
          %281 = sbr.rel (%p279) target = $region20
        $region19: #{tpu_custom_call.1} parent=11 // pred_region
          _
        $region20: #{tpu_custom_call.1} parent=11 // pred_fallthru
          _
        // Predicated region
        $region21: #{tpu_custom_call.1} parent=11 // pred_check
          %p282 = pneg %p170
        $region22: #{tpu_custom_call.1} parent=11 // pred_check_branch
          %284 = sbr.rel (%p282) target = $region24
        $region23: #{tpu_custom_call.1} parent=11 // pred_region
          _
        $region24: #{tpu_custom_call.1} parent=11 // pred_fallthru
          _
        // Predicated region
        $region25: #{tpu_custom_call.1} parent=11 // pred_check
          %p285 = pneg %p191
        $region26: #{tpu_custom_call.1} parent=11 // pred_check_branch
          %287 = sbr.rel (%p285) target = $region28
        $region27: #{tpu_custom_call.1} parent=11 // pred_region
          _
        $region28: #{tpu_custom_call.1} parent=11 // pred_fallthru
          _
        // Predicated region
        $region29: #{tpu_custom_call.1} parent=11 // pred_check
          %p288 = pneg %p212
        $region30: #{tpu_custom_call.1} parent=11 // pred_check_branch
          %290 = sbr.rel (%p288) target = $region32
        $region31: #{tpu_custom_call.1} parent=11 // pred_region
          _
        $region32: #{tpu_custom_call.1} parent=11 // pred_fallthru
          _
        // Predicated region
        $region33: #{tpu_custom_call.1} parent=11 // pred_check
          %p291 = pneg %p233
        $region34: #{tpu_custom_call.1} parent=11 // pred_check_branch
          %293 = sbr.rel (%p291) target = $region36
        $region35: #{tpu_custom_call.1} parent=11 // pred_region
          _
        $region36: #{tpu_custom_call.1} parent=11 // pred_fallthru
          _
      $region12: #{tpu_custom_call.1} parent=5 // pred_fallthru
        _
      %p294 = scmp.lt.s32.totalorder %s15, 4
      // Predicated region
      $region37: #{tpu_custom_call.1} parent=5 // pred_check
        %p295 = pneg %p294
      $region38: #{tpu_custom_call.1} parent=5 // pred_check_branch
        %297 = sbr.rel (%p295) target = $region40
      $region39: #{tpu_custom_call.1} parent=5 // pred_region
        // Predicated region
        $region41: #{tpu_custom_call.1} parent=39 // pred_check
          %p298 = pneg %p49
        $region42: #{tpu_custom_call.1} parent=39 // pred_check_branch
          %300 = sbr.rel (%p298) target = $region44
        $region43: #{tpu_custom_call.1} parent=39 // pred_region
          %s301 = smul.u32 16, %s23
          %p302 = scmp.lt.s32.totalorder %s22, 1
          %s303 = scalar_select %p302, %s22, 1
          %p304 = scmp.lt.s32.totalorder %s301, 31
          %s305 = scalar_select %p304, %s301, 31
          %s306 = smul.addr %s303, 32
          %s307 = sadd.s32 %s305, %s306
          %s308 = smul.addr %s307, 8
          %s309 = scalar_lea.vmem %s0, %s308
          %s310 = smul.u32 16, %s23
        $region44: #{tpu_custom_call.1} parent=39 // pred_fallthru
          _
        // Predicated region
        $region45: #{tpu_custom_call.1} parent=39 // pred_check
          %p311 = pneg %p75
        $region46: #{tpu_custom_call.1} parent=39 // pred_check_branch
          %313 = sbr.rel (%p311) target = $region48
        $region47: #{tpu_custom_call.1} parent=39 // pred_region
          %p314 = scmp.lt.s32.totalorder %s22, 1
          %s315 = scalar_select %p314, %s22, 1
          %s316 = smul.addr %s315, 4
          %s317 = scalar_lea.vmem %s1, %s316
        $region48: #{tpu_custom_call.1} parent=39 // pred_fallthru
          _
        // Predicated region
        $region49: #{tpu_custom_call.1} parent=39 // pred_check
          %p318 = pneg %p101
        $region50: #{tpu_custom_call.1} parent=39 // pred_check_branch
          %320 = sbr.rel (%p318) target = $region52
        $region51: #{tpu_custom_call.1} parent=39 // pred_region
          %s321 = sand.u32 %s91, 1
          %s322 = sand.u32 %s91, 1
          %s323 = smul.addr %s322, 24
          %s324 = scalar_lea.vmem [#allocation2], %s323
          %s325 = smul.addr %s23, 8
          %s326 = scalar_lea.vmem %s2, %s325
          // Predicated region
          $region53: #{tpu_custom_call.1} parent=51 // pred_check
            _
          $region54: #{tpu_custom_call.1} parent=51 // pred_check_branch
            %328 = sbr.rel (0) target = $region56
          $region55: #{tpu_custom_call.1} parent=51 // pred_region
            // Predicated region
            $region57: #{tpu_custom_call.1} parent=55 // pred_check
              _
            $region58: #{tpu_custom_call.1} parent=55 // pred_check_branch
              %330 = sbr.rel (0) target = $region60
            $region59: #{tpu_custom_call.1} parent=55 // pred_region
              // Predicated region
              $region72: #{tpu_custom_call.1} parent=59 // pred_check
                _
              $region73: #{tpu_custom_call.1} parent=59 // pred_check_branch
                %349 = sbr.rel (0) target = $region75
              $region74: #{tpu_custom_call.1} parent=59 // pred_region
                loop: start=0, step=1, limit=1
                $region76: #{tpu_custom_call.1} parent=74 // loop_pre_header
                  _
                $region77: #{tpu_custom_call.1} parent=74 // loop_header
                  %s351 = sphi 0, %s355
                  %p352 = scmp.ge.s32.totalorder %s351, 1
                  %s356 = sphi %s326, %s326
                  %s357 = sphi %s324, %s324
                $region78: #{tpu_custom_call.1} parent=74 // loop_header_branch
                  %354 = sbr.rel (%p352) target = $region82
                $region79: #{tpu_custom_call.1} parent=74 // loop_body
                  %v358 = vld [vmem:[%s356] sm:$0xff]
                  %359 = vst [vmem:[%s357] sm:$0xff] %v358
                  %v360 = vld [vmem:[%s356 + $0x10] sm:$0xff]
                  %361 = vst [vmem:[%s357 + $0x8] sm:$0xff] %v360
                  %v362 = vld [vmem:[%s356 + $0x20] sm:$0xff]
                  %363 = vst [vmem:[%s357 + $0x10] sm:$0xff] %v362
                $region80: #{tpu_custom_call.1} parent=74 // loop_footer
                  %s355 = sadd.s32 1, %s351
                $region81: #{tpu_custom_call.1} parent=74 // loop_footer_branch
                  %350 = sbr.rel target = $region77
                $region82: #{tpu_custom_call.1} parent=74 // loop_exit
                  _
              $region75: #{tpu_custom_call.1} parent=59 // pred_fallthru
                _
              // Predicated region
              $region83: #{tpu_custom_call.1} parent=59 // pred_check
                _
              $region84: #{tpu_custom_call.1} parent=59 // pred_check_branch
                %365 = sbr.rel target = $region86
              $region85: #{tpu_custom_call.1} parent=59 // pred_region
                _
              $region86: #{tpu_custom_call.1} parent=59 // pred_fallthru
                _
            $region60: #{tpu_custom_call.1} parent=55 // pred_fallthru
              _
            // Predicated region
            $region61: #{tpu_custom_call.1} parent=55 // pred_check
              _
            $region62: #{tpu_custom_call.1} parent=55 // pred_check_branch
              %332 = sbr.rel target = $region64
            $region63: #{tpu_custom_call.1} parent=55 // pred_region
              loop: start=0, step=1, limit=1
              $region65: #{tpu_custom_call.1} parent=63 // loop_pre_header
                _
              $region66: #{tpu_custom_call.1} parent=63 // loop_header
                %s335 = sphi 0, %s339
                %p336 = scmp.ge.s32.totalorder %s335, 1
                %s340 = sphi %s326, %s326
                %s341 = sphi %s324, %s324
              $region67: #{tpu_custom_call.1} parent=63 // loop_header_branch
                %338 = sbr.rel (%p336) target = $region71
              $region68: #{tpu_custom_call.1} parent=63 // loop_body
                %v342 = vld [vmem:[%s340] sm:$0xff]
                %343 = vst [vmem:[%s341] sm:$0xff] %v342
                %v344 = vld [vmem:[%s340 + $0x10] sm:$0xff]
                %345 = vst [vmem:[%s341 + $0x8] sm:$0xff] %v344
                %v346 = vld [vmem:[%s340 + $0x20] sm:$0xff]
                %347 = vst [vmem:[%s341 + $0x10] sm:$0xff] %v346
              $region69: #{tpu_custom_call.1} parent=63 // loop_footer
                %s339 = sadd.s32 1, %s335
              $region70: #{tpu_custom_call.1} parent=63 // loop_footer_branch
                %334 = sbr.rel target = $region66
              $region71: #{tpu_custom_call.1} parent=63 // loop_exit
                _
            $region64: #{tpu_custom_call.1} parent=55 // pred_fallthru
              _
          $region56: #{tpu_custom_call.1} parent=51 // pred_fallthru
            _
          %366 = vnop
        $region52: #{tpu_custom_call.1} parent=39 // pred_fallthru
          _
      $region40: #{tpu_custom_call.1} parent=5 // pred_fallthru
        _
      %p367 = scmp.le.s32.totalorder 1, %s15
      %p368 = scmp.lt.s32.totalorder %s15, 5
      %p369 = pnand %p367, %p368
      %p370 = pneg %p369
      // Predicated region
      $region87: #{tpu_custom_call.1} parent=5 // pred_check
        _
      $region88: #{tpu_custom_call.1} parent=5 // pred_check_branch
        %372 = sbr.rel (%p369) target = $region90
      $region89: #{tpu_custom_call.1} parent=5 // pred_region
        %s373 = ssub.s32 %s15, 1
        %s374 = sand.u32 %s94, 1
        %s375 = sand.u32 %s94, 1
        %s376 = smul.addr %s375, 24
        %s377 = scalar_lea.vmem [#allocation2], %s376
        // Predicated region
        $region91: #{tpu_custom_call.1} parent=89 // pred_check
          %p378 = pneg %p107
        $region92: #{tpu_custom_call.1} parent=89 // pred_check_branch
          %380 = sbr.rel (%p378) target = $region94
        $region93: #{tpu_custom_call.1} parent=89 // pred_region
          _
        $region94: #{tpu_custom_call.1} parent=89 // pred_fallthru
          _
        %s381 = smul.u32 16, %s25
        %p382 = scmp.lt.s32.totalorder %s24, 1
        %s383 = scalar_select %p382, %s24, 1
        %p384 = scmp.lt.s32.totalorder %s381, 31
        %s385 = scalar_select %p384, %s381, 31
        %s386 = smul.addr %s383, 32
        %s387 = sadd.s32 %s385, %s386
        %s388 = smul.addr %s387, 8
        %s389 = scalar_lea.vmem %s0, %s388
        %p390 = pneg %p55
        %p391 = pneg %p52
        %p392 = scmp.lt.s32.totalorder %s24, 1
        %s393 = scalar_select %p392, %s24, 1
        %s394 = smul.addr %s393, 4
        %s395 = scalar_lea.vmem %s1, %s394
        %p396 = pneg %p81
        %p397 = pneg %p78
        %s398 = sand.u32 %s94, 1
        %s399 = sand.u32 %s94, 1
        %s400 = smul.addr %s399, 24
        %s401 = scalar_lea.vmem [#allocation2], %s400
        %p402 = pneg %p107
        %p403 = pneg %p104
        %p404 = pneg %p128
        %p405 = pneg %p125
        %p406 = pneg %p149
        %p407 = pneg %p146
        %p408 = pneg %p170
        %p409 = pneg %p167
        %p410 = pneg %p191
        %p411 = pneg %p188
        %p412 = pneg %p212
        %p413 = pneg %p209
        %p414 = pneg %p233
        %p415 = pneg %p230
        %p416 = pneg %p261
        %p417 = pneg %p258
        %s418 = smul.u32 16, %s25
        %p419 = scmp.lt.s32.totalorder %s24, 1
        %s420 = scalar_select %p419, %s24, 1
        %p421 = scmp.lt.s32.totalorder %s418, 31
        %s422 = scalar_select %p421, %s418, 31
        %s423 = smul.addr %s420, 32
        %s424 = sadd.s32 %s422, %s423
        %s425 = smul.addr %s424, 8
        %s426 = scalar_lea.vmem %s9, %s425
        %s427 = smul.u32 16, %s25
        %p428 = scmp.lt.s32.totalorder %s24, 1
        %s429 = scalar_select %p428, %s24, 1
        %p430 = scmp.lt.s32.totalorder %s427, 31
        %s431 = scalar_select %p430, %s427, 31
        %s432 = smul.addr %s429, 32
        %s433 = sadd.s32 %s431, %s432
        %s434 = smul.addr %s433, 8
        %s435 = scalar_lea.vmem %s0, %s434
        %s436 = smul.u32 16, %s25
        %p437 = scmp.lt.s32.totalorder %s24, 1
        %s438 = scalar_select %p437, %s24, 1
        %s439 = smul.addr %s438, 4
        %s440 = scalar_lea.vmem %s1, %s439
        %s441 = smul.u32 16, %s25
        %p442 = scmp.lt.s32.totalorder %s24, 1
        %s443 = scalar_select %p442, %s24, 1
        %p444 = scmp.lt.s32.totalorder %s441, 31
        %s445 = scalar_select %p444, %s441, 31
        %s446 = smul.addr %s443, 32
        %s447 = sadd.s32 %s445, %s446
        %s448 = smul.addr %s447, 8
        %s449 = scalar_lea.vmem %s9, %s448
        %s450 = smul.u32 16, %s25
        %v451 = vld [vmem:[%s440] sm:$0xf]
        %v452 = vld [vmem:[%s4] sm:$0xff]
        %v453 = vld [vmem:[%s4 + $0x8] sm:$0x1]
        %v454 = vld [vmem:[%s377] sm:$0xff]
        %vm455 = vcmask 31744
        %v457 = vsel %vm455, %v454, 0
        %vm459 = vcmask 1043456
        %v461 = vsel %vm459, %v451, 0
        %463 = vmatprep.subr.mxu0 0.0
        %464 = vmatpush1.msra.mxu0 %v461
        %465 = vmatprep.subr.mxu0 0.0
        %466 = vmatpush1.msra.mxu0 0.0
        %467 = vmatprep.subr.mxu0 0.0
        %468 = vmatpush1.msra.mxu0 0.0
        %469 = vmatprep.subr.mxu0 0.0
        %470 = vmatpush1.msra.mxu0 0.0
        %471 = vmatprep.subr.mxu0 0.0
        %472 = vmatpush1.msra.mxu0 0.0
        %473 = vmatprep.subr.mxu0 0.0
        %474 = vmatpush1.msra.mxu0 0.0
        %475 = vmatprep.subr.mxu0 0.0
        %476 = vmatpush1.msra.mxu0 0.0
        %477 = vmatprep.subr.mxu0 0.0
        %478 = vmatpush1.msra.mxu0 0.0
        %479 = vmatprep.subr.mxu0 0.0
        %480 = vmatpush1.msra.mxu0 0.0
        %481 = vmatprep.subr.mxu0 0.0
        %482 = vmatpush1.msra.mxu0 0.0
        %483 = vmatprep.subr.mxu0 0.0
        %484 = vmatpush1.msra.mxu0 0.0
        %485 = vmatprep.subr.mxu0 0.0
        %486 = vmatpush1.msra.mxu0 0.0
        %487 = vmatprep.subr.mxu0 0.0
        %488 = vmatpush1.msra.mxu0 0.0
        %489 = vmatprep.subr.mxu0 0.0
        %490 = vmatpush1.msra.mxu0 0.0
        %491 = vmatprep.subr.mxu0 0.0
        %492 = vmatpush1.msra.mxu0 0.0
        %493 = vmatprep.subr.mxu0 0.0
        %494 = vmatpush1.msra.mxu0 0.0
        %495 = vmatprep.subr.mxu0 0.0
        %496 = vmatpush1.msra.mxu0 0.0
        %497 = vmatprep.subr.mxu0 0.0
        %498 = vmatpush1.msra.mxu0 0.0
        %499 = vmatprep.subr.mxu0 0.0
        %500 = vmatpush1.msra.mxu0 0.0
        %501 = vmatprep.subr.mxu0 0.0
        %502 = vmatpush1.msra.mxu0 0.0
        %503 = vmatprep.subr.mxu0 0.0
        %504 = vmatpush1.msra.mxu0 0.0
        %505 = vmatprep.subr.mxu0 0.0
        %506 = vmatpush1.msra.mxu0 0.0
        %507 = vmatprep.subr.mxu0 0.0
        %508 = vmatpush1.msra.mxu0 0.0
        %509 = vmatprep.subr.mxu0 0.0
        %510 = vmatpush1.msra.mxu0 0.0
        %511 = vmatprep.subr.mxu0 0.0
        %512 = vmatpush1.msra.mxu0 0.0
        %513 = vmatprep.subr.mxu0 0.0
        %514 = vmatpush1.msra.mxu0 0.0
        %515 = vmatprep.subr.mxu0 0.0
        %516 = vmatpush1.msra.mxu0 0.0
        %517 = vmatprep.subr.mxu0 0.0
        %518 = vmatpush1.msra.mxu0 0.0
        %519 = vmatprep.subr.mxu0 0.0
        %520 = vmatpush1.msra.mxu0 0.0
        %521 = vmatprep.subr.mxu0 0.0
        %522 = vmatpush1.msra.mxu0 0.0
        %523 = vmatprep.subr.mxu0 0.0
        %524 = vmatpush1.msra.mxu0 0.0
        %525 = vmatprep.subr.mxu0 0.0
        %526 = vmatpush1.msra.mxu0 0.0
        %527 = vmatprep.mubr.f32.mxu0 0.0
        %528 = vmatmul.mubr.f32.gmra.mrb[0].mxu0 %v457
        %v529 = vpop.f32.mrb[0].mxu0
        %v530 = vadd.f32 0.0, %v529
        %v531 = vpop.f32.mrb[0].mxu0
        %532 = vdwg.mxu0
        %534 = vrot.lane.b32.xlu0 %v530, 120
        %v535 = vpop.permute.xlu0 %534
        %537 = vrot.lane.b32.xlu0 %v530, 112
        %v538 = vpop.permute.xlu0 %537
        %540 = vrot.lane.b32.xlu0 %v530, 104
        %v541 = vpop.permute.xlu0 %540
        %v543 = vcombine.low %v530, %v538
        %v544 = vcombine.high %v530, %v538
        %v546 = vunpack.c.l.s4 1983009808
        %v547 = vunpack.c.0.s8 %v546
        %v548 = vlaneseq
        %v549 = vshrl.u32 %v548, 7
        %v550 = vsub.s32 %v547, %v549
        %v551 = vrot.slane %v543, %v550
        %v553 = vunpack.c.l.s4 1983009808
        %v554 = vunpack.c.0.s8 %v553
        %v555 = vlaneseq
        %v556 = vshrl.u32 %v555, 7
        %v557 = vsub.s32 %v554, %v556
        %v558 = vrot.slane %v544, %v557
        %v559 = vcombine.low %v535, %v541
        %v560 = vcombine.high %v535, %v541
        %v562 = vunpack.c.l.s4 1983009808
        %v563 = vunpack.c.0.s8 %v562
        %v564 = vlaneseq
        %v565 = vshrl.u32 %v564, 7
        %v566 = vsub.s32 %v563, %v565
        %v567 = vrot.slane %v559, %v566
        %v569 = vunpack.c.l.s4 1983009808
        %v570 = vunpack.c.0.s8 %v569
        %v571 = vlaneseq
        %v572 = vshrl.u32 %v571, 7
        %v573 = vsub.s32 %v570, %v572
        %v574 = vrot.slane %v560, %v573
        %v575 = vcombine.low %v551, %v567
        %v576 = vcombine.high %v551, %v567
        %v578 = vunpack.c.l.s4 1934713408
        %v579 = vunpack.c.0.s8 %v578
        %v580 = vlaneseq
        %v581 = vshrl.u32 %v580, 7
        %v582 = vsub.s32 %v579, %v581
        %v583 = vrot.slane %v575, %v582
        %v585 = vunpack.c.l.s4 1934713408
        %v586 = vunpack.c.0.s8 %v585
        %v587 = vlaneseq
        %v588 = vshrl.u32 %v587, 7
        %v589 = vsub.s32 %v586, %v588
        %v590 = vrot.slane %v576, %v589
        %v591 = vcombine.low %v558, %v574
        %v592 = vcombine.high %v558, %v574
        %v594 = vunpack.c.l.s4 1934713408
        %v595 = vunpack.c.0.s8 %v594
        %v596 = vlaneseq
        %v597 = vshrl.u32 %v596, 7
        %v598 = vsub.s32 %v595, %v597
        %v599 = vrot.slane %v591, %v598
        %v601 = vunpack.c.l.s4 1934713408
        %v602 = vunpack.c.0.s8 %v601
        %v603 = vlaneseq
        %v604 = vshrl.u32 %v603, 7
        %v605 = vsub.s32 %v602, %v604
        %v606 = vrot.slane %v592, %v605
        %v607 = vcombine.high %v583, 0.0
        %v608 = vcombine.high %v590, 0.0
        %v609 = vcombine.high %v599, 0.0
        %v610 = vcombine.high %v606, 0.0
        %s611 = scalar_lea.vmem %s377, 8 [#allocation2]
        %v612 = vld [vmem:[%s611] sm:$0xff]
        %v614 = vsel %vm455, %v612, 0
        %616 = vmatprep.subr.mxu0 0.0
        %617 = vmatpush1.msra.mxu0 %v461
        %618 = vmatprep.subr.mxu0 0.0
        %619 = vmatpush1.msra.mxu0 0.0
        %620 = vmatprep.subr.mxu0 0.0
        %621 = vmatpush1.msra.mxu0 0.0
        %622 = vmatprep.subr.mxu0 0.0
        %623 = vmatpush1.msra.mxu0 0.0
        %624 = vmatprep.subr.mxu0 0.0
        %625 = vmatpush1.msra.mxu0 0.0
        %626 = vmatprep.subr.mxu0 0.0
        %627 = vmatpush1.msra.mxu0 0.0
        %628 = vmatprep.subr.mxu0 0.0
        %629 = vmatpush1.msra.mxu0 0.0
        %630 = vmatprep.subr.mxu0 0.0
        %631 = vmatpush1.msra.mxu0 0.0
        %632 = vmatprep.subr.mxu0 0.0
        %633 = vmatpush1.msra.mxu0 0.0
        %634 = vmatprep.subr.mxu0 0.0
        %635 = vmatpush1.msra.mxu0 0.0
        %636 = vmatprep.subr.mxu0 0.0
        %637 = vmatpush1.msra.mxu0 0.0
        %638 = vmatprep.subr.mxu0 0.0
        %639 = vmatpush1.msra.mxu0 0.0
        %640 = vmatprep.subr.mxu0 0.0
        %641 = vmatpush1.msra.mxu0 0.0
        %642 = vmatprep.subr.mxu0 0.0
        %643 = vmatpush1.msra.mxu0 0.0
        %644 = vmatprep.subr.mxu0 0.0
        %645 = vmatpush1.msra.mxu0 0.0
        %646 = vmatprep.subr.mxu0 0.0
        %647 = vmatpush1.msra.mxu0 0.0
        %648 = vmatprep.subr.mxu0 0.0
        %649 = vmatpush1.msra.mxu0 0.0
        %650 = vmatprep.subr.mxu0 0.0
        %651 = vmatpush1.msra.mxu0 0.0
        %652 = vmatprep.subr.mxu0 0.0
        %653 = vmatpush1.msra.mxu0 0.0
        %654 = vmatprep.subr.mxu0 0.0
        %655 = vmatpush1.msra.mxu0 0.0
        %656 = vmatprep.subr.mxu0 0.0
        %657 = vmatpush1.msra.mxu0 0.0
        %658 = vmatprep.subr.mxu0 0.0
        %659 = vmatpush1.msra.mxu0 0.0
        %660 = vmatprep.subr.mxu0 0.0
        %661 = vmatpush1.msra.mxu0 0.0
        %662 = vmatprep.subr.mxu0 0.0
        %663 = vmatpush1.msra.mxu0 0.0
        %664 = vmatprep.subr.mxu0 0.0
        %665 = vmatpush1.msra.mxu0 0.0
        %666 = vmatprep.subr.mxu0 0.0
        %667 = vmatpush1.msra.mxu0 0.0
        %668 = vmatprep.subr.mxu0 0.0
        %669 = vmatpush1.msra.mxu0 0.0
        %670 = vmatprep.subr.mxu0 0.0
        %671 = vmatpush1.msra.mxu0 0.0
        %672 = vmatprep.subr.mxu0 0.0
        %673 = vmatpush1.msra.mxu0 0.0
        %674 = vmatprep.subr.mxu0 0.0
        %675 = vmatpush1.msra.mxu0 0.0
        %676 = vmatprep.subr.mxu0 0.0
        %677 = vmatpush1.msra.mxu0 0.0
        %678 = vmatprep.subr.mxu0 0.0
        %679 = vmatpush1.msra.mxu0 0.0
        %680 = vmatprep.mubr.f32.mxu0 0.0
        %681 = vmatmul.mubr.f32.gmra.mrb[0].mxu0 %v614
        %v682 = vpop.f32.mrb[0].mxu0
        %v683 = vadd.f32 0.0, %v682
        %v684 = vpop.f32.mrb[0].mxu0
        %685 = vdwg.mxu0
        %687 = vrot.lane.b32.xlu0 %v683, 120
        %v688 = vpop.permute.xlu0 %687
        %690 = vrot.lane.b32.xlu0 %v683, 112
        %v691 = vpop.permute.xlu0 %690
        %693 = vrot.lane.b32.xlu0 %v683, 104
        %v694 = vpop.permute.xlu0 %693
        %v696 = vcombine.low %v683, %v691
        %v697 = vcombine.high %v683, %v691
        %v699 = vunpack.c.l.s4 1983009808
        %v700 = vunpack.c.0.s8 %v699
        %v701 = vlaneseq
        %v702 = vshrl.u32 %v701, 7
        %v703 = vsub.s32 %v700, %v702
        %v704 = vrot.slane %v696, %v703
        %v706 = vunpack.c.l.s4 1983009808
        %v707 = vunpack.c.0.s8 %v706
        %v708 = vlaneseq
        %v709 = vshrl.u32 %v708, 7
        %v710 = vsub.s32 %v707, %v709
        %v711 = vrot.slane %v697, %v710
        %v712 = vcombine.low %v688, %v694
        %v713 = vcombine.high %v688, %v694
        %v715 = vunpack.c.l.s4 1983009808
        %v716 = vunpack.c.0.s8 %v715
        %v717 = vlaneseq
        %v718 = vshrl.u32 %v717, 7
        %v719 = vsub.s32 %v716, %v718
        %v720 = vrot.slane %v712, %v719
        %v722 = vunpack.c.l.s4 1983009808
        %v723 = vunpack.c.0.s8 %v722
        %v724 = vlaneseq
        %v725 = vshrl.u32 %v724, 7
        %v726 = vsub.s32 %v723, %v725
        %v727 = vrot.slane %v713, %v726
        %v728 = vcombine.low %v704, %v720
        %v729 = vcombine.high %v704, %v720
        %v731 = vunpack.c.l.s4 1934713408
        %v732 = vunpack.c.0.s8 %v731
        %v733 = vlaneseq
        %v734 = vshrl.u32 %v733, 7
        %v735 = vsub.s32 %v732, %v734
        %v736 = vrot.slane %v728, %v735
        %v738 = vunpack.c.l.s4 1934713408
        %v739 = vunpack.c.0.s8 %v738
        %v740 = vlaneseq
        %v741 = vshrl.u32 %v740, 7
        %v742 = vsub.s32 %v739, %v741
        %v743 = vrot.slane %v729, %v742
        %v744 = vcombine.low %v711, %v727
        %v745 = vcombine.high %v711, %v727
        %v747 = vunpack.c.l.s4 1934713408
        %v748 = vunpack.c.0.s8 %v747
        %v749 = vlaneseq
        %v750 = vshrl.u32 %v749, 7
        %v751 = vsub.s32 %v748, %v750
        %v752 = vrot.slane %v744, %v751
        %v754 = vunpack.c.l.s4 1934713408
        %v755 = vunpack.c.0.s8 %v754
        %v756 = vlaneseq
        %v757 = vshrl.u32 %v756, 7
        %v758 = vsub.s32 %v755, %v757
        %v759 = vrot.slane %v745, %v758
        %v760 = vcombine.high %v736, 0.0
        %v761 = vcombine.high %v743, 0.0
        %v762 = vcombine.high %v752, 0.0
        %v763 = vcombine.high %v759, 0.0
        %s764 = scalar_lea.vmem %s377, 16 [#allocation2]
        %v765 = vld [vmem:[%s764] sm:$0xff]
        %v767 = vsel %vm455, %v765, 0
        %769 = vmatprep.subr.mxu0 0.0
        %770 = vmatpush1.msra.mxu0 %v461
        %771 = vmatprep.subr.mxu0 0.0
        %772 = vmatpush1.msra.mxu0 0.0
        %773 = vmatprep.subr.mxu0 0.0
        %774 = vmatpush1.msra.mxu0 0.0
        %775 = vmatprep.subr.mxu0 0.0
        %776 = vmatpush1.msra.mxu0 0.0
        %777 = vmatprep.subr.mxu0 0.0
        %778 = vmatpush1.msra.mxu0 0.0
        %779 = vmatprep.subr.mxu0 0.0
        %780 = vmatpush1.msra.mxu0 0.0
        %781 = vmatprep.subr.mxu0 0.0
        %782 = vmatpush1.msra.mxu0 0.0
        %783 = vmatprep.subr.mxu0 0.0
        %784 = vmatpush1.msra.mxu0 0.0
        %785 = vmatprep.subr.mxu0 0.0
        %786 = vmatpush1.msra.mxu0 0.0
        %787 = vmatprep.subr.mxu0 0.0
        %788 = vmatpush1.msra.mxu0 0.0
        %789 = vmatprep.subr.mxu0 0.0
        %790 = vmatpush1.msra.mxu0 0.0
        %791 = vmatprep.subr.mxu0 0.0
        %792 = vmatpush1.msra.mxu0 0.0
        %793 = vmatprep.subr.mxu0 0.0
        %794 = vmatpush1.msra.mxu0 0.0
        %795 = vmatprep.subr.mxu0 0.0
        %796 = vmatpush1.msra.mxu0 0.0
        %797 = vmatprep.subr.mxu0 0.0
        %798 = vmatpush1.msra.mxu0 0.0
        %799 = vmatprep.subr.mxu0 0.0
        %800 = vmatpush1.msra.mxu0 0.0
        %801 = vmatprep.subr.mxu0 0.0
        %802 = vmatpush1.msra.mxu0 0.0
        %803 = vmatprep.subr.mxu0 0.0
        %804 = vmatpush1.msra.mxu0 0.0
        %805 = vmatprep.subr.mxu0 0.0
        %806 = vmatpush1.msra.mxu0 0.0
        %807 = vmatprep.subr.mxu0 0.0
        %808 = vmatpush1.msra.mxu0 0.0
        %809 = vmatprep.subr.mxu0 0.0
        %810 = vmatpush1.msra.mxu0 0.0
        %811 = vmatprep.subr.mxu0 0.0
        %812 = vmatpush1.msra.mxu0 0.0
        %813 = vmatprep.subr.mxu0 0.0
        %814 = vmatpush1.msra.mxu0 0.0
        %815 = vmatprep.subr.mxu0 0.0
        %816 = vmatpush1.msra.mxu0 0.0
        %817 = vmatprep.subr.mxu0 0.0
        %818 = vmatpush1.msra.mxu0 0.0
        %819 = vmatprep.subr.mxu0 0.0
        %820 = vmatpush1.msra.mxu0 0.0
        %821 = vmatprep.subr.mxu0 0.0
        %822 = vmatpush1.msra.mxu0 0.0
        %823 = vmatprep.subr.mxu0 0.0
        %824 = vmatpush1.msra.mxu0 0.0
        %825 = vmatprep.subr.mxu0 0.0
        %826 = vmatpush1.msra.mxu0 0.0
        %827 = vmatprep.subr.mxu0 0.0
        %828 = vmatpush1.msra.mxu0 0.0
        %829 = vmatprep.subr.mxu0 0.0
        %830 = vmatpush1.msra.mxu0 0.0
        %831 = vmatprep.subr.mxu0 0.0
        %832 = vmatpush1.msra.mxu0 0.0
        %833 = vmatprep.mubr.f32.mxu0 0.0
        %834 = vmatmul.mubr.f32.gmra.mrb[0].mxu0 %v767
        %v835 = vpop.f32.mrb[0].mxu0
        %v836 = vadd.f32 0.0, %v835
        %v837 = vpop.f32.mrb[0].mxu0
        %838 = vdwg.mxu0
        %840 = vrot.lane.b32.xlu0 %v836, 120
        %v841 = vpop.permute.xlu0 %840
        %843 = vrot.lane.b32.xlu0 %v836, 112
        %v844 = vpop.permute.xlu0 %843
        %846 = vrot.lane.b32.xlu0 %v836, 104
        %v847 = vpop.permute.xlu0 %846
        %v849 = vcombine.low %v836, %v844
        %v850 = vcombine.high %v836, %v844
        %v852 = vunpack.c.l.s4 1983009808
        %v853 = vunpack.c.0.s8 %v852
        %v854 = vlaneseq
        %v855 = vshrl.u32 %v854, 7
        %v856 = vsub.s32 %v853, %v855
        %v857 = vrot.slane %v849, %v856
        %v859 = vunpack.c.l.s4 1983009808
        %v860 = vunpack.c.0.s8 %v859
        %v861 = vlaneseq
        %v862 = vshrl.u32 %v861, 7
        %v863 = vsub.s32 %v860, %v862
        %v864 = vrot.slane %v850, %v863
        %v865 = vcombine.low %v841, %v847
        %v866 = vcombine.high %v841, %v847
        %v868 = vunpack.c.l.s4 1983009808
        %v869 = vunpack.c.0.s8 %v868
        %v870 = vlaneseq
        %v871 = vshrl.u32 %v870, 7
        %v872 = vsub.s32 %v869, %v871
        %v873 = vrot.slane %v865, %v872
        %v875 = vunpack.c.l.s4 1983009808
        %v876 = vunpack.c.0.s8 %v875
        %v877 = vlaneseq
        %v878 = vshrl.u32 %v877, 7
        %v879 = vsub.s32 %v876, %v878
        %v880 = vrot.slane %v866, %v879
        %v881 = vcombine.low %v857, %v873
        %v882 = vcombine.high %v857, %v873
        %v884 = vunpack.c.l.s4 1934713408
        %v885 = vunpack.c.0.s8 %v884
        %v886 = vlaneseq
        %v887 = vshrl.u32 %v886, 7
        %v888 = vsub.s32 %v885, %v887
        %v889 = vrot.slane %v881, %v888
        %v891 = vunpack.c.l.s4 1934713408
        %v892 = vunpack.c.0.s8 %v891
        %v893 = vlaneseq
        %v894 = vshrl.u32 %v893, 7
        %v895 = vsub.s32 %v892, %v894
        %v896 = vrot.slane %v882, %v895
        %v897 = vcombine.low %v864, %v880
        %v898 = vcombine.high %v864, %v880
        %v900 = vunpack.c.l.s4 1934713408
        %v901 = vunpack.c.0.s8 %v900
        %v902 = vlaneseq
        %v903 = vshrl.u32 %v902, 7
        %v904 = vsub.s32 %v901, %v903
        %v905 = vrot.slane %v897, %v904
        %v907 = vunpack.c.l.s4 1934713408
        %v908 = vunpack.c.0.s8 %v907
        %v909 = vlaneseq
        %v910 = vshrl.u32 %v909, 7
        %v911 = vsub.s32 %v908, %v910
        %v912 = vrot.slane %v898, %v911
        %v913 = vcombine.high %v889, 0.0
        %v914 = vcombine.high %v896, 0.0
        %v915 = vcombine.high %v905, 0.0
        %v916 = vcombine.high %v912, 0.0
        %v917 = vlaneseq
        %v918 = vshrl.u32 %v917, 7
        %v919 = vsub.s32 0, %v918
        %v920 = vrot.slane %v452, %v919
        %v921 = vmul.f32 %v583, %v920
        %v922 = vmul.f32 %v607, %v920
        %v923 = vmul.f32 %v590, %v920
        %v924 = vmul.f32 %v608, %v920
        %v925 = vmul.f32 %v599, %v920
        %v926 = vmul.f32 %v609, %v920
        %v927 = vmul.f32 %v606, %v920
        %v928 = vmul.f32 %v610, %v920
        %v929 = vlaneseq
        %v930 = vshrl.u32 %v929, 7
        %v931 = vsub.s32 3, %v930
        %v932 = vrot.slane %v452, %v931
        %v933 = vmul.f32 %v736, %v932
        %v934 = vmul.f32 %v760, %v932
        %v935 = vmul.f32 %v743, %v932
        %v936 = vmul.f32 %v761, %v932
        %v937 = vmul.f32 %v752, %v932
        %v938 = vmul.f32 %v762, %v932
        %v939 = vmul.f32 %v759, %v932
        %v940 = vmul.f32 %v763, %v932
        %v941 = vadd.f32 %v921, %v933
        %v942 = vadd.f32 %v922, %v934
        %v943 = vadd.f32 %v923, %v935
        %v944 = vadd.f32 %v924, %v936
        %v945 = vadd.f32 %v925, %v937
        %v946 = vadd.f32 %v926, %v938
        %v947 = vadd.f32 %v927, %v939
        %v948 = vadd.f32 %v928, %v940
        %v949 = vlaneseq
        %v950 = vshrl.u32 %v949, 7
        %v951 = vsub.s32 6, %v950
        %v952 = vrot.slane %v452, %v951
        %v953 = vmul.f32 %v889, %v952
        %v954 = vmul.f32 %v913, %v952
        %v955 = vmul.f32 %v896, %v952
        %v956 = vmul.f32 %v914, %v952
        %v957 = vmul.f32 %v905, %v952
        %v958 = vmul.f32 %v915, %v952
        %v959 = vmul.f32 %v912, %v952
        %v960 = vmul.f32 %v916, %v952
        %v961 = vadd.f32 %v941, %v953
        %v962 = vadd.f32 %v942, %v954
        %v963 = vadd.f32 %v943, %v955
        %v964 = vadd.f32 %v944, %v956
        %v965 = vadd.f32 %v945, %v957
        %v966 = vadd.f32 %v946, %v958
        %v967 = vadd.f32 %v947, %v959
        %v968 = vadd.f32 %v948, %v960
        %v969 = vld [vmem:[%s3] sm:$0xff]
        %v970 = vld [vmem:[%s3 + $0x8] sm:$0xff]
        %v971 = vlaneseq
        %v972 = vshrl.u32 %v971, 7
        %v973 = vsub.s32 1, %v972
        %v974 = vrot.slane %v452, %v973
        %v975 = vmul.f32 %v583, %v974
        %v976 = vmul.f32 %v607, %v974
        %v977 = vmul.f32 %v590, %v974
        %v978 = vmul.f32 %v608, %v974
        %v979 = vmul.f32 %v599, %v974
        %v980 = vmul.f32 %v609, %v974
        %v981 = vmul.f32 %v606, %v974
        %v982 = vmul.f32 %v610, %v974
        %v983 = vlaneseq
        %v984 = vshrl.u32 %v983, 7
        %v985 = vsub.s32 4, %v984
        %v986 = vrot.slane %v452, %v985
        %v987 = vmul.f32 %v736, %v986
        %v988 = vmul.f32 %v760, %v986
        %v989 = vmul.f32 %v743, %v986
        %v990 = vmul.f32 %v761, %v986
        %v991 = vmul.f32 %v752, %v986
        %v992 = vmul.f32 %v762, %v986
        %v993 = vmul.f32 %v759, %v986
        %v994 = vmul.f32 %v763, %v986
        %v995 = vadd.f32 %v975, %v987
        %v996 = vadd.f32 %v976, %v988
        %v997 = vadd.f32 %v977, %v989
        %v998 = vadd.f32 %v978, %v990
        %v999 = vadd.f32 %v979, %v991
        %v1000 = vadd.f32 %v980, %v992
        %v1001 = vadd.f32 %v981, %v993
        %v1002 = vadd.f32 %v982, %v994
        %v1003 = vlaneseq
        %v1004 = vshrl.u32 %v1003, 7
        %v1005 = vsub.s32 7, %v1004
        %v1006 = vrot.slane %v452, %v1005
        %v1007 = vmul.f32 %v889, %v1006
        %v1008 = vmul.f32 %v913, %v1006
        %v1009 = vmul.f32 %v896, %v1006
        %v1010 = vmul.f32 %v914, %v1006
        %v1011 = vmul.f32 %v905, %v1006
        %v1012 = vmul.f32 %v915, %v1006
        %v1013 = vmul.f32 %v912, %v1006
        %v1014 = vmul.f32 %v916, %v1006
        %v1015 = vadd.f32 %v995, %v1007
        %v1016 = vadd.f32 %v996, %v1008
        %v1017 = vadd.f32 %v997, %v1009
        %v1018 = vadd.f32 %v998, %v1010
        %v1019 = vadd.f32 %v999, %v1011
        %v1020 = vadd.f32 %v1000, %v1012
        %v1021 = vadd.f32 %v1001, %v1013
        %v1022 = vadd.f32 %v1002, %v1014
        %s1023 = scalar_lea.vmem %s3, 16
        %v1024 = vld [vmem:[%s1023] sm:$0xff]
        %v1025 = vld [vmem:[%s1023 + $0x8] sm:$0xff]
        %v1027 = vsel %vm455, %v1024, 0
        %v1030 = vsel %vm455, %v1025, 0
        %v1033 = vsel %vm459, %v1015, 0
        %1035 = vmatprep.subr.mxu0 0.0
        %1036 = vmatpush1.msra.mxu0 %v1033
        %1037 = vmatprep.subr.mxu0 0.0
        %1038 = vmatpush1.msra.mxu0 0.0
        %1039 = vmatprep.subr.mxu0 0.0
        %1040 = vmatpush1.msra.mxu0 0.0
        %1041 = vmatprep.subr.mxu0 0.0
        %1042 = vmatpush1.msra.mxu0 0.0
        %1043 = vmatprep.subr.mxu0 0.0
        %1044 = vmatpush1.msra.mxu0 0.0
        %1045 = vmatprep.subr.mxu0 0.0
        %1046 = vmatpush1.msra.mxu0 0.0
        %1047 = vmatprep.subr.mxu0 0.0
        %1048 = vmatpush1.msra.mxu0 0.0
        %1049 = vmatprep.subr.mxu0 0.0
        %1050 = vmatpush1.msra.mxu0 0.0
        %1051 = vmatprep.subr.mxu0 0.0
        %1052 = vmatpush1.msra.mxu0 0.0
        %1053 = vmatprep.subr.mxu0 0.0
        %1054 = vmatpush1.msra.mxu0 0.0
        %1055 = vmatprep.subr.mxu0 0.0
        %1056 = vmatpush1.msra.mxu0 0.0
        %1057 = vmatprep.subr.mxu0 0.0
        %1058 = vmatpush1.msra.mxu0 0.0
        %1059 = vmatprep.subr.mxu0 0.0
        %1060 = vmatpush1.msra.mxu0 0.0
        %1061 = vmatprep.subr.mxu0 0.0
        %1062 = vmatpush1.msra.mxu0 0.0
        %1063 = vmatprep.subr.mxu0 0.0
        %1064 = vmatpush1.msra.mxu0 0.0
        %1065 = vmatprep.subr.mxu0 0.0
        %1066 = vmatpush1.msra.mxu0 0.0
        %1067 = vmatprep.subr.mxu0 0.0
        %1068 = vmatpush1.msra.mxu0 0.0
        %1069 = vmatprep.subr.mxu0 0.0
        %1070 = vmatpush1.msra.mxu0 0.0
        %1071 = vmatprep.subr.mxu0 0.0
        %1072 = vmatpush1.msra.mxu0 0.0
        %1073 = vmatprep.subr.mxu0 0.0
        %1074 = vmatpush1.msra.mxu0 0.0
        %1075 = vmatprep.subr.mxu0 0.0
        %1076 = vmatpush1.msra.mxu0 0.0
        %1077 = vmatprep.subr.mxu0 0.0
        %1078 = vmatpush1.msra.mxu0 0.0
        %1079 = vmatprep.subr.mxu0 0.0
        %1080 = vmatpush1.msra.mxu0 0.0
        %1081 = vmatprep.subr.mxu0 0.0
        %1082 = vmatpush1.msra.mxu0 0.0
        %1083 = vmatprep.subr.mxu0 0.0
        %1084 = vmatpush1.msra.mxu0 0.0
        %1085 = vmatprep.subr.mxu0 0.0
        %1086 = vmatpush1.msra.mxu0 0.0
        %1087 = vmatprep.subr.mxu0 0.0
        %1088 = vmatpush1.msra.mxu0 0.0
        %1089 = vmatprep.subr.mxu0 0.0
        %1090 = vmatpush1.msra.mxu0 0.0
        %1091 = vmatprep.subr.mxu0 0.0
        %1092 = vmatpush1.msra.mxu0 0.0
        %1093 = vmatprep.subr.mxu0 0.0
        %1094 = vmatpush1.msra.mxu0 0.0
        %1095 = vmatprep.subr.mxu0 0.0
        %1096 = vmatpush1.msra.mxu0 0.0
        %1097 = vmatprep.subr.mxu0 0.0
        %1098 = vmatpush1.msra.mxu0 0.0
        %1099 = vmatprep.mubr.f32.mxu0 0.0
        %1100 = vmatmul.mubr.f32.gmra.mrb[0].mxu0 %v1027
        %v1101 = vpop.f32.mrb[0].mxu0
        %v1102 = vadd.f32 0.0, %v1101
        %v1103 = vpop.f32.mrb[0].mxu0
        %1104 = vmatprep.mubr.f32.mxu0 0.0
        %1105 = vmatmul.mubr.f32.gmra.mrb[0].mxu0 %v1030
        %v1106 = vpop.f32.mrb[0].mxu0
        %v1107 = vadd.f32 0.0, %v1106
        %v1108 = vpop.f32.mrb[0].mxu0
        %1109 = vdwg.mxu0
        %v1111 = vsel %vm459, %v1016, 0
        %1113 = vmatprep.subr.mxu0 0.0
        %1114 = vmatpush1.msra.mxu0 %v1111
        %1115 = vmatprep.subr.mxu0 0.0
        %1116 = vmatpush1.msra.mxu0 0.0
        %1117 = vmatprep.subr.mxu0 0.0
        %1118 = vmatpush1.msra.mxu0 0.0
        %1119 = vmatprep.subr.mxu0 0.0
        %1120 = vmatpush1.msra.mxu0 0.0
        %1121 = vmatprep.subr.mxu0 0.0
        %1122 = vmatpush1.msra.mxu0 0.0
        %1123 = vmatprep.subr.mxu0 0.0
        %1124 = vmatpush1.msra.mxu0 0.0
        %1125 = vmatprep.subr.mxu0 0.0
        %1126 = vmatpush1.msra.mxu0 0.0
        %1127 = vmatprep.subr.mxu0 0.0
        %1128 = vmatpush1.msra.mxu0 0.0
        %1129 = vmatprep.subr.mxu0 0.0
        %1130 = vmatpush1.msra.mxu0 0.0
        %1131 = vmatprep.subr.mxu0 0.0
        %1132 = vmatpush1.msra.mxu0 0.0
        %1133 = vmatprep.subr.mxu0 0.0
        %1134 = vmatpush1.msra.mxu0 0.0
        %1135 = vmatprep.subr.mxu0 0.0
        %1136 = vmatpush1.msra.mxu0 0.0
        %1137 = vmatprep.subr.mxu0 0.0
        %1138 = vmatpush1.msra.mxu0 0.0
        %1139 = vmatprep.subr.mxu0 0.0
        %1140 = vmatpush1.msra.mxu0 0.0
        %1141 = vmatprep.subr.mxu0 0.0
        %1142 = vmatpush1.msra.mxu0 0.0
        %1143 = vmatprep.subr.mxu0 0.0
        %1144 = vmatpush1.msra.mxu0 0.0
        %1145 = vmatprep.subr.mxu0 0.0
        %1146 = vmatpush1.msra.mxu0 0.0
        %1147 = vmatprep.subr.mxu0 0.0
        %1148 = vmatpush1.msra.mxu0 0.0
        %1149 = vmatprep.subr.mxu0 0.0
        %1150 = vmatpush1.msra.mxu0 0.0
        %1151 = vmatprep.subr.mxu0 0.0
        %1152 = vmatpush1.msra.mxu0 0.0
        %1153 = vmatprep.subr.mxu0 0.0
        %1154 = vmatpush1.msra.mxu0 0.0
        %1155 = vmatprep.subr.mxu0 0.0
        %1156 = vmatpush1.msra.mxu0 0.0
        %1157 = vmatprep.subr.mxu0 0.0
        %1158 = vmatpush1.msra.mxu0 0.0
        %1159 = vmatprep.subr.mxu0 0.0
        %1160 = vmatpush1.msra.mxu0 0.0
        %1161 = vmatprep.subr.mxu0 0.0
        %1162 = vmatpush1.msra.mxu0 0.0
        %1163 = vmatprep.subr.mxu0 0.0
        %1164 = vmatpush1.msra.mxu0 0.0
        %1165 = vmatprep.subr.mxu0 0.0
        %1166 = vmatpush1.msra.mxu0 0.0
        %1167 = vmatprep.subr.mxu0 0.0
        %1168 = vmatpush1.msra.mxu0 0.0
        %1169 = vmatprep.subr.mxu0 0.0
        %1170 = vmatpush1.msra.mxu0 0.0
        %1171 = vmatprep.subr.mxu0 0.0
        %1172 = vmatpush1.msra.mxu0 0.0
        %1173 = vmatprep.subr.mxu0 0.0
        %1174 = vmatpush1.msra.mxu0 0.0
        %1175 = vmatprep.subr.mxu0 0.0
        %1176 = vmatpush1.msra.mxu0 0.0
        %1177 = vmatprep.mubr.f32.mxu0 0.0
        %1178 = vmatmul.mubr.f32.gmra.mrb[0].mxu0 %v1027
        %v1179 = vpop.f32.mrb[0].mxu0
        %v1180 = vadd.f32 0.0, %v1179
        %v1181 = vpop.f32.mrb[0].mxu0
        %1182 = vmatprep.mubr.f32.mxu0 0.0
        %1183 = vmatmul.mubr.f32.gmra.mrb[0].mxu0 %v1030
        %v1184 = vpop.f32.mrb[0].mxu0
        %v1185 = vadd.f32 0.0, %v1184
        %v1186 = vpop.f32.mrb[0].mxu0
        %1187 = vdwg.mxu0
        %v1189 = vsel %vm459, %v1017, 0
        %1191 = vmatprep.subr.mxu0 0.0
        %1192 = vmatpush1.msra.mxu0 %v1189
        %1193 = vmatprep.subr.mxu0 0.0
        %1194 = vmatpush1.msra.mxu0 0.0
        %1195 = vmatprep.subr.mxu0 0.0
        %1196 = vmatpush1.msra.mxu0 0.0
        %1197 = vmatprep.subr.mxu0 0.0
        %1198 = vmatpush1.msra.mxu0 0.0
        %1199 = vmatprep.subr.mxu0 0.0
        %1200 = vmatpush1.msra.mxu0 0.0
        %1201 = vmatprep.subr.mxu0 0.0
        %1202 = vmatpush1.msra.mxu0 0.0
        %1203 = vmatprep.subr.mxu0 0.0
        %1204 = vmatpush1.msra.mxu0 0.0
        %1205 = vmatprep.subr.mxu0 0.0
        %1206 = vmatpush1.msra.mxu0 0.0
        %1207 = vmatprep.subr.mxu0 0.0
        %1208 = vmatpush1.msra.mxu0 0.0
        %1209 = vmatprep.subr.mxu0 0.0
        %1210 = vmatpush1.msra.mxu0 0.0
        %1211 = vmatprep.subr.mxu0 0.0
        %1212 = vmatpush1.msra.mxu0 0.0
        %1213 = vmatprep.subr.mxu0 0.0
        %1214 = vmatpush1.msra.mxu0 0.0
        %1215 = vmatprep.subr.mxu0 0.0
        %1216 = vmatpush1.msra.mxu0 0.0
        %1217 = vmatprep.subr.mxu0 0.0
        %1218 = vmatpush1.msra.mxu0 0.0
        %1219 = vmatprep.subr.mxu0 0.0
        %1220 = vmatpush1.msra.mxu0 0.0
        %1221 = vmatprep.subr.mxu0 0.0
        %1222 = vmatpush1.msra.mxu0 0.0
        %1223 = vmatprep.subr.mxu0 0.0
        %1224 = vmatpush1.msra.mxu0 0.0
        %1225 = vmatprep.subr.mxu0 0.0
        %1226 = vmatpush1.msra.mxu0 0.0
        %1227 = vmatprep.subr.mxu0 0.0
        %1228 = vmatpush1.msra.mxu0 0.0
        %1229 = vmatprep.subr.mxu0 0.0
        %1230 = vmatpush1.msra.mxu0 0.0
        %1231 = vmatprep.subr.mxu0 0.0
        %1232 = vmatpush1.msra.mxu0 0.0
        %1233 = vmatprep.subr.mxu0 0.0
        %1234 = vmatpush1.msra.mxu0 0.0
        %1235 = vmatprep.subr.mxu0 0.0
        %1236 = vmatpush1.msra.mxu0 0.0
        %1237 = vmatprep.subr.mxu0 0.0
        %1238 = vmatpush1.msra.mxu0 0.0
        %1239 = vmatprep.subr.mxu0 0.0
        %1240 = vmatpush1.msra.mxu0 0.0
        %1241 = vmatprep.subr.mxu0 0.0
        %1242 = vmatpush1.msra.mxu0 0.0
        %1243 = vmatprep.subr.mxu0 0.0
        %1244 = vmatpush1.msra.mxu0 0.0
        %1245 = vmatprep.subr.mxu0 0.0
        %1246 = vmatpush1.msra.mxu0 0.0
        %1247 = vmatprep.subr.mxu0 0.0
        %1248 = vmatpush1.msra.mxu0 0.0
        %1249 = vmatprep.subr.mxu0 0.0
        %1250 = vmatpush1.msra.mxu0 0.0
        %1251 = vmatprep.subr.mxu0 0.0
        %1252 = vmatpush1.msra.mxu0 0.0
        %1253 = vmatprep.subr.mxu0 0.0
        %1254 = vmatpush1.msra.mxu0 0.0
        %1255 = vmatprep.mubr.f32.mxu0 0.0
        %1256 = vmatmul.mubr.f32.gmra.mrb[0].mxu0 %v1027
        %v1257 = vpop.f32.mrb[0].mxu0
        %v1258 = vadd.f32 0.0, %v1257
        %v1259 = vpop.f32.mrb[0].mxu0
        %1260 = vmatprep.mubr.f32.mxu0 0.0
        %1261 = vmatmul.mubr.f32.gmra.mrb[0].mxu0 %v1030
        %v1262 = vpop.f32.mrb[0].mxu0
        %v1263 = vadd.f32 0.0, %v1262
        %v1264 = vpop.f32.mrb[0].mxu0
        %1265 = vdwg.mxu0
        %v1267 = vsel %vm459, %v1018, 0
        %1269 = vmatprep.subr.mxu0 0.0
        %1270 = vmatpush1.msra.mxu0 %v1267
        %1271 = vmatprep.subr.mxu0 0.0
        %1272 = vmatpush1.msra.mxu0 0.0
        %1273 = vmatprep.subr.mxu0 0.0
        %1274 = vmatpush1.msra.mxu0 0.0
        %1275 = vmatprep.subr.mxu0 0.0
        %1276 = vmatpush1.msra.mxu0 0.0
        %1277 = vmatprep.subr.mxu0 0.0
        %1278 = vmatpush1.msra.mxu0 0.0
        %1279 = vmatprep.subr.mxu0 0.0
        %1280 = vmatpush1.msra.mxu0 0.0
        %1281 = vmatprep.subr.mxu0 0.0
        %1282 = vmatpush1.msra.mxu0 0.0
        %1283 = vmatprep.subr.mxu0 0.0
        %1284 = vmatpush1.msra.mxu0 0.0
        %1285 = vmatprep.subr.mxu0 0.0
        %1286 = vmatpush1.msra.mxu0 0.0
        %1287 = vmatprep.subr.mxu0 0.0
        %1288 = vmatpush1.msra.mxu0 0.0
        %1289 = vmatprep.subr.mxu0 0.0
        %1290 = vmatpush1.msra.mxu0 0.0
        %1291 = vmatprep.subr.mxu0 0.0
        %1292 = vmatpush1.msra.mxu0 0.0
        %1293 = vmatprep.subr.mxu0 0.0
        %1294 = vmatpush1.msra.mxu0 0.0
        %1295 = vmatprep.subr.mxu0 0.0
        %1296 = vmatpush1.msra.mxu0 0.0
        %1297 = vmatprep.subr.mxu0 0.0
        %1298 = vmatpush1.msra.mxu0 0.0
        %1299 = vmatprep.subr.mxu0 0.0
        %1300 = vmatpush1.msra.mxu0 0.0
        %1301 = vmatprep.subr.mxu0 0.0
        %1302 = vmatpush1.msra.mxu0 0.0
        %1303 = vmatprep.subr.mxu0 0.0
        %1304 = vmatpush1.msra.mxu0 0.0
        %1305 = vmatprep.subr.mxu0 0.0
        %1306 = vmatpush1.msra.mxu0 0.0
        %1307 = vmatprep.subr.mxu0 0.0
        %1308 = vmatpush1.msra.mxu0 0.0
        %1309 = vmatprep.subr.mxu0 0.0
        %1310 = vmatpush1.msra.mxu0 0.0
        %1311 = vmatprep.subr.mxu0 0.0
        %1312 = vmatpush1.msra.mxu0 0.0
        %1313 = vmatprep.subr.mxu0 0.0
        %1314 = vmatpush1.msra.mxu0 0.0
        %1315 = vmatprep.subr.mxu0 0.0
        %1316 = vmatpush1.msra.mxu0 0.0
        %1317 = vmatprep.subr.mxu0 0.0
        %1318 = vmatpush1.msra.mxu0 0.0
        %1319 = vmatprep.subr.mxu0 0.0
        %1320 = vmatpush1.msra.mxu0 0.0
        %1321 = vmatprep.subr.mxu0 0.0
        %1322 = vmatpush1.msra.mxu0 0.0
        %1323 = vmatprep.subr.mxu0 0.0
        %1324 = vmatpush1.msra.mxu0 0.0
        %1325 = vmatprep.subr.mxu0 0.0
        %1326 = vmatpush1.msra.mxu0 0.0
        %1327 = vmatprep.subr.mxu0 0.0
        %1328 = vmatpush1.msra.mxu0 0.0
        %1329 = vmatprep.subr.mxu0 0.0
        %1330 = vmatpush1.msra.mxu0 0.0
        %1331 = vmatprep.subr.mxu0 0.0
        %1332 = vmatpush1.msra.mxu0 0.0
        %1333 = vmatprep.mubr.f32.mxu0 0.0
        %1334 = vmatmul.mubr.f32.gmra.mrb[0].mxu0 %v1027
        %v1335 = vpop.f32.mrb[0].mxu0
        %v1336 = vadd.f32 0.0, %v1335
        %v1337 = vpop.f32.mrb[0].mxu0
        %1338 = vmatprep.mubr.f32.mxu0 0.0
        %1339 = vmatmul.mubr.f32.gmra.mrb[0].mxu0 %v1030
        %v1340 = vpop.f32.mrb[0].mxu0
        %v1341 = vadd.f32 0.0, %v1340
        %v1342 = vpop.f32.mrb[0].mxu0
        %1343 = vdwg.mxu0
        %v1345 = vsel %vm459, %v1019, 0
        %1347 = vmatprep.subr.mxu0 0.0
        %1348 = vmatpush1.msra.mxu0 %v1345
        %1349 = vmatprep.subr.mxu0 0.0
        %1350 = vmatpush1.msra.mxu0 0.0
        %1351 = vmatprep.subr.mxu0 0.0
        %1352 = vmatpush1.msra.mxu0 0.0
        %1353 = vmatprep.subr.mxu0 0.0
        %1354 = vmatpush1.msra.mxu0 0.0
        %1355 = vmatprep.subr.mxu0 0.0
        %1356 = vmatpush1.msra.mxu0 0.0
        %1357 = vmatprep.subr.mxu0 0.0
        %1358 = vmatpush1.msra.mxu0 0.0
        %1359 = vmatprep.subr.mxu0 0.0
        %1360 = vmatpush1.msra.mxu0 0.0
        %1361 = vmatprep.subr.mxu0 0.0
        %1362 = vmatpush1.msra.mxu0 0.0
        %1363 = vmatprep.subr.mxu0 0.0
        %1364 = vmatpush1.msra.mxu0 0.0
        %1365 = vmatprep.subr.mxu0 0.0
        %1366 = vmatpush1.msra.mxu0 0.0
        %1367 = vmatprep.subr.mxu0 0.0
        %1368 = vmatpush1.msra.mxu0 0.0
        %1369 = vmatprep.subr.mxu0 0.0
        %1370 = vmatpush1.msra.mxu0 0.0
        %1371 = vmatprep.subr.mxu0 0.0
        %1372 = vmatpush1.msra.mxu0 0.0
        %1373 = vmatprep.subr.mxu0 0.0
        %1374 = vmatpush1.msra.mxu0 0.0
        %1375 = vmatprep.subr.mxu0 0.0
        %1376 = vmatpush1.msra.mxu0 0.0
        %1377 = vmatprep.subr.mxu0 0.0
        %1378 = vmatpush1.msra.mxu0 0.0
        %1379 = vmatprep.subr.mxu0 0.0
        %1380 = vmatpush1.msra.mxu0 0.0
        %1381 = vmatprep.subr.mxu0 0.0
        %1382 = vmatpush1.msra.mxu0 0.0
        %1383 = vmatprep.subr.mxu0 0.0
        %1384 = vmatpush1.msra.mxu0 0.0
        %1385 = vmatprep.subr.mxu0 0.0
        %1386 = vmatpush1.msra.mxu0 0.0
        %1387 = vmatprep.subr.mxu0 0.0
        %1388 = vmatpush1.msra.mxu0 0.0
        %1389 = vmatprep.subr.mxu0 0.0
        %1390 = vmatpush1.msra.mxu0 0.0
        %1391 = vmatprep.subr.mxu0 0.0
        %1392 = vmatpush1.msra.mxu0 0.0
        %1393 = vmatprep.subr.mxu0 0.0
        %1394 = vmatpush1.msra.mxu0 0.0
        %1395 = vmatprep.subr.mxu0 0.0
        %1396 = vmatpush1.msra.mxu0 0.0
        %1397 = vmatprep.subr.mxu0 0.0
        %1398 = vmatpush1.msra.mxu0 0.0
        %1399 = vmatprep.subr.mxu0 0.0
        %1400 = vmatpush1.msra.mxu0 0.0
        %1401 = vmatprep.subr.mxu0 0.0
        %1402 = vmatpush1.msra.mxu0 0.0
        %1403 = vmatprep.subr.mxu0 0.0
        %1404 = vmatpush1.msra.mxu0 0.0
        %1405 = vmatprep.subr.mxu0 0.0
        %1406 = vmatpush1.msra.mxu0 0.0
        %1407 = vmatprep.subr.mxu0 0.0
        %1408 = vmatpush1.msra.mxu0 0.0
        %1409 = vmatprep.subr.mxu0 0.0
        %1410 = vmatpush1.msra.mxu0 0.0
        %1411 = vmatprep.mubr.f32.mxu0 0.0
        %1412 = vmatmul.mubr.f32.gmra.mrb[0].mxu0 %v1027
        %v1413 = vpop.f32.mrb[0].mxu0
        %v1414 = vadd.f32 0.0, %v1413
        %v1415 = vpop.f32.mrb[0].mxu0
        %1416 = vmatprep.mubr.f32.mxu0 0.0
        %1417 = vmatmul.mubr.f32.gmra.mrb[0].mxu0 %v1030
        %v1418 = vpop.f32.mrb[0].mxu0
        %v1419 = vadd.f32 0.0, %v1418
        %v1420 = vpop.f32.mrb[0].mxu0
        %1421 = vdwg.mxu0
        %v1423 = vsel %vm459, %v1020, 0
        %1425 = vmatprep.subr.mxu0 0.0
        %1426 = vmatpush1.msra.mxu0 %v1423
        %1427 = vmatprep.subr.mxu0 0.0
        %1428 = vmatpush1.msra.mxu0 0.0
        %1429 = vmatprep.subr.mxu0 0.0
        %1430 = vmatpush1.msra.mxu0 0.0
        %1431 = vmatprep.subr.mxu0 0.0
        %1432 = vmatpush1.msra.mxu0 0.0
        %1433 = vmatprep.subr.mxu0 0.0
        %1434 = vmatpush1.msra.mxu0 0.0
        %1435 = vmatprep.subr.mxu0 0.0
        %1436 = vmatpush1.msra.mxu0 0.0
        %1437 = vmatprep.subr.mxu0 0.0
        %1438 = vmatpush1.msra.mxu0 0.0
        %1439 = vmatprep.subr.mxu0 0.0
        %1440 = vmatpush1.msra.mxu0 0.0
        %1441 = vmatprep.subr.mxu0 0.0
        %1442 = vmatpush1.msra.mxu0 0.0
        %1443 = vmatprep.subr.mxu0 0.0
        %1444 = vmatpush1.msra.mxu0 0.0
        %1445 = vmatprep.subr.mxu0 0.0
        %1446 = vmatpush1.msra.mxu0 0.0
        %1447 = vmatprep.subr.mxu0 0.0
        %1448 = vmatpush1.msra.mxu0 0.0
        %1449 = vmatprep.subr.mxu0 0.0
        %1450 = vmatpush1.msra.mxu0 0.0
        %1451 = vmatprep.subr.mxu0 0.0
        %1452 = vmatpush1.msra.mxu0 0.0
        %1453 = vmatprep.subr.mxu0 0.0
        %1454 = vmatpush1.msra.mxu0 0.0
        %1455 = vmatprep.subr.mxu0 0.0
        %1456 = vmatpush1.msra.mxu0 0.0
        %1457 = vmatprep.subr.mxu0 0.0
        %1458 = vmatpush1.msra.mxu0 0.0
        %1459 = vmatprep.subr.mxu0 0.0
        %1460 = vmatpush1.msra.mxu0 0.0
        %1461 = vmatprep.subr.mxu0 0.0
        %1462 = vmatpush1.msra.mxu0 0.0
        %1463 = vmatprep.subr.mxu0 0.0
        %1464 = vmatpush1.msra.mxu0 0.0
        %1465 = vmatprep.subr.mxu0 0.0
        %1466 = vmatpush1.msra.mxu0 0.0
        %1467 = vmatprep.subr.mxu0 0.0
        %1468 = vmatpush1.msra.mxu0 0.0
        %1469 = vmatprep.subr.mxu0 0.0
        %1470 = vmatpush1.msra.mxu0 0.0
        %1471 = vmatprep.subr.mxu0 0.0
        %1472 = vmatpush1.msra.mxu0 0.0
        %1473 = vmatprep.subr.mxu0 0.0
        %1474 = vmatpush1.msra.mxu0 0.0
        %1475 = vmatprep.subr.mxu0 0.0
        %1476 = vmatpush1.msra.mxu0 0.0
        %1477 = vmatprep.subr.mxu0 0.0
        %1478 = vmatpush1.msra.mxu0 0.0
        %1479 = vmatprep.subr.mxu0 0.0
        %1480 = vmatpush1.msra.mxu0 0.0
        %1481 = vmatprep.subr.mxu0 0.0
        %1482 = vmatpush1.msra.mxu0 0.0
        %1483 = vmatprep.subr.mxu0 0.0
        %1484 = vmatpush1.msra.mxu0 0.0
        %1485 = vmatprep.subr.mxu0 0.0
        %1486 = vmatpush1.msra.mxu0 0.0
        %1487 = vmatprep.subr.mxu0 0.0
        %1488 = vmatpush1.msra.mxu0 0.0
        %1489 = vmatprep.mubr.f32.mxu0 0.0
        %1490 = vmatmul.mubr.f32.gmra.mrb[0].mxu0 %v1027
        %v1491 = vpop.f32.mrb[0].mxu0
        %v1492 = vadd.f32 0.0, %v1491
        %v1493 = vpop.f32.mrb[0].mxu0
        %1494 = vmatprep.mubr.f32.mxu0 0.0
        %1495 = vmatmul.mubr.f32.gmra.mrb[0].mxu0 %v1030
        %v1496 = vpop.f32.mrb[0].mxu0
        %v1497 = vadd.f32 0.0, %v1496
        %v1498 = vpop.f32.mrb[0].mxu0
        %1499 = vdwg.mxu0
        %v1501 = vsel %vm459, %v1021, 0
        %1503 = vmatprep.subr.mxu0 0.0
        %1504 = vmatpush1.msra.mxu0 %v1501
        %1505 = vmatprep.subr.mxu0 0.0
        %1506 = vmatpush1.msra.mxu0 0.0
        %1507 = vmatprep.subr.mxu0 0.0
        %1508 = vmatpush1.msra.mxu0 0.0
        %1509 = vmatprep.subr.mxu0 0.0
        %1510 = vmatpush1.msra.mxu0 0.0
        %1511 = vmatprep.subr.mxu0 0.0
        %1512 = vmatpush1.msra.mxu0 0.0
        %1513 = vmatprep.subr.mxu0 0.0
        %1514 = vmatpush1.msra.mxu0 0.0
        %1515 = vmatprep.subr.mxu0 0.0
        %1516 = vmatpush1.msra.mxu0 0.0
        %1517 = vmatprep.subr.mxu0 0.0
        %1518 = vmatpush1.msra.mxu0 0.0
        %1519 = vmatprep.subr.mxu0 0.0
        %1520 = vmatpush1.msra.mxu0 0.0
        %1521 = vmatprep.subr.mxu0 0.0
        %1522 = vmatpush1.msra.mxu0 0.0
        %1523 = vmatprep.subr.mxu0 0.0
        %1524 = vmatpush1.msra.mxu0 0.0
        %1525 = vmatprep.subr.mxu0 0.0
        %1526 = vmatpush1.msra.mxu0 0.0
        %1527 = vmatprep.subr.mxu0 0.0
        %1528 = vmatpush1.msra.mxu0 0.0
        %1529 = vmatprep.subr.mxu0 0.0
        %1530 = vmatpush1.msra.mxu0 0.0
        %1531 = vmatprep.subr.mxu0 0.0
        %1532 = vmatpush1.msra.mxu0 0.0
        %1533 = vmatprep.subr.mxu0 0.0
        %1534 = vmatpush1.msra.mxu0 0.0
        %1535 = vmatprep.subr.mxu0 0.0
        %1536 = vmatpush1.msra.mxu0 0.0
        %1537 = vmatprep.subr.mxu0 0.0
        %1538 = vmatpush1.msra.mxu0 0.0
        %1539 = vmatprep.subr.mxu0 0.0
        %1540 = vmatpush1.msra.mxu0 0.0
        %1541 = vmatprep.subr.mxu0 0.0
        %1542 = vmatpush1.msra.mxu0 0.0
        %1543 = vmatprep.subr.mxu0 0.0
        %1544 = vmatpush1.msra.mxu0 0.0
        %1545 = vmatprep.subr.mxu0 0.0
        %1546 = vmatpush1.msra.mxu0 0.0
        %1547 = vmatprep.subr.mxu0 0.0
        %1548 = vmatpush1.msra.mxu0 0.0
        %1549 = vmatprep.subr.mxu0 0.0
        %1550 = vmatpush1.msra.mxu0 0.0
        %1551 = vmatprep.subr.mxu0 0.0
        %1552 = vmatpush1.msra.mxu0 0.0
        %1553 = vmatprep.subr.mxu0 0.0
        %1554 = vmatpush1.msra.mxu0 0.0
        %1555 = vmatprep.subr.mxu0 0.0
        %1556 = vmatpush1.msra.mxu0 0.0
        %1557 = vmatprep.subr.mxu0 0.0
        %1558 = vmatpush1.msra.mxu0 0.0
        %1559 = vmatprep.subr.mxu0 0.0
        %1560 = vmatpush1.msra.mxu0 0.0
        %1561 = vmatprep.subr.mxu0 0.0
        %1562 = vmatpush1.msra.mxu0 0.0
        %1563 = vmatprep.subr.mxu0 0.0
        %1564 = vmatpush1.msra.mxu0 0.0
        %1565 = vmatprep.subr.mxu0 0.0
        %1566 = vmatpush1.msra.mxu0 0.0
        %1567 = vmatprep.mubr.f32.mxu0 0.0
        %1568 = vmatmul.mubr.f32.gmra.mrb[0].mxu0 %v1027
        %v1569 = vpop.f32.mrb[0].mxu0
        %v1570 = vadd.f32 0.0, %v1569
        %v1571 = vpop.f32.mrb[0].mxu0
        %1572 = vmatprep.mubr.f32.mxu0 0.0
        %1573 = vmatmul.mubr.f32.gmra.mrb[0].mxu0 %v1030
        %v1574 = vpop.f32.mrb[0].mxu0
        %v1575 = vadd.f32 0.0, %v1574
        %v1576 = vpop.f32.mrb[0].mxu0
        %1577 = vdwg.mxu0
        %v1579 = vsel %vm459, %v1022, 0
        %1581 = vmatprep.subr.mxu0 0.0
        %1582 = vmatpush1.msra.mxu0 %v1579
        %1583 = vmatprep.subr.mxu0 0.0
        %1584 = vmatpush1.msra.mxu0 0.0
        %1585 = vmatprep.subr.mxu0 0.0
        %1586 = vmatpush1.msra.mxu0 0.0
        %1587 = vmatprep.subr.mxu0 0.0
        %1588 = vmatpush1.msra.mxu0 0.0
        %1589 = vmatprep.subr.mxu0 0.0
        %1590 = vmatpush1.msra.mxu0 0.0
        %1591 = vmatprep.subr.mxu0 0.0
        %1592 = vmatpush1.msra.mxu0 0.0
        %1593 = vmatprep.subr.mxu0 0.0
        %1594 = vmatpush1.msra.mxu0 0.0
        %1595 = vmatprep.subr.mxu0 0.0
        %1596 = vmatpush1.msra.mxu0 0.0
        %1597 = vmatprep.subr.mxu0 0.0
        %1598 = vmatpush1.msra.mxu0 0.0
        %1599 = vmatprep.subr.mxu0 0.0
        %1600 = vmatpush1.msra.mxu0 0.0
        %1601 = vmatprep.subr.mxu0 0.0
        %1602 = vmatpush1.msra.mxu0 0.0
        %1603 = vmatprep.subr.mxu0 0.0
        %1604 = vmatpush1.msra.mxu0 0.0
        %1605 = vmatprep.subr.mxu0 0.0
        %1606 = vmatpush1.msra.mxu0 0.0
        %1607 = vmatprep.subr.mxu0 0.0
        %1608 = vmatpush1.msra.mxu0 0.0
        %1609 = vmatprep.subr.mxu0 0.0
        %1610 = vmatpush1.msra.mxu0 0.0
        %1611 = vmatprep.subr.mxu0 0.0
        %1612 = vmatpush1.msra.mxu0 0.0
        %1613 = vmatprep.subr.mxu0 0.0
        %1614 = vmatpush1.msra.mxu0 0.0
        %1615 = vmatprep.subr.mxu0 0.0
        %1616 = vmatpush1.msra.mxu0 0.0
        %1617 = vmatprep.subr.mxu0 0.0
        %1618 = vmatpush1.msra.mxu0 0.0
        %1619 = vmatprep.subr.mxu0 0.0
        %1620 = vmatpush1.msra.mxu0 0.0
        %1621 = vmatprep.subr.mxu0 0.0
        %1622 = vmatpush1.msra.mxu0 0.0
        %1623 = vmatprep.subr.mxu0 0.0
        %1624 = vmatpush1.msra.mxu0 0.0
        %1625 = vmatprep.subr.mxu0 0.0
        %1626 = vmatpush1.msra.mxu0 0.0
        %1627 = vmatprep.subr.mxu0 0.0
        %1628 = vmatpush1.msra.mxu0 0.0
        %1629 = vmatprep.subr.mxu0 0.0
        %1630 = vmatpush1.msra.mxu0 0.0
        %1631 = vmatprep.subr.mxu0 0.0
        %1632 = vmatpush1.msra.mxu0 0.0
        %1633 = vmatprep.subr.mxu0 0.0
        %1634 = vmatpush1.msra.mxu0 0.0
        %1635 = vmatprep.subr.mxu0 0.0
        %1636 = vmatpush1.msra.mxu0 0.0
        %1637 = vmatprep.subr.mxu0 0.0
        %1638 = vmatpush1.msra.mxu0 0.0
        %1639 = vmatprep.subr.mxu0 0.0
        %1640 = vmatpush1.msra.mxu0 0.0
        %1641 = vmatprep.subr.mxu0 0.0
        %1642 = vmatpush1.msra.mxu0 0.0
        %1643 = vmatprep.subr.mxu0 0.0
        %1644 = vmatpush1.msra.mxu0 0.0
        %1645 = vmatprep.mubr.f32.mxu0 0.0
        %1646 = vmatmul.mubr.f32.gmra.mrb[0].mxu0 %v1027
        %v1647 = vpop.f32.mrb[0].mxu0
        %v1648 = vadd.f32 0.0, %v1647
        %v1649 = vpop.f32.mrb[0].mxu0
        %1650 = vmatprep.mubr.f32.mxu0 0.0
        %1651 = vmatmul.mubr.f32.gmra.mrb[0].mxu0 %v1030
        %v1652 = vpop.f32.mrb[0].mxu0
        %v1653 = vadd.f32 0.0, %v1652
        %v1654 = vpop.f32.mrb[0].mxu0
        %1655 = vdwg.mxu0
        %v1657 = vsel %vm455, %v969, 0
        %v1660 = vsel %vm455, %v970, 0
        %v1663 = vsel %vm459, %v961, 0
        %1665 = vmatprep.subr.mxu0 0.0
        %1666 = vmatpush1.msra.mxu0 %v1663
        %1667 = vmatprep.subr.mxu0 0.0
        %1668 = vmatpush1.msra.mxu0 0.0
        %1669 = vmatprep.subr.mxu0 0.0
        %1670 = vmatpush1.msra.mxu0 0.0
        %1671 = vmatprep.subr.mxu0 0.0
        %1672 = vmatpush1.msra.mxu0 0.0
        %1673 = vmatprep.subr.mxu0 0.0
        %1674 = vmatpush1.msra.mxu0 0.0
        %1675 = vmatprep.subr.mxu0 0.0
        %1676 = vmatpush1.msra.mxu0 0.0
        %1677 = vmatprep.subr.mxu0 0.0
        %1678 = vmatpush1.msra.mxu0 0.0
        %1679 = vmatprep.subr.mxu0 0.0
        %1680 = vmatpush1.msra.mxu0 0.0
        %1681 = vmatprep.subr.mxu0 0.0
        %1682 = vmatpush1.msra.mxu0 0.0
        %1683 = vmatprep.subr.mxu0 0.0
        %1684 = vmatpush1.msra.mxu0 0.0
        %1685 = vmatprep.subr.mxu0 0.0
        %1686 = vmatpush1.msra.mxu0 0.0
        %1687 = vmatprep.subr.mxu0 0.0
        %1688 = vmatpush1.msra.mxu0 0.0
        %1689 = vmatprep.subr.mxu0 0.0
        %1690 = vmatpush1.msra.mxu0 0.0
        %1691 = vmatprep.subr.mxu0 0.0
        %1692 = vmatpush1.msra.mxu0 0.0
        %1693 = vmatprep.subr.mxu0 0.0
        %1694 = vmatpush1.msra.mxu0 0.0
        %1695 = vmatprep.subr.mxu0 0.0
        %1696 = vmatpush1.msra.mxu0 0.0
        %1697 = vmatprep.subr.mxu0 0.0
        %1698 = vmatpush1.msra.mxu0 0.0
        %1699 = vmatprep.subr.mxu0 0.0
        %1700 = vmatpush1.msra.mxu0 0.0
        %1701 = vmatprep.subr.mxu0 0.0
        %1702 = vmatpush1.msra.mxu0 0.0
        %1703 = vmatprep.subr.mxu0 0.0
        %1704 = vmatpush1.msra.mxu0 0.0
        %1705 = vmatprep.subr.mxu0 0.0
        %1706 = vmatpush1.msra.mxu0 0.0
        %1707 = vmatprep.subr.mxu0 0.0
        %1708 = vmatpush1.msra.mxu0 0.0
        %1709 = vmatprep.subr.mxu0 0.0
        %1710 = vmatpush1.msra.mxu0 0.0
        %1711 = vmatprep.subr.mxu0 0.0
        %1712 = vmatpush1.msra.mxu0 0.0
        %1713 = vmatprep.subr.mxu0 0.0
        %1714 = vmatpush1.msra.mxu0 0.0
        %1715 = vmatprep.subr.mxu0 0.0
        %1716 = vmatpush1.msra.mxu0 0.0
        %1717 = vmatprep.subr.mxu0 0.0
        %1718 = vmatpush1.msra.mxu0 0.0
        %1719 = vmatprep.subr.mxu0 0.0
        %1720 = vmatpush1.msra.mxu0 0.0
        %1721 = vmatprep.subr.mxu0 0.0
        %1722 = vmatpush1.msra.mxu0 0.0
        %1723 = vmatprep.subr.mxu0 0.0
        %1724 = vmatpush1.msra.mxu0 0.0
        %1725 = vmatprep.subr.mxu0 0.0
        %1726 = vmatpush1.msra.mxu0 0.0
        %1727 = vmatprep.subr.mxu0 0.0
        %1728 = vmatpush1.msra.mxu0 0.0
        %1729 = vmatprep.mubr.f32.mxu0 0.0
        %1730 = vmatmul.mubr.f32.gmra.mrb[0].mxu0 %v1657
        %v1731 = vpop.f32.mrb[0].mxu0
        %v1732 = vadd.f32 %v1102, %v1731
        %v1733 = vpop.f32.mrb[0].mxu0
        %1734 = vmatprep.mubr.f32.mxu0 0.0
        %1735 = vmatmul.mubr.f32.gmra.mrb[0].mxu0 %v1660
        %v1736 = vpop.f32.mrb[0].mxu0
        %v1737 = vadd.f32 %v1107, %v1736
        %v1738 = vpop.f32.mrb[0].mxu0
        %1739 = vdwg.mxu0
        %v1741 = vsel %vm459, %v962, 0
        %1743 = vmatprep.subr.mxu0 0.0
        %1744 = vmatpush1.msra.mxu0 %v1741
        %1745 = vmatprep.subr.mxu0 0.0
        %1746 = vmatpush1.msra.mxu0 0.0
        %1747 = vmatprep.subr.mxu0 0.0
        %1748 = vmatpush1.msra.mxu0 0.0
        %1749 = vmatprep.subr.mxu0 0.0
        %1750 = vmatpush1.msra.mxu0 0.0
        %1751 = vmatprep.subr.mxu0 0.0
        %1752 = vmatpush1.msra.mxu0 0.0
        %1753 = vmatprep.subr.mxu0 0.0
        %1754 = vmatpush1.msra.mxu0 0.0
        %1755 = vmatprep.subr.mxu0 0.0
        %1756 = vmatpush1.msra.mxu0 0.0
        %1757 = vmatprep.subr.mxu0 0.0
        %1758 = vmatpush1.msra.mxu0 0.0
        %1759 = vmatprep.subr.mxu0 0.0
        %1760 = vmatpush1.msra.mxu0 0.0
        %1761 = vmatprep.subr.mxu0 0.0
        %1762 = vmatpush1.msra.mxu0 0.0
        %1763 = vmatprep.subr.mxu0 0.0
        %1764 = vmatpush1.msra.mxu0 0.0
        %1765 = vmatprep.subr.mxu0 0.0
        %1766 = vmatpush1.msra.mxu0 0.0
        %1767 = vmatprep.subr.mxu0 0.0
        %1768 = vmatpush1.msra.mxu0 0.0
        %1769 = vmatprep.subr.mxu0 0.0
        %1770 = vmatpush1.msra.mxu0 0.0
        %1771 = vmatprep.subr.mxu0 0.0
        %1772 = vmatpush1.msra.mxu0 0.0
        %1773 = vmatprep.subr.mxu0 0.0
        %1774 = vmatpush1.msra.mxu0 0.0
        %1775 = vmatprep.subr.mxu0 0.0
        %1776 = vmatpush1.msra.mxu0 0.0
        %1777 = vmatprep.subr.mxu0 0.0
        %1778 = vmatpush1.msra.mxu0 0.0
        %1779 = vmatprep.subr.mxu0 0.0
        %1780 = vmatpush1.msra.mxu0 0.0
        %1781 = vmatprep.subr.mxu0 0.0
        %1782 = vmatpush1.msra.mxu0 0.0
        %1783 = vmatprep.subr.mxu0 0.0
        %1784 = vmatpush1.msra.mxu0 0.0
        %1785 = vmatprep.subr.mxu0 0.0
        %1786 = vmatpush1.msra.mxu0 0.0
        %1787 = vmatprep.subr.mxu0 0.0
        %1788 = vmatpush1.msra.mxu0 0.0
        %1789 = vmatprep.subr.mxu0 0.0
        %1790 = vmatpush1.msra.mxu0 0.0
        %1791 = vmatprep.subr.mxu0 0.0
        %1792 = vmatpush1.msra.mxu0 0.0
        %1793 = vmatprep.subr.mxu0 0.0
        %1794 = vmatpush1.msra.mxu0 0.0
        %1795 = vmatprep.subr.mxu0 0.0
        %1796 = vmatpush1.msra.mxu0 0.0
        %1797 = vmatprep.subr.mxu0 0.0
        %1798 = vmatpush1.msra.mxu0 0.0
        %1799 = vmatprep.subr.mxu0 0.0
        %1800 = vmatpush1.msra.mxu0 0.0
        %1801 = vmatprep.subr.mxu0 0.0
        %1802 = vmatpush1.msra.mxu0 0.0
        %1803 = vmatprep.subr.mxu0 0.0
        %1804 = vmatpush1.msra.mxu0 0.0
        %1805 = vmatprep.subr.mxu0 0.0
        %1806 = vmatpush1.msra.mxu0 0.0
        %1807 = vmatprep.mubr.f32.mxu0 0.0
        %1808 = vmatmul.mubr.f32.gmra.mrb[0].mxu0 %v1657
        %v1809 = vpop.f32.mrb[0].mxu0
        %v1810 = vadd.f32 %v1180, %v1809
        %v1811 = vpop.f32.mrb[0].mxu0
        %1812 = vmatprep.mubr.f32.mxu0 0.0
        %1813 = vmatmul.mubr.f32.gmra.mrb[0].mxu0 %v1660
        %v1814 = vpop.f32.mrb[0].mxu0
        %v1815 = vadd.f32 %v1185, %v1814
        %v1816 = vpop.f32.mrb[0].mxu0
        %1817 = vdwg.mxu0
        %v1819 = vsel %vm459, %v963, 0
        %1821 = vmatprep.subr.mxu0 0.0
        %1822 = vmatpush1.msra.mxu0 %v1819
        %1823 = vmatprep.subr.mxu0 0.0
        %1824 = vmatpush1.msra.mxu0 0.0
        %1825 = vmatprep.subr.mxu0 0.0
        %1826 = vmatpush1.msra.mxu0 0.0
        %1827 = vmatprep.subr.mxu0 0.0
        %1828 = vmatpush1.msra.mxu0 0.0
        %1829 = vmatprep.subr.mxu0 0.0
        %1830 = vmatpush1.msra.mxu0 0.0
        %1831 = vmatprep.subr.mxu0 0.0
        %1832 = vmatpush1.msra.mxu0 0.0
        %1833 = vmatprep.subr.mxu0 0.0
        %1834 = vmatpush1.msra.mxu0 0.0
        %1835 = vmatprep.subr.mxu0 0.0
        %1836 = vmatpush1.msra.mxu0 0.0
        %1837 = vmatprep.subr.mxu0 0.0
        %1838 = vmatpush1.msra.mxu0 0.0
        %1839 = vmatprep.subr.mxu0 0.0
        %1840 = vmatpush1.msra.mxu0 0.0
        %1841 = vmatprep.subr.mxu0 0.0
        %1842 = vmatpush1.msra.mxu0 0.0
        %1843 = vmatprep.subr.mxu0 0.0
        %1844 = vmatpush1.msra.mxu0 0.0
        %1845 = vmatprep.subr.mxu0 0.0
        %1846 = vmatpush1.msra.mxu0 0.0
        %1847 = vmatprep.subr.mxu0 0.0
        %1848 = vmatpush1.msra.mxu0 0.0
        %1849 = vmatprep.subr.mxu0 0.0
        %1850 = vmatpush1.msra.mxu0 0.0
        %1851 = vmatprep.subr.mxu0 0.0
        %1852 = vmatpush1.msra.mxu0 0.0
        %1853 = vmatprep.subr.mxu0 0.0
        %1854 = vmatpush1.msra.mxu0 0.0
        %1855 = vmatprep.subr.mxu0 0.0
        %1856 = vmatpush1.msra.mxu0 0.0
        %1857 = vmatprep.subr.mxu0 0.0
        %1858 = vmatpush1.msra.mxu0 0.0
        %1859 = vmatprep.subr.mxu0 0.0
        %1860 = vmatpush1.msra.mxu0 0.0
        %1861 = vmatprep.subr.mxu0 0.0
        %1862 = vmatpush1.msra.mxu0 0.0
        %1863 = vmatprep.subr.mxu0 0.0
        %1864 = vmatpush1.msra.mxu0 0.0
        %1865 = vmatprep.subr.mxu0 0.0
        %1866 = vmatpush1.msra.mxu0 0.0
        %1867 = vmatprep.subr.mxu0 0.0
        %1868 = vmatpush1.msra.mxu0 0.0
        %1869 = vmatprep.subr.mxu0 0.0
        %1870 = vmatpush1.msra.mxu0 0.0
        %1871 = vmatprep.subr.mxu0 0.0
        %1872 = vmatpush1.msra.mxu0 0.0
        %1873 = vmatprep.subr.mxu0 0.0
        %1874 = vmatpush1.msra.mxu0 0.0
        %1875 = vmatprep.subr.mxu0 0.0
        %1876 = vmatpush1.msra.mxu0 0.0
        %1877 = vmatprep.subr.mxu0 0.0
        %1878 = vmatpush1.msra.mxu0 0.0
        %1879 = vmatprep.subr.mxu0 0.0
        %1880 = vmatpush1.msra.mxu0 0.0
        %1881 = vmatprep.subr.mxu0 0.0
        %1882 = vmatpush1.msra.mxu0 0.0
        %1883 = vmatprep.subr.mxu0 0.0
        %1884 = vmatpush1.msra.mxu0 0.0
        %1885 = vmatprep.mubr.f32.mxu0 0.0
        %1886 = vmatmul.mubr.f32.gmra.mrb[0].mxu0 %v1657
        %v1887 = vpop.f32.mrb[0].mxu0
        %v1888 = vadd.f32 %v1258, %v1887
        %v1889 = vpop.f32.mrb[0].mxu0
        %1890 = vmatprep.mubr.f32.mxu0 0.0
        %1891 = vmatmul.mubr.f32.gmra.mrb[0].mxu0 %v1660
        %v1892 = vpop.f32.mrb[0].mxu0
        %v1893 = vadd.f32 %v1263, %v1892
        %v1894 = vpop.f32.mrb[0].mxu0
        %1895 = vdwg.mxu0
        %v1897 = vsel %vm459, %v964, 0
        %1899 = vmatprep.subr.mxu0 0.0
        %1900 = vmatpush1.msra.mxu0 %v1897
        %1901 = vmatprep.subr.mxu0 0.0
        %1902 = vmatpush1.msra.mxu0 0.0
        %1903 = vmatprep.subr.mxu0 0.0
        %1904 = vmatpush1.msra.mxu0 0.0
        %1905 = vmatprep.subr.mxu0 0.0
        %1906 = vmatpush1.msra.mxu0 0.0
        %1907 = vmatprep.subr.mxu0 0.0
        %1908 = vmatpush1.msra.mxu0 0.0
        %1909 = vmatprep.subr.mxu0 0.0
        %1910 = vmatpush1.msra.mxu0 0.0
        %1911 = vmatprep.subr.mxu0 0.0
        %1912 = vmatpush1.msra.mxu0 0.0
        %1913 = vmatprep.subr.mxu0 0.0
        %1914 = vmatpush1.msra.mxu0 0.0
        %1915 = vmatprep.subr.mxu0 0.0
        %1916 = vmatpush1.msra.mxu0 0.0
        %1917 = vmatprep.subr.mxu0 0.0
        %1918 = vmatpush1.msra.mxu0 0.0
        %1919 = vmatprep.subr.mxu0 0.0
        %1920 = vmatpush1.msra.mxu0 0.0
        %1921 = vmatprep.subr.mxu0 0.0
        %1922 = vmatpush1.msra.mxu0 0.0
        %1923 = vmatprep.subr.mxu0 0.0
        %1924 = vmatpush1.msra.mxu0 0.0
        %1925 = vmatprep.subr.mxu0 0.0
        %1926 = vmatpush1.msra.mxu0 0.0
        %1927 = vmatprep.subr.mxu0 0.0
        %1928 = vmatpush1.msra.mxu0 0.0
        %1929 = vmatprep.subr.mxu0 0.0
        %1930 = vmatpush1.msra.mxu0 0.0
        %1931 = vmatprep.subr.mxu0 0.0
        %1932 = vmatpush1.msra.mxu0 0.0
        %1933 = vmatprep.subr.mxu0 0.0
        %1934 = vmatpush1.msra.mxu0 0.0
        %1935 = vmatprep.subr.mxu0 0.0
        %1936 = vmatpush1.msra.mxu0 0.0
        %1937 = vmatprep.subr.mxu0 0.0
        %1938 = vmatpush1.msra.mxu0 0.0
        %1939 = vmatprep.subr.mxu0 0.0
        %1940 = vmatpush1.msra.mxu0 0.0
        %1941 = vmatprep.subr.mxu0 0.0
        %1942 = vmatpush1.msra.mxu0 0.0
        %1943 = vmatprep.subr.mxu0 0.0
        %1944 = vmatpush1.msra.mxu0 0.0
        %1945 = vmatprep.subr.mxu0 0.0
        %1946 = vmatpush1.msra.mxu0 0.0
        %1947 = vmatprep.subr.mxu0 0.0
        %1948 = vmatpush1.msra.mxu0 0.0
        %1949 = vmatprep.subr.mxu0 0.0
        %1950 = vmatpush1.msra.mxu0 0.0
        %1951 = vmatprep.subr.mxu0 0.0
        %1952 = vmatpush1.msra.mxu0 0.0
        %1953 = vmatprep.subr.mxu0 0.0
        %1954 = vmatpush1.msra.mxu0 0.0
        %1955 = vmatprep.subr.mxu0 0.0
        %1956 = vmatpush1.msra.mxu0 0.0
        %1957 = vmatprep.subr.mxu0 0.0
        %1958 = vmatpush1.msra.mxu0 0.0
        %1959 = vmatprep.subr.mxu0 0.0
        %1960 = vmatpush1.msra.mxu0 0.0
        %1961 = vmatprep.subr.mxu0 0.0
        %1962 = vmatpush1.msra.mxu0 0.0
        %1963 = vmatprep.mubr.f32.mxu0 0.0
        %1964 = vmatmul.mubr.f32.gmra.mrb[0].mxu0 %v1657
        %v1965 = vpop.f32.mrb[0].mxu0
        %v1966 = vadd.f32 %v1336, %v1965
        %v1967 = vpop.f32.mrb[0].mxu0
        %1968 = vmatprep.mubr.f32.mxu0 0.0
        %1969 = vmatmul.mubr.f32.gmra.mrb[0].mxu0 %v1660
        %v1970 = vpop.f32.mrb[0].mxu0
        %v1971 = vadd.f32 %v1341, %v1970
        %v1972 = vpop.f32.mrb[0].mxu0
        %1973 = vdwg.mxu0
        %v1975 = vsel %vm459, %v965, 0
        %1977 = vmatprep.subr.mxu0 0.0
        %1978 = vmatpush1.msra.mxu0 %v1975
        %1979 = vmatprep.subr.mxu0 0.0
        %1980 = vmatpush1.msra.mxu0 0.0
        %1981 = vmatprep.subr.mxu0 0.0
        %1982 = vmatpush1.msra.mxu0 0.0
        %1983 = vmatprep.subr.mxu0 0.0
        %1984 = vmatpush1.msra.mxu0 0.0
        %1985 = vmatprep.subr.mxu0 0.0
        %1986 = vmatpush1.msra.mxu0 0.0
        %1987 = vmatprep.subr.mxu0 0.0
        %1988 = vmatpush1.msra.mxu0 0.0
        %1989 = vmatprep.subr.mxu0 0.0
        %1990 = vmatpush1.msra.mxu0 0.0
        %1991 = vmatprep.subr.mxu0 0.0
        %1992 = vmatpush1.msra.mxu0 0.0
        %1993 = vmatprep.subr.mxu0 0.0
        %1994 = vmatpush1.msra.mxu0 0.0
        %1995 = vmatprep.subr.mxu0 0.0
        %1996 = vmatpush1.msra.mxu0 0.0
        %1997 = vmatprep.subr.mxu0 0.0
        %1998 = vmatpush1.msra.mxu0 0.0
        %1999 = vmatprep.subr.mxu0 0.0
        %2000 = vmatpush1.msra.mxu0 0.0
        %2001 = vmatprep.subr.mxu0 0.0
        %2002 = vmatpush1.msra.mxu0 0.0
        %2003 = vmatprep.subr.mxu0 0.0
        %2004 = vmatpush1.msra.mxu0 0.0
        %2005 = vmatprep.subr.mxu0 0.0
        %2006 = vmatpush1.msra.mxu0 0.0
        %2007 = vmatprep.subr.mxu0 0.0
        %2008 = vmatpush1.msra.mxu0 0.0
        %2009 = vmatprep.subr.mxu0 0.0
        %2010 = vmatpush1.msra.mxu0 0.0
        %2011 = vmatprep.subr.mxu0 0.0
        %2012 = vmatpush1.msra.mxu0 0.0
        %2013 = vmatprep.subr.mxu0 0.0
        %2014 = vmatpush1.msra.mxu0 0.0
        %2015 = vmatprep.subr.mxu0 0.0
        %2016 = vmatpush1.msra.mxu0 0.0
        %2017 = vmatprep.subr.mxu0 0.0
        %2018 = vmatpush1.msra.mxu0 0.0
        %2019 = vmatprep.subr.mxu0 0.0
        %2020 = vmatpush1.msra.mxu0 0.0
        %2021 = vmatprep.subr.mxu0 0.0
        %2022 = vmatpush1.msra.mxu0 0.0
        %2023 = vmatprep.subr.mxu0 0.0
        %2024 = vmatpush1.msra.mxu0 0.0
        %2025 = vmatprep.subr.mxu0 0.0
        %2026 = vmatpush1.msra.mxu0 0.0
        %2027 = vmatprep.subr.mxu0 0.0
        %2028 = vmatpush1.msra.mxu0 0.0
        %2029 = vmatprep.subr.mxu0 0.0
        %2030 = vmatpush1.msra.mxu0 0.0
        %2031 = vmatprep.subr.mxu0 0.0
        %2032 = vmatpush1.msra.mxu0 0.0
        %2033 = vmatprep.subr.mxu0 0.0
        %2034 = vmatpush1.msra.mxu0 0.0
        %2035 = vmatprep.subr.mxu0 0.0
        %2036 = vmatpush1.msra.mxu0 0.0
        %2037 = vmatprep.subr.mxu0 0.0
        %2038 = vmatpush1.msra.mxu0 0.0
        %2039 = vmatprep.subr.mxu0 0.0
        %2040 = vmatpush1.msra.mxu0 0.0
        %2041 = vmatprep.mubr.f32.mxu0 0.0
        %2042 = vmatmul.mubr.f32.gmra.mrb[0].mxu0 %v1657
        %v2043 = vpop.f32.mrb[0].mxu0
        %v2044 = vadd.f32 %v1414, %v2043
        %v2045 = vpop.f32.mrb[0].mxu0
        %2046 = vmatprep.mubr.f32.mxu0 0.0
        %2047 = vmatmul.mubr.f32.gmra.mrb[0].mxu0 %v1660
        %v2048 = vpop.f32.mrb[0].mxu0
        %v2049 = vadd.f32 %v1419, %v2048
        %v2050 = vpop.f32.mrb[0].mxu0
        %2051 = vdwg.mxu0
        %v2053 = vsel %vm459, %v966, 0
        %2055 = vmatprep.subr.mxu0 0.0
        %2056 = vmatpush1.msra.mxu0 %v2053
        %2057 = vmatprep.subr.mxu0 0.0
        %2058 = vmatpush1.msra.mxu0 0.0
        %2059 = vmatprep.subr.mxu0 0.0
        %2060 = vmatpush1.msra.mxu0 0.0
        %2061 = vmatprep.subr.mxu0 0.0
        %2062 = vmatpush1.msra.mxu0 0.0
        %2063 = vmatprep.subr.mxu0 0.0
        %2064 = vmatpush1.msra.mxu0 0.0
        %2065 = vmatprep.subr.mxu0 0.0
        %2066 = vmatpush1.msra.mxu0 0.0
        %2067 = vmatprep.subr.mxu0 0.0
        %2068 = vmatpush1.msra.mxu0 0.0
        %2069 = vmatprep.subr.mxu0 0.0
        %2070 = vmatpush1.msra.mxu0 0.0
        %2071 = vmatprep.subr.mxu0 0.0
        %2072 = vmatpush1.msra.mxu0 0.0
        %2073 = vmatprep.subr.mxu0 0.0
        %2074 = vmatpush1.msra.mxu0 0.0
        %2075 = vmatprep.subr.mxu0 0.0
        %2076 = vmatpush1.msra.mxu0 0.0
        %2077 = vmatprep.subr.mxu0 0.0
        %2078 = vmatpush1.msra.mxu0 0.0
        %2079 = vmatprep.subr.mxu0 0.0
        %2080 = vmatpush1.msra.mxu0 0.0
        %2081 = vmatprep.subr.mxu0 0.0
        %2082 = vmatpush1.msra.mxu0 0.0
        %2083 = vmatprep.subr.mxu0 0.0
        %2084 = vmatpush1.msra.mxu0 0.0
        %2085 = vmatprep.subr.mxu0 0.0
        %2086 = vmatpush1.msra.mxu0 0.0
        %2087 = vmatprep.subr.mxu0 0.0
        %2088 = vmatpush1.msra.mxu0 0.0
        %2089 = vmatprep.subr.mxu0 0.0
        %2090 = vmatpush1.msra.mxu0 0.0
        %2091 = vmatprep.subr.mxu0 0.0
        %2092 = vmatpush1.msra.mxu0 0.0
        %2093 = vmatprep.subr.mxu0 0.0
        %2094 = vmatpush1.msra.mxu0 0.0
        %2095 = vmatprep.subr.mxu0 0.0
        %2096 = vmatpush1.msra.mxu0 0.0
        %2097 = vmatprep.subr.mxu0 0.0
        %2098 = vmatpush1.msra.mxu0 0.0
        %2099 = vmatprep.subr.mxu0 0.0
        %2100 = vmatpush1.msra.mxu0 0.0
        %2101 = vmatprep.subr.mxu0 0.0
        %2102 = vmatpush1.msra.mxu0 0.0
        %2103 = vmatprep.subr.mxu0 0.0
        %2104 = vmatpush1.msra.mxu0 0.0
        %2105 = vmatprep.subr.mxu0 0.0
        %2106 = vmatpush1.msra.mxu0 0.0
        %2107 = vmatprep.subr.mxu0 0.0
        %2108 = vmatpush1.msra.mxu0 0.0
        %2109 = vmatprep.subr.mxu0 0.0
        %2110 = vmatpush1.msra.mxu0 0.0
        %2111 = vmatprep.subr.mxu0 0.0
        %2112 = vmatpush1.msra.mxu0 0.0
        %2113 = vmatprep.subr.mxu0 0.0
        %2114 = vmatpush1.msra.mxu0 0.0
        %2115 = vmatprep.subr.mxu0 0.0
        %2116 = vmatpush1.msra.mxu0 0.0
        %2117 = vmatprep.subr.mxu0 0.0
        %2118 = vmatpush1.msra.mxu0 0.0
        %2119 = vmatprep.mubr.f32.mxu0 0.0
        %2120 = vmatmul.mubr.f32.gmra.mrb[0].mxu0 %v1657
        %v2121 = vpop.f32.mrb[0].mxu0
        %v2122 = vadd.f32 %v1492, %v2121
        %v2123 = vpop.f32.mrb[0].mxu0
        %2124 = vmatprep.mubr.f32.mxu0 0.0
        %2125 = vmatmul.mubr.f32.gmra.mrb[0].mxu0 %v1660
        %v2126 = vpop.f32.mrb[0].mxu0
        %v2127 = vadd.f32 %v1497, %v2126
        %v2128 = vpop.f32.mrb[0].mxu0
        %2129 = vdwg.mxu0
        %v2131 = vsel %vm459, %v967, 0
        %2133 = vmatprep.subr.mxu0 0.0
        %2134 = vmatpush1.msra.mxu0 %v2131
        %2135 = vmatprep.subr.mxu0 0.0
        %2136 = vmatpush1.msra.mxu0 0.0
        %2137 = vmatprep.subr.mxu0 0.0
        %2138 = vmatpush1.msra.mxu0 0.0
        %2139 = vmatprep.subr.mxu0 0.0
        %2140 = vmatpush1.msra.mxu0 0.0
        %2141 = vmatprep.subr.mxu0 0.0
        %2142 = vmatpush1.msra.mxu0 0.0
        %2143 = vmatprep.subr.mxu0 0.0
        %2144 = vmatpush1.msra.mxu0 0.0
        %2145 = vmatprep.subr.mxu0 0.0
        %2146 = vmatpush1.msra.mxu0 0.0
        %2147 = vmatprep.subr.mxu0 0.0
        %2148 = vmatpush1.msra.mxu0 0.0
        %2149 = vmatprep.subr.mxu0 0.0
        %2150 = vmatpush1.msra.mxu0 0.0
        %2151 = vmatprep.subr.mxu0 0.0
        %2152 = vmatpush1.msra.mxu0 0.0
        %2153 = vmatprep.subr.mxu0 0.0
        %2154 = vmatpush1.msra.mxu0 0.0
        %2155 = vmatprep.subr.mxu0 0.0
        %2156 = vmatpush1.msra.mxu0 0.0
        %2157 = vmatprep.subr.mxu0 0.0
        %2158 = vmatpush1.msra.mxu0 0.0
        %2159 = vmatprep.subr.mxu0 0.0
        %2160 = vmatpush1.msra.mxu0 0.0
        %2161 = vmatprep.subr.mxu0 0.0
        %2162 = vmatpush1.msra.mxu0 0.0
        %2163 = vmatprep.subr.mxu0 0.0
        %2164 = vmatpush1.msra.mxu0 0.0
        %2165 = vmatprep.subr.mxu0 0.0
        %2166 = vmatpush1.msra.mxu0 0.0
        %2167 = vmatprep.subr.mxu0 0.0
        %2168 = vmatpush1.msra.mxu0 0.0
        %2169 = vmatprep.subr.mxu0 0.0
        %2170 = vmatpush1.msra.mxu0 0.0
        %2171 = vmatprep.subr.mxu0 0.0
        %2172 = vmatpush1.msra.mxu0 0.0
        %2173 = vmatprep.subr.mxu0 0.0
        %2174 = vmatpush1.msra.mxu0 0.0
        %2175 = vmatprep.subr.mxu0 0.0
        %2176 = vmatpush1.msra.mxu0 0.0
        %2177 = vmatprep.subr.mxu0 0.0
        %2178 = vmatpush1.msra.mxu0 0.0
        %2179 = vmatprep.subr.mxu0 0.0
        %2180 = vmatpush1.msra.mxu0 0.0
        %2181 = vmatprep.subr.mxu0 0.0
        %2182 = vmatpush1.msra.mxu0 0.0
        %2183 = vmatprep.subr.mxu0 0.0
        %2184 = vmatpush1.msra.mxu0 0.0
        %2185 = vmatprep.subr.mxu0 0.0
        %2186 = vmatpush1.msra.mxu0 0.0
        %2187 = vmatprep.subr.mxu0 0.0
        %2188 = vmatpush1.msra.mxu0 0.0
        %2189 = vmatprep.subr.mxu0 0.0
        %2190 = vmatpush1.msra.mxu0 0.0
        %2191 = vmatprep.subr.mxu0 0.0
        %2192 = vmatpush1.msra.mxu0 0.0
        %2193 = vmatprep.subr.mxu0 0.0
        %2194 = vmatpush1.msra.mxu0 0.0
        %2195 = vmatprep.subr.mxu0 0.0
        %2196 = vmatpush1.msra.mxu0 0.0
        %2197 = vmatprep.mubr.f32.mxu0 0.0
        %2198 = vmatmul.mubr.f32.gmra.mrb[0].mxu0 %v1657
        %v2199 = vpop.f32.mrb[0].mxu0
        %v2200 = vadd.f32 %v1570, %v2199
        %v2201 = vpop.f32.mrb[0].mxu0
        %2202 = vmatprep.mubr.f32.mxu0 0.0
        %2203 = vmatmul.mubr.f32.gmra.mrb[0].mxu0 %v1660
        %v2204 = vpop.f32.mrb[0].mxu0
        %v2205 = vadd.f32 %v1575, %v2204
        %v2206 = vpop.f32.mrb[0].mxu0
        %2207 = vdwg.mxu0
        %v2209 = vsel %vm459, %v968, 0
        %2211 = vmatprep.subr.mxu0 0.0
        %2212 = vmatpush1.msra.mxu0 %v2209
        %2213 = vmatprep.subr.mxu0 0.0
        %2214 = vmatpush1.msra.mxu0 0.0
        %2215 = vmatprep.subr.mxu0 0.0
        %2216 = vmatpush1.msra.mxu0 0.0
        %2217 = vmatprep.subr.mxu0 0.0
        %2218 = vmatpush1.msra.mxu0 0.0
        %2219 = vmatprep.subr.mxu0 0.0
        %2220 = vmatpush1.msra.mxu0 0.0
        %2221 = vmatprep.subr.mxu0 0.0
        %2222 = vmatpush1.msra.mxu0 0.0
        %2223 = vmatprep.subr.mxu0 0.0
        %2224 = vmatpush1.msra.mxu0 0.0
        %2225 = vmatprep.subr.mxu0 0.0
        %2226 = vmatpush1.msra.mxu0 0.0
        %2227 = vmatprep.subr.mxu0 0.0
        %2228 = vmatpush1.msra.mxu0 0.0
        %2229 = vmatprep.subr.mxu0 0.0
        %2230 = vmatpush1.msra.mxu0 0.0
        %2231 = vmatprep.subr.mxu0 0.0
        %2232 = vmatpush1.msra.mxu0 0.0
        %2233 = vmatprep.subr.mxu0 0.0
        %2234 = vmatpush1.msra.mxu0 0.0
        %2235 = vmatprep.subr.mxu0 0.0
        %2236 = vmatpush1.msra.mxu0 0.0
        %2237 = vmatprep.subr.mxu0 0.0
        %2238 = vmatpush1.msra.mxu0 0.0
        %2239 = vmatprep.subr.mxu0 0.0
        %2240 = vmatpush1.msra.mxu0 0.0
        %2241 = vmatprep.subr.mxu0 0.0
        %2242 = vmatpush1.msra.mxu0 0.0
        %2243 = vmatprep.subr.mxu0 0.0
        %2244 = vmatpush1.msra.mxu0 0.0
        %2245 = vmatprep.subr.mxu0 0.0
        %2246 = vmatpush1.msra.mxu0 0.0
        %2247 = vmatprep.subr.mxu0 0.0
        %2248 = vmatpush1.msra.mxu0 0.0
        %2249 = vmatprep.subr.mxu0 0.0
        %2250 = vmatpush1.msra.mxu0 0.0
        %2251 = vmatprep.subr.mxu0 0.0
        %2252 = vmatpush1.msra.mxu0 0.0
        %2253 = vmatprep.subr.mxu0 0.0
        %2254 = vmatpush1.msra.mxu0 0.0
        %2255 = vmatprep.subr.mxu0 0.0
        %2256 = vmatpush1.msra.mxu0 0.0
        %2257 = vmatprep.subr.mxu0 0.0
        %2258 = vmatpush1.msra.mxu0 0.0
        %2259 = vmatprep.subr.mxu0 0.0
        %2260 = vmatpush1.msra.mxu0 0.0
        %2261 = vmatprep.subr.mxu0 0.0
        %2262 = vmatpush1.msra.mxu0 0.0
        %2263 = vmatprep.subr.mxu0 0.0
        %2264 = vmatpush1.msra.mxu0 0.0
        %2265 = vmatprep.subr.mxu0 0.0
        %2266 = vmatpush1.msra.mxu0 0.0
        %2267 = vmatprep.subr.mxu0 0.0
        %2268 = vmatpush1.msra.mxu0 0.0
        %2269 = vmatprep.subr.mxu0 0.0
        %2270 = vmatpush1.msra.mxu0 0.0
        %2271 = vmatprep.subr.mxu0 0.0
        %2272 = vmatpush1.msra.mxu0 0.0
        %2273 = vmatprep.subr.mxu0 0.0
        %2274 = vmatpush1.msra.mxu0 0.0
        %2275 = vmatprep.mubr.f32.mxu0 0.0
        %2276 = vmatmul.mubr.f32.gmra.mrb[0].mxu0 %v1657
        %v2277 = vpop.f32.mrb[0].mxu0
        %v2278 = vadd.f32 %v1648, %v2277
        %v2279 = vpop.f32.mrb[0].mxu0
        %2280 = vmatprep.mubr.f32.mxu0 0.0
        %2281 = vmatmul.mubr.f32.gmra.mrb[0].mxu0 %v1660
        %v2282 = vpop.f32.mrb[0].mxu0
        %v2283 = vadd.f32 %v1653, %v2282
        %v2284 = vpop.f32.mrb[0].mxu0
        %2285 = vdwg.mxu0
        %v2286 = vlaneseq
        %v2287 = vshrl.u32 %v2286, 7
        %v2288 = vsub.s32 2, %v2287
        %v2289 = vrot.slane %v452, %v2288
        %v2290 = vmul.f32 %v583, %v2289
        %v2291 = vmul.f32 %v607, %v2289
        %v2292 = vmul.f32 %v590, %v2289
        %v2293 = vmul.f32 %v608, %v2289
        %v2294 = vmul.f32 %v599, %v2289
        %v2295 = vmul.f32 %v609, %v2289
        %v2296 = vmul.f32 %v606, %v2289
        %v2297 = vmul.f32 %v610, %v2289
        %v2298 = vlaneseq
        %v2299 = vshrl.u32 %v2298, 7
        %v2300 = vsub.s32 5, %v2299
        %v2301 = vrot.slane %v452, %v2300
        %v2302 = vmul.f32 %v736, %v2301
        %v2303 = vmul.f32 %v760, %v2301
        %v2304 = vmul.f32 %v743, %v2301
        %v2305 = vmul.f32 %v761, %v2301
        %v2306 = vmul.f32 %v752, %v2301
        %v2307 = vmul.f32 %v762, %v2301
        %v2308 = vmul.f32 %v759, %v2301
        %v2309 = vmul.f32 %v763, %v2301
        %v2310 = vadd.f32 %v2290, %v2302
        %v2311 = vadd.f32 %v2291, %v2303
        %v2312 = vadd.f32 %v2292, %v2304
        %v2313 = vadd.f32 %v2293, %v2305
        %v2314 = vadd.f32 %v2294, %v2306
        %v2315 = vadd.f32 %v2295, %v2307
        %v2316 = vadd.f32 %v2296, %v2308
        %v2317 = vadd.f32 %v2297, %v2309
        %v2318 = vlaneseq
        %v2319 = vshrl.u32 %v2318, 7
        %v2320 = vsub.s32 0, %v2319
        %v2321 = vrot.slane %v453, %v2320
        %v2322 = vmul.f32 %v889, %v2321
        %v2323 = vmul.f32 %v913, %v2321
        %v2324 = vmul.f32 %v896, %v2321
        %v2325 = vmul.f32 %v914, %v2321
        %v2326 = vmul.f32 %v905, %v2321
        %v2327 = vmul.f32 %v915, %v2321
        %v2328 = vmul.f32 %v912, %v2321
        %v2329 = vmul.f32 %v916, %v2321
        %v2330 = vadd.f32 %v2310, %v2322
        %v2331 = vadd.f32 %v2311, %v2323
        %v2332 = vadd.f32 %v2312, %v2324
        %v2333 = vadd.f32 %v2313, %v2325
        %v2334 = vadd.f32 %v2314, %v2326
        %v2335 = vadd.f32 %v2315, %v2327
        %v2336 = vadd.f32 %v2316, %v2328
        %v2337 = vadd.f32 %v2317, %v2329
        %s2338 = scalar_lea.vmem %s3, 32
        %v2339 = vld [vmem:[%s2338] sm:$0xff]
        %v2340 = vld [vmem:[%s2338 + $0x8] sm:$0xff]
        %v2342 = vsel %vm455, %v2339, 0
        %v2345 = vsel %vm455, %v2340, 0
        %v2348 = vsel %vm459, %v2330, 0
        %2350 = vmatprep.subr.mxu0 0.0
        %2351 = vmatpush1.msra.mxu0 %v2348
        %2352 = vmatprep.subr.mxu0 0.0
        %2353 = vmatpush1.msra.mxu0 0.0
        %2354 = vmatprep.subr.mxu0 0.0
        %2355 = vmatpush1.msra.mxu0 0.0
        %2356 = vmatprep.subr.mxu0 0.0
        %2357 = vmatpush1.msra.mxu0 0.0
        %2358 = vmatprep.subr.mxu0 0.0
        %2359 = vmatpush1.msra.mxu0 0.0
        %2360 = vmatprep.subr.mxu0 0.0
        %2361 = vmatpush1.msra.mxu0 0.0
        %2362 = vmatprep.subr.mxu0 0.0
        %2363 = vmatpush1.msra.mxu0 0.0
        %2364 = vmatprep.subr.mxu0 0.0
        %2365 = vmatpush1.msra.mxu0 0.0
        %2366 = vmatprep.subr.mxu0 0.0
        %2367 = vmatpush1.msra.mxu0 0.0
        %2368 = vmatprep.subr.mxu0 0.0
        %2369 = vmatpush1.msra.mxu0 0.0
        %2370 = vmatprep.subr.mxu0 0.0
        %2371 = vmatpush1.msra.mxu0 0.0
        %2372 = vmatprep.subr.mxu0 0.0
        %2373 = vmatpush1.msra.mxu0 0.0
        %2374 = vmatprep.subr.mxu0 0.0
        %2375 = vmatpush1.msra.mxu0 0.0
        %2376 = vmatprep.subr.mxu0 0.0
        %2377 = vmatpush1.msra.mxu0 0.0
        %2378 = vmatprep.subr.mxu0 0.0
        %2379 = vmatpush1.msra.mxu0 0.0
        %2380 = vmatprep.subr.mxu0 0.0
        %2381 = vmatpush1.msra.mxu0 0.0
        %2382 = vmatprep.subr.mxu0 0.0
        %2383 = vmatpush1.msra.mxu0 0.0
        %2384 = vmatprep.subr.mxu0 0.0
        %2385 = vmatpush1.msra.mxu0 0.0
        %2386 = vmatprep.subr.mxu0 0.0
        %2387 = vmatpush1.msra.mxu0 0.0
        %2388 = vmatprep.subr.mxu0 0.0
        %2389 = vmatpush1.msra.mxu0 0.0
        %2390 = vmatprep.subr.mxu0 0.0
        %2391 = vmatpush1.msra.mxu0 0.0
        %2392 = vmatprep.subr.mxu0 0.0
        %2393 = vmatpush1.msra.mxu0 0.0
        %2394 = vmatprep.subr.mxu0 0.0
        %2395 = vmatpush1.msra.mxu0 0.0
        %2396 = vmatprep.subr.mxu0 0.0
        %2397 = vmatpush1.msra.mxu0 0.0
        %2398 = vmatprep.subr.mxu0 0.0
        %2399 = vmatpush1.msra.mxu0 0.0
        %2400 = vmatprep.subr.mxu0 0.0
        %2401 = vmatpush1.msra.mxu0 0.0
        %2402 = vmatprep.subr.mxu0 0.0
        %2403 = vmatpush1.msra.mxu0 0.0
        %2404 = vmatprep.subr.mxu0 0.0
        %2405 = vmatpush1.msra.mxu0 0.0
        %2406 = vmatprep.subr.mxu0 0.0
        %2407 = vmatpush1.msra.mxu0 0.0
        %2408 = vmatprep.subr.mxu0 0.0
        %2409 = vmatpush1.msra.mxu0 0.0
        %2410 = vmatprep.subr.mxu0 0.0
        %2411 = vmatpush1.msra.mxu0 0.0
        %2412 = vmatprep.subr.mxu0 0.0
        %2413 = vmatpush1.msra.mxu0 0.0
        %2414 = vmatprep.mubr.f32.mxu0 0.0
        %2415 = vmatmul.mubr.f32.gmra.mrb[0].mxu0 %v2342
        %v2416 = vpop.f32.mrb[0].mxu0
        %v2417 = vadd.f32 0.0, %v2416
        %v2418 = vpop.f32.mrb[0].mxu0
        %2419 = vmatprep.mubr.f32.mxu0 0.0
        %2420 = vmatmul.mubr.f32.gmra.mrb[0].mxu0 %v2345
        %v2421 = vpop.f32.mrb[0].mxu0
        %v2422 = vadd.f32 0.0, %v2421
        %v2423 = vpop.f32.mrb[0].mxu0
        %2424 = vdwg.mxu0
        %v2426 = vsel %vm459, %v2331, 0
        %2428 = vmatprep.subr.mxu0 0.0
        %2429 = vmatpush1.msra.mxu0 %v2426
        %2430 = vmatprep.subr.mxu0 0.0
        %2431 = vmatpush1.msra.mxu0 0.0
        %2432 = vmatprep.subr.mxu0 0.0
        %2433 = vmatpush1.msra.mxu0 0.0
        %2434 = vmatprep.subr.mxu0 0.0
        %2435 = vmatpush1.msra.mxu0 0.0
        %2436 = vmatprep.subr.mxu0 0.0
        %2437 = vmatpush1.msra.mxu0 0.0
        %2438 = vmatprep.subr.mxu0 0.0
        %2439 = vmatpush1.msra.mxu0 0.0
        %2440 = vmatprep.subr.mxu0 0.0
        %2441 = vmatpush1.msra.mxu0 0.0
        %2442 = vmatprep.subr.mxu0 0.0
        %2443 = vmatpush1.msra.mxu0 0.0
        %2444 = vmatprep.subr.mxu0 0.0
        %2445 = vmatpush1.msra.mxu0 0.0
        %2446 = vmatprep.subr.mxu0 0.0
        %2447 = vmatpush1.msra.mxu0 0.0
        %2448 = vmatprep.subr.mxu0 0.0
        %2449 = vmatpush1.msra.mxu0 0.0
        %2450 = vmatprep.subr.mxu0 0.0
        %2451 = vmatpush1.msra.mxu0 0.0
        %2452 = vmatprep.subr.mxu0 0.0
        %2453 = vmatpush1.msra.mxu0 0.0
        %2454 = vmatprep.subr.mxu0 0.0
        %2455 = vmatpush1.msra.mxu0 0.0
        %2456 = vmatprep.subr.mxu0 0.0
        %2457 = vmatpush1.msra.mxu0 0.0
        %2458 = vmatprep.subr.mxu0 0.0
        %2459 = vmatpush1.msra.mxu0 0.0
        %2460 = vmatprep.subr.mxu0 0.0
        %2461 = vmatpush1.msra.mxu0 0.0
        %2462 = vmatprep.subr.mxu0 0.0
        %2463 = vmatpush1.msra.mxu0 0.0
        %2464 = vmatprep.subr.mxu0 0.0
        %2465 = vmatpush1.msra.mxu0 0.0
        %2466 = vmatprep.subr.mxu0 0.0
        %2467 = vmatpush1.msra.mxu0 0.0
        %2468 = vmatprep.subr.mxu0 0.0
        %2469 = vmatpush1.msra.mxu0 0.0
        %2470 = vmatprep.subr.mxu0 0.0
        %2471 = vmatpush1.msra.mxu0 0.0
        %2472 = vmatprep.subr.mxu0 0.0
        %2473 = vmatpush1.msra.mxu0 0.0
        %2474 = vmatprep.subr.mxu0 0.0
        %2475 = vmatpush1.msra.mxu0 0.0
        %2476 = vmatprep.subr.mxu0 0.0
        %2477 = vmatpush1.msra.mxu0 0.0
        %2478 = vmatprep.subr.mxu0 0.0
        %2479 = vmatpush1.msra.mxu0 0.0
        %2480 = vmatprep.subr.mxu0 0.0
        %2481 = vmatpush1.msra.mxu0 0.0
        %2482 = vmatprep.subr.mxu0 0.0
        %2483 = vmatpush1.msra.mxu0 0.0
        %2484 = vmatprep.subr.mxu0 0.0
        %2485 = vmatpush1.msra.mxu0 0.0
        %2486 = vmatprep.subr.mxu0 0.0
        %2487 = vmatpush1.msra.mxu0 0.0
        %2488 = vmatprep.subr.mxu0 0.0
        %2489 = vmatpush1.msra.mxu0 0.0
        %2490 = vmatprep.subr.mxu0 0.0
        %2491 = vmatpush1.msra.mxu0 0.0
        %2492 = vmatprep.mubr.f32.mxu0 0.0
        %2493 = vmatmul.mubr.f32.gmra.mrb[0].mxu0 %v2342
        %v2494 = vpop.f32.mrb[0].mxu0
        %v2495 = vadd.f32 0.0, %v2494
        %v2496 = vpop.f32.mrb[0].mxu0
        %2497 = vmatprep.mubr.f32.mxu0 0.0
        %2498 = vmatmul.mubr.f32.gmra.mrb[0].mxu0 %v2345
        %v2499 = vpop.f32.mrb[0].mxu0
        %v2500 = vadd.f32 0.0, %v2499
        %v2501 = vpop.f32.mrb[0].mxu0
        %2502 = vdwg.mxu0
        %v2504 = vsel %vm459, %v2332, 0
        %2506 = vmatprep.subr.mxu0 0.0
        %2507 = vmatpush1.msra.mxu0 %v2504
        %2508 = vmatprep.subr.mxu0 0.0
        %2509 = vmatpush1.msra.mxu0 0.0
        %2510 = vmatprep.subr.mxu0 0.0
        %2511 = vmatpush1.msra.mxu0 0.0
        %2512 = vmatprep.subr.mxu0 0.0
        %2513 = vmatpush1.msra.mxu0 0.0
        %2514 = vmatprep.subr.mxu0 0.0
        %2515 = vmatpush1.msra.mxu0 0.0
        %2516 = vmatprep.subr.mxu0 0.0
        %2517 = vmatpush1.msra.mxu0 0.0
        %2518 = vmatprep.subr.mxu0 0.0
        %2519 = vmatpush1.msra.mxu0 0.0
        %2520 = vmatprep.subr.mxu0 0.0
        %2521 = vmatpush1.msra.mxu0 0.0
        %2522 = vmatprep.subr.mxu0 0.0
        %2523 = vmatpush1.msra.mxu0 0.0
        %2524 = vmatprep.subr.mxu0 0.0
        %2525 = vmatpush1.msra.mxu0 0.0
        %2526 = vmatprep.subr.mxu0 0.0
        %2527 = vmatpush1.msra.mxu0 0.0
        %2528 = vmatprep.subr.mxu0 0.0
        %2529 = vmatpush1.msra.mxu0 0.0
        %2530 = vmatprep.subr.mxu0 0.0
        %2531 = vmatpush1.msra.mxu0 0.0
        %2532 = vmatprep.subr.mxu0 0.0
        %2533 = vmatpush1.msra.mxu0 0.0
        %2534 = vmatprep.subr.mxu0 0.0
        %2535 = vmatpush1.msra.mxu0 0.0
        %2536 = vmatprep.subr.mxu0 0.0
        %2537 = vmatpush1.msra.mxu0 0.0
        %2538 = vmatprep.subr.mxu0 0.0
        %2539 = vmatpush1.msra.mxu0 0.0
        %2540 = vmatprep.subr.mxu0 0.0
        %2541 = vmatpush1.msra.mxu0 0.0
        %2542 = vmatprep.subr.mxu0 0.0
        %2543 = vmatpush1.msra.mxu0 0.0
        %2544 = vmatprep.subr.mxu0 0.0
        %2545 = vmatpush1.msra.mxu0 0.0
        %2546 = vmatprep.subr.mxu0 0.0
        %2547 = vmatpush1.msra.mxu0 0.0
        %2548 = vmatprep.subr.mxu0 0.0
        %2549 = vmatpush1.msra.mxu0 0.0
        %2550 = vmatprep.subr.mxu0 0.0
        %2551 = vmatpush1.msra.mxu0 0.0
        %2552 = vmatprep.subr.mxu0 0.0
        %2553 = vmatpush1.msra.mxu0 0.0
        %2554 = vmatprep.subr.mxu0 0.0
        %2555 = vmatpush1.msra.mxu0 0.0
        %2556 = vmatprep.subr.mxu0 0.0
        %2557 = vmatpush1.msra.mxu0 0.0
        %2558 = vmatprep.subr.mxu0 0.0
        %2559 = vmatpush1.msra.mxu0 0.0
        %2560 = vmatprep.subr.mxu0 0.0
        %2561 = vmatpush1.msra.mxu0 0.0
        %2562 = vmatprep.subr.mxu0 0.0
        %2563 = vmatpush1.msra.mxu0 0.0
        %2564 = vmatprep.subr.mxu0 0.0
        %2565 = vmatpush1.msra.mxu0 0.0
        %2566 = vmatprep.subr.mxu0 0.0
        %2567 = vmatpush1.msra.mxu0 0.0
        %2568 = vmatprep.subr.mxu0 0.0
        %2569 = vmatpush1.msra.mxu0 0.0
        %2570 = vmatprep.mubr.f32.mxu0 0.0
        %2571 = vmatmul.mubr.f32.gmra.mrb[0].mxu0 %v2342
        %v2572 = vpop.f32.mrb[0].mxu0
        %v2573 = vadd.f32 0.0, %v2572
        %v2574 = vpop.f32.mrb[0].mxu0
        %2575 = vmatprep.mubr.f32.mxu0 0.0
        %2576 = vmatmul.mubr.f32.gmra.mrb[0].mxu0 %v2345
        %v2577 = vpop.f32.mrb[0].mxu0
        %v2578 = vadd.f32 0.0, %v2577
        %v2579 = vpop.f32.mrb[0].mxu0
        %2580 = vdwg.mxu0
        %v2582 = vsel %vm459, %v2333, 0
        %2584 = vmatprep.subr.mxu0 0.0
        %2585 = vmatpush1.msra.mxu0 %v2582
        %2586 = vmatprep.subr.mxu0 0.0
        %2587 = vmatpush1.msra.mxu0 0.0
        %2588 = vmatprep.subr.mxu0 0.0
        %2589 = vmatpush1.msra.mxu0 0.0
        %2590 = vmatprep.subr.mxu0 0.0
        %2591 = vmatpush1.msra.mxu0 0.0
        %2592 = vmatprep.subr.mxu0 0.0
        %2593 = vmatpush1.msra.mxu0 0.0
        %2594 = vmatprep.subr.mxu0 0.0
        %2595 = vmatpush1.msra.mxu0 0.0
        %2596 = vmatprep.subr.mxu0 0.0
        %2597 = vmatpush1.msra.mxu0 0.0
        %2598 = vmatprep.subr.mxu0 0.0
        %2599 = vmatpush1.msra.mxu0 0.0
        %2600 = vmatprep.subr.mxu0 0.0
        %2601 = vmatpush1.msra.mxu0 0.0
        %2602 = vmatprep.subr.mxu0 0.0
        %2603 = vmatpush1.msra.mxu0 0.0
        %2604 = vmatprep.subr.mxu0 0.0
        %2605 = vmatpush1.msra.mxu0 0.0
        %2606 = vmatprep.subr.mxu0 0.0
        %2607 = vmatpush1.msra.mxu0 0.0
        %2608 = vmatprep.subr.mxu0 0.0
        %2609 = vmatpush1.msra.mxu0 0.0
        %2610 = vmatprep.subr.mxu0 0.0
        %2611 = vmatpush1.msra.mxu0 0.0
        %2612 = vmatprep.subr.mxu0 0.0
        %2613 = vmatpush1.msra.mxu0 0.0
        %2614 = vmatprep.subr.mxu0 0.0
        %2615 = vmatpush1.msra.mxu0 0.0
        %2616 = vmatprep.subr.mxu0 0.0
        %2617 = vmatpush1.msra.mxu0 0.0
        %2618 = vmatprep.subr.mxu0 0.0
        %2619 = vmatpush1.msra.mxu0 0.0
        %2620 = vmatprep.subr.mxu0 0.0
        %2621 = vmatpush1.msra.mxu0 0.0
        %2622 = vmatprep.subr.mxu0 0.0
        %2623 = vmatpush1.msra.mxu0 0.0
        %2624 = vmatprep.subr.mxu0 0.0
        %2625 = vmatpush1.msra.mxu0 0.0
        %2626 = vmatprep.subr.mxu0 0.0
        %2627 = vmatpush1.msra.mxu0 0.0
        %2628 = vmatprep.subr.mxu0 0.0
        %2629 = vmatpush1.msra.mxu0 0.0
        %2630 = vmatprep.subr.mxu0 0.0
        %2631 = vmatpush1.msra.mxu0 0.0
        %2632 = vmatprep.subr.mxu0 0.0
        %2633 = vmatpush1.msra.mxu0 0.0
        %2634 = vmatprep.subr.mxu0 0.0
        %2635 = vmatpush1.msra.mxu0 0.0
        %2636 = vmatprep.subr.mxu0 0.0
        %2637 = vmatpush1.msra.mxu0 0.0
        %2638 = vmatprep.subr.mxu0 0.0
        %2639 = vmatpush1.msra.mxu0 0.0
        %2640 = vmatprep.subr.mxu0 0.0
        %2641 = vmatpush1.msra.mxu0 0.0
        %2642 = vmatprep.subr.mxu0 0.0
        %2643 = vmatpush1.msra.mxu0 0.0
        %2644 = vmatprep.subr.mxu0 0.0
        %2645 = vmatpush1.msra.mxu0 0.0
        %2646 = vmatprep.subr.mxu0 0.0
        %2647 = vmatpush1.msra.mxu0 0.0
        %2648 = vmatprep.mubr.f32.mxu0 0.0
        %2649 = vmatmul.mubr.f32.gmra.mrb[0].mxu0 %v2342
        %v2650 = vpop.f32.mrb[0].mxu0
        %v2651 = vadd.f32 0.0, %v2650
        %v2652 = vpop.f32.mrb[0].mxu0
        %2653 = vmatprep.mubr.f32.mxu0 0.0
        %2654 = vmatmul.mubr.f32.gmra.mrb[0].mxu0 %v2345
        %v2655 = vpop.f32.mrb[0].mxu0
        %v2656 = vadd.f32 0.0, %v2655
        %v2657 = vpop.f32.mrb[0].mxu0
        %2658 = vdwg.mxu0
        %v2660 = vsel %vm459, %v2334, 0
        %2662 = vmatprep.subr.mxu0 0.0
        %2663 = vmatpush1.msra.mxu0 %v2660
        %2664 = vmatprep.subr.mxu0 0.0
        %2665 = vmatpush1.msra.mxu0 0.0
        %2666 = vmatprep.subr.mxu0 0.0
        %2667 = vmatpush1.msra.mxu0 0.0
        %2668 = vmatprep.subr.mxu0 0.0
        %2669 = vmatpush1.msra.mxu0 0.0
        %2670 = vmatprep.subr.mxu0 0.0
        %2671 = vmatpush1.msra.mxu0 0.0
        %2672 = vmatprep.subr.mxu0 0.0
        %2673 = vmatpush1.msra.mxu0 0.0
        %2674 = vmatprep.subr.mxu0 0.0
        %2675 = vmatpush1.msra.mxu0 0.0
        %2676 = vmatprep.subr.mxu0 0.0
        %2677 = vmatpush1.msra.mxu0 0.0
        %2678 = vmatprep.subr.mxu0 0.0
        %2679 = vmatpush1.msra.mxu0 0.0
        %2680 = vmatprep.subr.mxu0 0.0
        %2681 = vmatpush1.msra.mxu0 0.0
        %2682 = vmatprep.subr.mxu0 0.0
        %2683 = vmatpush1.msra.mxu0 0.0
        %2684 = vmatprep.subr.mxu0 0.0
        %2685 = vmatpush1.msra.mxu0 0.0
        %2686 = vmatprep.subr.mxu0 0.0
        %2687 = vmatpush1.msra.mxu0 0.0
        %2688 = vmatprep.subr.mxu0 0.0
        %2689 = vmatpush1.msra.mxu0 0.0
        %2690 = vmatprep.subr.mxu0 0.0
        %2691 = vmatpush1.msra.mxu0 0.0
        %2692 = vmatprep.subr.mxu0 0.0
        %2693 = vmatpush1.msra.mxu0 0.0
        %2694 = vmatprep.subr.mxu0 0.0
        %2695 = vmatpush1.msra.mxu0 0.0
        %2696 = vmatprep.subr.mxu0 0.0
        %2697 = vmatpush1.msra.mxu0 0.0
        %2698 = vmatprep.subr.mxu0 0.0
        %2699 = vmatpush1.msra.mxu0 0.0
        %2700 = vmatprep.subr.mxu0 0.0
        %2701 = vmatpush1.msra.mxu0 0.0
        %2702 = vmatprep.subr.mxu0 0.0
        %2703 = vmatpush1.msra.mxu0 0.0
        %2704 = vmatprep.subr.mxu0 0.0
        %2705 = vmatpush1.msra.mxu0 0.0
        %2706 = vmatprep.subr.mxu0 0.0
        %2707 = vmatpush1.msra.mxu0 0.0
        %2708 = vmatprep.subr.mxu0 0.0
        %2709 = vmatpush1.msra.mxu0 0.0
        %2710 = vmatprep.subr.mxu0 0.0
        %2711 = vmatpush1.msra.mxu0 0.0
        %2712 = vmatprep.subr.mxu0 0.0
        %2713 = vmatpush1.msra.mxu0 0.0
        %2714 = vmatprep.subr.mxu0 0.0
        %2715 = vmatpush1.msra.mxu0 0.0
        %2716 = vmatprep.subr.mxu0 0.0
        %2717 = vmatpush1.msra.mxu0 0.0
        %2718 = vmatprep.subr.mxu0 0.0
        %2719 = vmatpush1.msra.mxu0 0.0
        %2720 = vmatprep.subr.mxu0 0.0
        %2721 = vmatpush1.msra.mxu0 0.0
        %2722 = vmatprep.subr.mxu0 0.0
        %2723 = vmatpush1.msra.mxu0 0.0
        %2724 = vmatprep.subr.mxu0 0.0
        %2725 = vmatpush1.msra.mxu0 0.0
        %2726 = vmatprep.mubr.f32.mxu0 0.0
        %2727 = vmatmul.mubr.f32.gmra.mrb[0].mxu0 %v2342
        %v2728 = vpop.f32.mrb[0].mxu0
        %v2729 = vadd.f32 0.0, %v2728
        %v2730 = vpop.f32.mrb[0].mxu0
        %2731 = vmatprep.mubr.f32.mxu0 0.0
        %2732 = vmatmul.mubr.f32.gmra.mrb[0].mxu0 %v2345
        %v2733 = vpop.f32.mrb[0].mxu0
        %v2734 = vadd.f32 0.0, %v2733
        %v2735 = vpop.f32.mrb[0].mxu0
        %2736 = vdwg.mxu0
        %v2738 = vsel %vm459, %v2335, 0
        %2740 = vmatprep.subr.mxu0 0.0
        %2741 = vmatpush1.msra.mxu0 %v2738
        %2742 = vmatprep.subr.mxu0 0.0
        %2743 = vmatpush1.msra.mxu0 0.0
        %2744 = vmatprep.subr.mxu0 0.0
        %2745 = vmatpush1.msra.mxu0 0.0
        %2746 = vmatprep.subr.mxu0 0.0
        %2747 = vmatpush1.msra.mxu0 0.0
        %2748 = vmatprep.subr.mxu0 0.0
        %2749 = vmatpush1.msra.mxu0 0.0
        %2750 = vmatprep.subr.mxu0 0.0
        %2751 = vmatpush1.msra.mxu0 0.0
        %2752 = vmatprep.subr.mxu0 0.0
        %2753 = vmatpush1.msra.mxu0 0.0
        %2754 = vmatprep.subr.mxu0 0.0
        %2755 = vmatpush1.msra.mxu0 0.0
        %2756 = vmatprep.subr.mxu0 0.0
        %2757 = vmatpush1.msra.mxu0 0.0
        %2758 = vmatprep.subr.mxu0 0.0
        %2759 = vmatpush1.msra.mxu0 0.0
        %2760 = vmatprep.subr.mxu0 0.0
        %2761 = vmatpush1.msra.mxu0 0.0
        %2762 = vmatprep.subr.mxu0 0.0
        %2763 = vmatpush1.msra.mxu0 0.0
        %2764 = vmatprep.subr.mxu0 0.0
        %2765 = vmatpush1.msra.mxu0 0.0
        %2766 = vmatprep.subr.mxu0 0.0
        %2767 = vmatpush1.msra.mxu0 0.0
        %2768 = vmatprep.subr.mxu0 0.0
        %2769 = vmatpush1.msra.mxu0 0.0
        %2770 = vmatprep.subr.mxu0 0.0
        %2771 = vmatpush1.msra.mxu0 0.0
        %2772 = vmatprep.subr.mxu0 0.0
        %2773 = vmatpush1.msra.mxu0 0.0
        %2774 = vmatprep.subr.mxu0 0.0
        %2775 = vmatpush1.msra.mxu0 0.0
        %2776 = vmatprep.subr.mxu0 0.0
        %2777 = vmatpush1.msra.mxu0 0.0
        %2778 = vmatprep.subr.mxu0 0.0
        %2779 = vmatpush1.msra.mxu0 0.0
        %2780 = vmatprep.subr.mxu0 0.0
        %2781 = vmatpush1.msra.mxu0 0.0
        %2782 = vmatprep.subr.mxu0 0.0
        %2783 = vmatpush1.msra.mxu0 0.0
        %2784 = vmatprep.subr.mxu0 0.0
        %2785 = vmatpush1.msra.mxu0 0.0
        %2786 = vmatprep.subr.mxu0 0.0
        %2787 = vmatpush1.msra.mxu0 0.0
        %2788 = vmatprep.subr.mxu0 0.0
        %2789 = vmatpush1.msra.mxu0 0.0
        %2790 = vmatprep.subr.mxu0 0.0
        %2791 = vmatpush1.msra.mxu0 0.0
        %2792 = vmatprep.subr.mxu0 0.0
        %2793 = vmatpush1.msra.mxu0 0.0
        %2794 = vmatprep.subr.mxu0 0.0
        %2795 = vmatpush1.msra.mxu0 0.0
        %2796 = vmatprep.subr.mxu0 0.0
        %2797 = vmatpush1.msra.mxu0 0.0
        %2798 = vmatprep.subr.mxu0 0.0
        %2799 = vmatpush1.msra.mxu0 0.0
        %2800 = vmatprep.subr.mxu0 0.0
        %2801 = vmatpush1.msra.mxu0 0.0
        %2802 = vmatprep.subr.mxu0 0.0
        %2803 = vmatpush1.msra.mxu0 0.0
        %2804 = vmatprep.mubr.f32.mxu0 0.0
        %2805 = vmatmul.mubr.f32.gmra.mrb[0].mxu0 %v2342
        %v2806 = vpop.f32.mrb[0].mxu0
        %v2807 = vadd.f32 0.0, %v2806
        %v2808 = vpop.f32.mrb[0].mxu0
        %2809 = vmatprep.mubr.f32.mxu0 0.0
        %2810 = vmatmul.mubr.f32.gmra.mrb[0].mxu0 %v2345
        %v2811 = vpop.f32.mrb[0].mxu0
        %v2812 = vadd.f32 0.0, %v2811
        %v2813 = vpop.f32.mrb[0].mxu0
        %2814 = vdwg.mxu0
        %v2816 = vsel %vm459, %v2336, 0
        %2818 = vmatprep.subr.mxu0 0.0
        %2819 = vmatpush1.msra.mxu0 %v2816
        %2820 = vmatprep.subr.mxu0 0.0
        %2821 = vmatpush1.msra.mxu0 0.0
        %2822 = vmatprep.subr.mxu0 0.0
        %2823 = vmatpush1.msra.mxu0 0.0
        %2824 = vmatprep.subr.mxu0 0.0
        %2825 = vmatpush1.msra.mxu0 0.0
        %2826 = vmatprep.subr.mxu0 0.0
        %2827 = vmatpush1.msra.mxu0 0.0
        %2828 = vmatprep.subr.mxu0 0.0
        %2829 = vmatpush1.msra.mxu0 0.0
        %2830 = vmatprep.subr.mxu0 0.0
        %2831 = vmatpush1.msra.mxu0 0.0
        %2832 = vmatprep.subr.mxu0 0.0
        %2833 = vmatpush1.msra.mxu0 0.0
        %2834 = vmatprep.subr.mxu0 0.0
        %2835 = vmatpush1.msra.mxu0 0.0
        %2836 = vmatprep.subr.mxu0 0.0
        %2837 = vmatpush1.msra.mxu0 0.0
        %2838 = vmatprep.subr.mxu0 0.0
        %2839 = vmatpush1.msra.mxu0 0.0
        %2840 = vmatprep.subr.mxu0 0.0
        %2841 = vmatpush1.msra.mxu0 0.0
        %2842 = vmatprep.subr.mxu0 0.0
        %2843 = vmatpush1.msra.mxu0 0.0
        %2844 = vmatprep.subr.mxu0 0.0
        %2845 = vmatpush1.msra.mxu0 0.0
        %2846 = vmatprep.subr.mxu0 0.0
        %2847 = vmatpush1.msra.mxu0 0.0
        %2848 = vmatprep.subr.mxu0 0.0
        %2849 = vmatpush1.msra.mxu0 0.0
        %2850 = vmatprep.subr.mxu0 0.0
        %2851 = vmatpush1.msra.mxu0 0.0
        %2852 = vmatprep.subr.mxu0 0.0
        %2853 = vmatpush1.msra.mxu0 0.0
        %2854 = vmatprep.subr.mxu0 0.0
        %2855 = vmatpush1.msra.mxu0 0.0
        %2856 = vmatprep.subr.mxu0 0.0
        %2857 = vmatpush1.msra.mxu0 0.0
        %2858 = vmatprep.subr.mxu0 0.0
        %2859 = vmatpush1.msra.mxu0 0.0
        %2860 = vmatprep.subr.mxu0 0.0
        %2861 = vmatpush1.msra.mxu0 0.0
        %2862 = vmatprep.subr.mxu0 0.0
        %2863 = vmatpush1.msra.mxu0 0.0
        %2864 = vmatprep.subr.mxu0 0.0
        %2865 = vmatpush1.msra.mxu0 0.0
        %2866 = vmatprep.subr.mxu0 0.0
        %2867 = vmatpush1.msra.mxu0 0.0
        %2868 = vmatprep.subr.mxu0 0.0
        %2869 = vmatpush1.msra.mxu0 0.0
        %2870 = vmatprep.subr.mxu0 0.0
        %2871 = vmatpush1.msra.mxu0 0.0
        %2872 = vmatprep.subr.mxu0 0.0
        %2873 = vmatpush1.msra.mxu0 0.0
        %2874 = vmatprep.subr.mxu0 0.0
        %2875 = vmatpush1.msra.mxu0 0.0
        %2876 = vmatprep.subr.mxu0 0.0
        %2877 = vmatpush1.msra.mxu0 0.0
        %2878 = vmatprep.subr.mxu0 0.0
        %2879 = vmatpush1.msra.mxu0 0.0
        %2880 = vmatprep.subr.mxu0 0.0
        %2881 = vmatpush1.msra.mxu0 0.0
        %2882 = vmatprep.mubr.f32.mxu0 0.0
        %2883 = vmatmul.mubr.f32.gmra.mrb[0].mxu0 %v2342
        %v2884 = vpop.f32.mrb[0].mxu0
        %v2885 = vadd.f32 0.0, %v2884
        %v2886 = vpop.f32.mrb[0].mxu0
        %2887 = vmatprep.mubr.f32.mxu0 0.0
        %2888 = vmatmul.mubr.f32.gmra.mrb[0].mxu0 %v2345
        %v2889 = vpop.f32.mrb[0].mxu0
        %v2890 = vadd.f32 0.0, %v2889
        %v2891 = vpop.f32.mrb[0].mxu0
        %2892 = vdwg.mxu0
        %v2894 = vsel %vm459, %v2337, 0
        %2896 = vmatprep.subr.mxu0 0.0
        %2897 = vmatpush1.msra.mxu0 %v2894
        %2898 = vmatprep.subr.mxu0 0.0
        %2899 = vmatpush1.msra.mxu0 0.0
        %2900 = vmatprep.subr.mxu0 0.0
        %2901 = vmatpush1.msra.mxu0 0.0
        %2902 = vmatprep.subr.mxu0 0.0
        %2903 = vmatpush1.msra.mxu0 0.0
        %2904 = vmatprep.subr.mxu0 0.0
        %2905 = vmatpush1.msra.mxu0 0.0
        %2906 = vmatprep.subr.mxu0 0.0
        %2907 = vmatpush1.msra.mxu0 0.0
        %2908 = vmatprep.subr.mxu0 0.0
        %2909 = vmatpush1.msra.mxu0 0.0
        %2910 = vmatprep.subr.mxu0 0.0
        %2911 = vmatpush1.msra.mxu0 0.0
        %2912 = vmatprep.subr.mxu0 0.0
        %2913 = vmatpush1.msra.mxu0 0.0
        %2914 = vmatprep.subr.mxu0 0.0
        %2915 = vmatpush1.msra.mxu0 0.0
        %2916 = vmatprep.subr.mxu0 0.0
        %2917 = vmatpush1.msra.mxu0 0.0
        %2918 = vmatprep.subr.mxu0 0.0
        %2919 = vmatpush1.msra.mxu0 0.0
        %2920 = vmatprep.subr.mxu0 0.0
        %2921 = vmatpush1.msra.mxu0 0.0
        %2922 = vmatprep.subr.mxu0 0.0
        %2923 = vmatpush1.msra.mxu0 0.0
        %2924 = vmatprep.subr.mxu0 0.0
        %2925 = vmatpush1.msra.mxu0 0.0
        %2926 = vmatprep.subr.mxu0 0.0
        %2927 = vmatpush1.msra.mxu0 0.0
        %2928 = vmatprep.subr.mxu0 0.0
        %2929 = vmatpush1.msra.mxu0 0.0
        %2930 = vmatprep.subr.mxu0 0.0
        %2931 = vmatpush1.msra.mxu0 0.0
        %2932 = vmatprep.subr.mxu0 0.0
        %2933 = vmatpush1.msra.mxu0 0.0
        %2934 = vmatprep.subr.mxu0 0.0
        %2935 = vmatpush1.msra.mxu0 0.0
        %2936 = vmatprep.subr.mxu0 0.0
        %2937 = vmatpush1.msra.mxu0 0.0
        %2938 = vmatprep.subr.mxu0 0.0
        %2939 = vmatpush1.msra.mxu0 0.0
        %2940 = vmatprep.subr.mxu0 0.0
        %2941 = vmatpush1.msra.mxu0 0.0
        %2942 = vmatprep.subr.mxu0 0.0
        %2943 = vmatpush1.msra.mxu0 0.0
        %2944 = vmatprep.subr.mxu0 0.0
        %2945 = vmatpush1.msra.mxu0 0.0
        %2946 = vmatprep.subr.mxu0 0.0
        %2947 = vmatpush1.msra.mxu0 0.0
        %2948 = vmatprep.subr.mxu0 0.0
        %2949 = vmatpush1.msra.mxu0 0.0
        %2950 = vmatprep.subr.mxu0 0.0
        %2951 = vmatpush1.msra.mxu0 0.0
        %2952 = vmatprep.subr.mxu0 0.0
        %2953 = vmatpush1.msra.mxu0 0.0
        %2954 = vmatprep.subr.mxu0 0.0
        %2955 = vmatpush1.msra.mxu0 0.0
        %2956 = vmatprep.subr.mxu0 0.0
        %2957 = vmatpush1.msra.mxu0 0.0
        %2958 = vmatprep.subr.mxu0 0.0
        %2959 = vmatpush1.msra.mxu0 0.0
        %2960 = vmatprep.mubr.f32.mxu0 0.0
        %2961 = vmatmul.mubr.f32.gmra.mrb[0].mxu0 %v2342
        %v2962 = vpop.f32.mrb[0].mxu0
        %v2963 = vadd.f32 0.0, %v2962
        %v2964 = vpop.f32.mrb[0].mxu0
        %2965 = vmatprep.mubr.f32.mxu0 0.0
        %2966 = vmatmul.mubr.f32.gmra.mrb[0].mxu0 %v2345
        %v2967 = vpop.f32.mrb[0].mxu0
        %v2968 = vadd.f32 0.0, %v2967
        %v2969 = vpop.f32.mrb[0].mxu0
        %2970 = vdwg.mxu0
        %v2971 = vadd.f32 %v1732, %v2417
        %v2972 = vadd.f32 %v1737, %v2422
        %v2973 = vadd.f32 %v1810, %v2495
        %v2974 = vadd.f32 %v1815, %v2500
        %v2975 = vadd.f32 %v1888, %v2573
        %v2976 = vadd.f32 %v1893, %v2578
        %v2977 = vadd.f32 %v1966, %v2651
        %v2978 = vadd.f32 %v1971, %v2656
        %v2979 = vadd.f32 %v2044, %v2729
        %v2980 = vadd.f32 %v2049, %v2734
        %v2981 = vadd.f32 %v2122, %v2807
        %v2982 = vadd.f32 %v2127, %v2812
        %v2983 = vadd.f32 %v2200, %v2885
        %v2984 = vadd.f32 %v2205, %v2890
        %v2985 = vadd.f32 %v2278, %v2963
        %v2986 = vadd.f32 %v2283, %v2968
        %v2987 = vld [vmem:[%s5] sm:$0x1]
        %v2989 = vlaneseq
        %v2990 = vshrl.u32 %v2989, 7
        %v2991 = vsub.s32 0, %v2990
        %v2992 = vrot.slane %v2987, %v2991
        %v2994 = vadd.f32 %v2971, %v2992
        %v2995 = vadd.f32 %v2972, %v2992
        %v2996 = vadd.f32 %v2973, %v2992
        %v2997 = vadd.f32 %v2974, %v2992
        %v2998 = vadd.f32 %v2975, %v2992
        %v2999 = vadd.f32 %v2976, %v2992
        %v3000 = vadd.f32 %v2977, %v2992
        %v3001 = vadd.f32 %v2978, %v2992
        %v3002 = vadd.f32 %v2979, %v2992
        %v3003 = vadd.f32 %v2980, %v2992
        %v3004 = vadd.f32 %v2981, %v2992
        %v3005 = vadd.f32 %v2982, %v2992
        %v3006 = vadd.f32 %v2983, %v2992
        %v3007 = vadd.f32 %v2984, %v2992
        %v3008 = vadd.f32 %v2985, %v2992
        %v3009 = vadd.f32 %v2986, %v2992
        %v3010 = vmax.f32 %v2994, 0.0
        %v3011 = vmax.f32 %v2995, 0.0
        %v3012 = vmax.f32 %v2996, 0.0
        %v3013 = vmax.f32 %v2997, 0.0
        %v3014 = vmax.f32 %v2998, 0.0
        %v3015 = vmax.f32 %v2999, 0.0
        %v3016 = vmax.f32 %v3000, 0.0
        %v3017 = vmax.f32 %v3001, 0.0
        %v3018 = vmax.f32 %v3002, 0.0
        %v3019 = vmax.f32 %v3003, 0.0
        %v3020 = vmax.f32 %v3004, 0.0
        %v3021 = vmax.f32 %v3005, 0.0
        %v3022 = vmax.f32 %v3006, 0.0
        %v3023 = vmax.f32 %v3007, 0.0
        %v3024 = vmax.f32 %v3008, 0.0
        %v3025 = vmax.f32 %v3009, 0.0
        %v3026 = vld [vmem:[%s6] sm:$0xff]
        %v3027 = vld [vmem:[%s435] sm:$0xff]
        %v3028 = vld [vmem:[%s435 + $0x8] sm:$0xff]
        %v3029 = vld [vmem:[%s435 + $0x10] sm:$0xff]
        %v3030 = vld [vmem:[%s435 + $0x18] sm:$0xff]
        %v3031 = vld [vmem:[%s435 + $0x20] sm:$0xff]
        %v3032 = vld [vmem:[%s435 + $0x28] sm:$0xff]
        %v3033 = vld [vmem:[%s435 + $0x30] sm:$0xff]
        %v3034 = vld [vmem:[%s435 + $0x38] sm:$0xff]
        %v3035 = vld [vmem:[%s435 + $0x40] sm:$0xff]
        %v3036 = vld [vmem:[%s435 + $0x48] sm:$0xff]
        %v3037 = vld [vmem:[%s435 + $0x50] sm:$0xff]
        %v3038 = vld [vmem:[%s435 + $0x58] sm:$0xff]
        %v3039 = vld [vmem:[%s435 + $0x60] sm:$0xff]
        %v3040 = vld [vmem:[%s435 + $0x68] sm:$0xff]
        %v3041 = vld [vmem:[%s435 + $0x70] sm:$0xff]
        %v3042 = vld [vmem:[%s435 + $0x78] sm:$0xff]
        %v3043 = vld [vmem:[%s7] sm:$0xff]
        %vm3044 = vcmask 64512
        %v3046 = vsel %vm3044, %v3027, 0
        %v3049 = vsel %vm3044, %v3028, 0
        %v3052 = vsel %vm3044, %v3029, 0
        %v3055 = vsel %vm3044, %v3030, 0
        %v3058 = vsel %vm3044, %v3031, 0
        %v3061 = vsel %vm3044, %v3032, 0
        %v3064 = vsel %vm3044, %v3033, 0
        %v3067 = vsel %vm3044, %v3034, 0
        %v3070 = vsel %vm3044, %v3035, 0
        %v3073 = vsel %vm3044, %v3036, 0
        %v3076 = vsel %vm3044, %v3037, 0
        %v3079 = vsel %vm3044, %v3038, 0
        %v3082 = vsel %vm3044, %v3039, 0
        %v3085 = vsel %vm3044, %v3040, 0
        %v3088 = vsel %vm3044, %v3041, 0
        %v3091 = vsel %vm3044, %v3042, 0
        %3093 = vmatprep.subr.mxu0 0.0
        %3094 = vmatpush1.msra.mxu0 %v3043
        %3095 = vmatprep.subr.mxu0 0.0
        %3096 = vmatpush1.msra.mxu0 0.0
        %3097 = vmatprep.subr.mxu0 0.0
        %3098 = vmatpush1.msra.mxu0 0.0
        %3099 = vmatprep.subr.mxu0 0.0
        %3100 = vmatpush1.msra.mxu0 0.0
        %3101 = vmatprep.subr.mxu0 0.0
        %3102 = vmatpush1.msra.mxu0 0.0
        %3103 = vmatprep.subr.mxu0 0.0
        %3104 = vmatpush1.msra.mxu0 0.0
        %3105 = vmatprep.subr.mxu0 0.0
        %3106 = vmatpush1.msra.mxu0 0.0
        %3107 = vmatprep.subr.mxu0 0.0
        %3108 = vmatpush1.msra.mxu0 0.0
        %3109 = vmatprep.subr.mxu0 0.0
        %3110 = vmatpush1.msra.mxu0 0.0
        %3111 = vmatprep.subr.mxu0 0.0
        %3112 = vmatpush1.msra.mxu0 0.0
        %3113 = vmatprep.subr.mxu0 0.0
        %3114 = vmatpush1.msra.mxu0 0.0
        %3115 = vmatprep.subr.mxu0 0.0
        %3116 = vmatpush1.msra.mxu0 0.0
        %3117 = vmatprep.subr.mxu0 0.0
        %3118 = vmatpush1.msra.mxu0 0.0
        %3119 = vmatprep.subr.mxu0 0.0
        %3120 = vmatpush1.msra.mxu0 0.0
        %3121 = vmatprep.subr.mxu0 0.0
        %3122 = vmatpush1.msra.mxu0 0.0
        %3123 = vmatprep.subr.mxu0 0.0
        %3124 = vmatpush1.msra.mxu0 0.0
        %3125 = vmatprep.subr.mxu0 0.0
        %3126 = vmatpush1.msra.mxu0 0.0
        %3127 = vmatprep.subr.mxu0 0.0
        %3128 = vmatpush1.msra.mxu0 0.0
        %3129 = vmatprep.subr.mxu0 0.0
        %3130 = vmatpush1.msra.mxu0 0.0
        %3131 = vmatprep.subr.mxu0 0.0
        %3132 = vmatpush1.msra.mxu0 0.0
        %3133 = vmatprep.subr.mxu0 0.0
        %3134 = vmatpush1.msra.mxu0 0.0
        %3135 = vmatprep.subr.mxu0 0.0
        %3136 = vmatpush1.msra.mxu0 0.0
        %3137 = vmatprep.subr.mxu0 0.0
        %3138 = vmatpush1.msra.mxu0 0.0
        %3139 = vmatprep.subr.mxu0 0.0
        %3140 = vmatpush1.msra.mxu0 0.0
        %3141 = vmatprep.subr.mxu0 0.0
        %3142 = vmatpush1.msra.mxu0 0.0
        %3143 = vmatprep.subr.mxu0 0.0
        %3144 = vmatpush1.msra.mxu0 0.0
        %3145 = vmatprep.subr.mxu0 0.0
        %3146 = vmatpush1.msra.mxu0 0.0
        %3147 = vmatprep.subr.mxu0 0.0
        %3148 = vmatpush1.msra.mxu0 0.0
        %3149 = vmatprep.subr.mxu0 0.0
        %3150 = vmatpush1.msra.mxu0 0.0
        %3151 = vmatprep.subr.mxu0 0.0
        %3152 = vmatpush1.msra.mxu0 0.0
        %3153 = vmatprep.subr.mxu0 0.0
        %3154 = vmatpush1.msra.mxu0 0.0
        %3155 = vmatprep.subr.mxu0 0.0
        %3156 = vmatpush1.msra.mxu0 0.0
        %3157 = vmatprep.mubr.f32.mxu0 0.0
        %3158 = vmatmul.mubr.f32.gmra.mrb[0].mxu0 %v3046
        %v3159 = vpop.f32.mrb[0].mxu0
        %v3160 = vadd.f32 0.0, %v3159
        %v3161 = vpop.f32.mrb[0].mxu0
        %3162 = vmatprep.mubr.f32.mxu0 0.0
        %3163 = vmatmul.mubr.f32.gmra.mrb[0].mxu0 %v3049
        %v3164 = vpop.f32.mrb[0].mxu0
        %v3165 = vadd.f32 0.0, %v3164
        %v3166 = vpop.f32.mrb[0].mxu0
        %3167 = vmatprep.mubr.f32.mxu0 0.0
        %3168 = vmatmul.mubr.f32.gmra.mrb[0].mxu0 %v3052
        %v3169 = vpop.f32.mrb[0].mxu0
        %v3170 = vadd.f32 0.0, %v3169
        %v3171 = vpop.f32.mrb[0].mxu0
        %3172 = vmatprep.mubr.f32.mxu0 0.0
        %3173 = vmatmul.mubr.f32.gmra.mrb[0].mxu0 %v3055
        %v3174 = vpop.f32.mrb[0].mxu0
        %v3175 = vadd.f32 0.0, %v3174
        %v3176 = vpop.f32.mrb[0].mxu0
        %3177 = vmatprep.mubr.f32.mxu0 0.0
        %3178 = vmatmul.mubr.f32.gmra.mrb[0].mxu0 %v3058
        %v3179 = vpop.f32.mrb[0].mxu0
        %v3180 = vadd.f32 0.0, %v3179
        %v3181 = vpop.f32.mrb[0].mxu0
        %3182 = vmatprep.mubr.f32.mxu0 0.0
        %3183 = vmatmul.mubr.f32.gmra.mrb[0].mxu0 %v3061
        %v3184 = vpop.f32.mrb[0].mxu0
        %v3185 = vadd.f32 0.0, %v3184
        %v3186 = vpop.f32.mrb[0].mxu0
        %3187 = vmatprep.mubr.f32.mxu0 0.0
        %3188 = vmatmul.mubr.f32.gmra.mrb[0].mxu0 %v3064
        %v3189 = vpop.f32.mrb[0].mxu0
        %v3190 = vadd.f32 0.0, %v3189
        %v3191 = vpop.f32.mrb[0].mxu0
        %3192 = vmatprep.mubr.f32.mxu0 0.0
        %3193 = vmatmul.mubr.f32.gmra.mrb[0].mxu0 %v3067
        %v3194 = vpop.f32.mrb[0].mxu0
        %v3195 = vadd.f32 0.0, %v3194
        %v3196 = vpop.f32.mrb[0].mxu0
        %3197 = vmatprep.mubr.f32.mxu0 0.0
        %3198 = vmatmul.mubr.f32.gmra.mrb[0].mxu0 %v3070
        %v3199 = vpop.f32.mrb[0].mxu0
        %v3200 = vadd.f32 0.0, %v3199
        %v3201 = vpop.f32.mrb[0].mxu0
        %3202 = vmatprep.mubr.f32.mxu0 0.0
        %3203 = vmatmul.mubr.f32.gmra.mrb[0].mxu0 %v3073
        %v3204 = vpop.f32.mrb[0].mxu0
        %v3205 = vadd.f32 0.0, %v3204
        %v3206 = vpop.f32.mrb[0].mxu0
        %3207 = vmatprep.mubr.f32.mxu0 0.0
        %3208 = vmatmul.mubr.f32.gmra.mrb[0].mxu0 %v3076
        %v3209 = vpop.f32.mrb[0].mxu0
        %v3210 = vadd.f32 0.0, %v3209
        %v3211 = vpop.f32.mrb[0].mxu0
        %3212 = vmatprep.mubr.f32.mxu0 0.0
        %3213 = vmatmul.mubr.f32.gmra.mrb[0].mxu0 %v3079
        %v3214 = vpop.f32.mrb[0].mxu0
        %v3215 = vadd.f32 0.0, %v3214
        %v3216 = vpop.f32.mrb[0].mxu0
        %3217 = vmatprep.mubr.f32.mxu0 0.0
        %3218 = vmatmul.mubr.f32.gmra.mrb[0].mxu0 %v3082
        %v3219 = vpop.f32.mrb[0].mxu0
        %v3220 = vadd.f32 0.0, %v3219
        %v3221 = vpop.f32.mrb[0].mxu0
        %3222 = vmatprep.mubr.f32.mxu0 0.0
        %3223 = vmatmul.mubr.f32.gmra.mrb[0].mxu0 %v3085
        %v3224 = vpop.f32.mrb[0].mxu0
        %v3225 = vadd.f32 0.0, %v3224
        %v3226 = vpop.f32.mrb[0].mxu0
        %3227 = vmatprep.mubr.f32.mxu0 0.0
        %3228 = vmatmul.mubr.f32.gmra.mrb[0].mxu0 %v3088
        %v3229 = vpop.f32.mrb[0].mxu0
        %v3230 = vadd.f32 0.0, %v3229
        %v3231 = vpop.f32.mrb[0].mxu0
        %3232 = vmatprep.mubr.f32.mxu0 0.0
        %3233 = vmatmul.mubr.f32.gmra.mrb[0].mxu0 %v3091
        %v3234 = vpop.f32.mrb[0].mxu0
        %v3235 = vadd.f32 0.0, %v3234
        %v3236 = vpop.f32.mrb[0].mxu0
        %3237 = vdwg.mxu0
        %v3239 = vsel %vm3044, %v3010, 0
        %v3242 = vsel %vm3044, %v3011, 0
        %v3245 = vsel %vm3044, %v3012, 0
        %v3248 = vsel %vm3044, %v3013, 0
        %v3251 = vsel %vm3044, %v3014, 0
        %v3254 = vsel %vm3044, %v3015, 0
        %v3257 = vsel %vm3044, %v3016, 0
        %v3260 = vsel %vm3044, %v3017, 0
        %v3263 = vsel %vm3044, %v3018, 0
        %v3266 = vsel %vm3044, %v3019, 0
        %v3269 = vsel %vm3044, %v3020, 0
        %v3272 = vsel %vm3044, %v3021, 0
        %v3275 = vsel %vm3044, %v3022, 0
        %v3278 = vsel %vm3044, %v3023, 0
        %v3281 = vsel %vm3044, %v3024, 0
        %v3284 = vsel %vm3044, %v3025, 0
        %3286 = vmatprep.subr.mxu0 0.0
        %3287 = vmatpush1.msra.mxu0 %v3026
        %3288 = vmatprep.subr.mxu0 0.0
        %3289 = vmatpush1.msra.mxu0 0.0
        %3290 = vmatprep.subr.mxu0 0.0
        %3291 = vmatpush1.msra.mxu0 0.0
        %3292 = vmatprep.subr.mxu0 0.0
        %3293 = vmatpush1.msra.mxu0 0.0
        %3294 = vmatprep.subr.mxu0 0.0
        %3295 = vmatpush1.msra.mxu0 0.0
        %3296 = vmatprep.subr.mxu0 0.0
        %3297 = vmatpush1.msra.mxu0 0.0
        %3298 = vmatprep.subr.mxu0 0.0
        %3299 = vmatpush1.msra.mxu0 0.0
        %3300 = vmatprep.subr.mxu0 0.0
        %3301 = vmatpush1.msra.mxu0 0.0
        %3302 = vmatprep.subr.mxu0 0.0
        %3303 = vmatpush1.msra.mxu0 0.0
        %3304 = vmatprep.subr.mxu0 0.0
        %3305 = vmatpush1.msra.mxu0 0.0
        %3306 = vmatprep.subr.mxu0 0.0
        %3307 = vmatpush1.msra.mxu0 0.0
        %3308 = vmatprep.subr.mxu0 0.0
        %3309 = vmatpush1.msra.mxu0 0.0
        %3310 = vmatprep.subr.mxu0 0.0
        %3311 = vmatpush1.msra.mxu0 0.0
        %3312 = vmatprep.subr.mxu0 0.0
        %3313 = vmatpush1.msra.mxu0 0.0
        %3314 = vmatprep.subr.mxu0 0.0
        %3315 = vmatpush1.msra.mxu0 0.0
        %3316 = vmatprep.subr.mxu0 0.0
        %3317 = vmatpush1.msra.mxu0 0.0
        %3318 = vmatprep.subr.mxu0 0.0
        %3319 = vmatpush1.msra.mxu0 0.0
        %3320 = vmatprep.subr.mxu0 0.0
        %3321 = vmatpush1.msra.mxu0 0.0
        %3322 = vmatprep.subr.mxu0 0.0
        %3323 = vmatpush1.msra.mxu0 0.0
        %3324 = vmatprep.subr.mxu0 0.0
        %3325 = vmatpush1.msra.mxu0 0.0
        %3326 = vmatprep.subr.mxu0 0.0
        %3327 = vmatpush1.msra.mxu0 0.0
        %3328 = vmatprep.subr.mxu0 0.0
        %3329 = vmatpush1.msra.mxu0 0.0
        %3330 = vmatprep.subr.mxu0 0.0
        %3331 = vmatpush1.msra.mxu0 0.0
        %3332 = vmatprep.subr.mxu0 0.0
        %3333 = vmatpush1.msra.mxu0 0.0
        %3334 = vmatprep.subr.mxu0 0.0
        %3335 = vmatpush1.msra.mxu0 0.0
        %3336 = vmatprep.subr.mxu0 0.0
        %3337 = vmatpush1.msra.mxu0 0.0
        %3338 = vmatprep.subr.mxu0 0.0
        %3339 = vmatpush1.msra.mxu0 0.0
        %3340 = vmatprep.subr.mxu0 0.0
        %3341 = vmatpush1.msra.mxu0 0.0
        %3342 = vmatprep.subr.mxu0 0.0
        %3343 = vmatpush1.msra.mxu0 0.0
        %3344 = vmatprep.subr.mxu0 0.0
        %3345 = vmatpush1.msra.mxu0 0.0
        %3346 = vmatprep.subr.mxu0 0.0
        %3347 = vmatpush1.msra.mxu0 0.0
        %3348 = vmatprep.subr.mxu0 0.0
        %3349 = vmatpush1.msra.mxu0 0.0
        %3350 = vmatprep.mubr.f32.mxu0 0.0
        %3351 = vmatmul.mubr.f32.gmra.mrb[0].mxu0 %v3239
        %v3352 = vpop.f32.mrb[0].mxu0
        %v3353 = vadd.f32 %v3160, %v3352
        %v3354 = vpop.f32.mrb[0].mxu0
        %3355 = vmatprep.mubr.f32.mxu0 0.0
        %3356 = vmatmul.mubr.f32.gmra.mrb[0].mxu0 %v3242
        %v3357 = vpop.f32.mrb[0].mxu0
        %v3358 = vadd.f32 %v3165, %v3357
        %v3359 = vpop.f32.mrb[0].mxu0
        %3360 = vmatprep.mubr.f32.mxu0 0.0
        %3361 = vmatmul.mubr.f32.gmra.mrb[0].mxu0 %v3245
        %v3362 = vpop.f32.mrb[0].mxu0
        %v3363 = vadd.f32 %v3170, %v3362
        %v3364 = vpop.f32.mrb[0].mxu0
        %3365 = vmatprep.mubr.f32.mxu0 0.0
        %3366 = vmatmul.mubr.f32.gmra.mrb[0].mxu0 %v3248
        %v3367 = vpop.f32.mrb[0].mxu0
        %v3368 = vadd.f32 %v3175, %v3367
        %v3369 = vpop.f32.mrb[0].mxu0
        %3370 = vmatprep.mubr.f32.mxu0 0.0
        %3371 = vmatmul.mubr.f32.gmra.mrb[0].mxu0 %v3251
        %v3372 = vpop.f32.mrb[0].mxu0
        %v3373 = vadd.f32 %v3180, %v3372
        %v3374 = vpop.f32.mrb[0].mxu0
        %3375 = vmatprep.mubr.f32.mxu0 0.0
        %3376 = vmatmul.mubr.f32.gmra.mrb[0].mxu0 %v3254
        %v3377 = vpop.f32.mrb[0].mxu0
        %v3378 = vadd.f32 %v3185, %v3377
        %v3379 = vpop.f32.mrb[0].mxu0
        %3380 = vmatprep.mubr.f32.mxu0 0.0
        %3381 = vmatmul.mubr.f32.gmra.mrb[0].mxu0 %v3257
        %v3382 = vpop.f32.mrb[0].mxu0
        %v3383 = vadd.f32 %v3190, %v3382
        %v3384 = vpop.f32.mrb[0].mxu0
        %3385 = vmatprep.mubr.f32.mxu0 0.0
        %3386 = vmatmul.mubr.f32.gmra.mrb[0].mxu0 %v3260
        %v3387 = vpop.f32.mrb[0].mxu0
        %v3388 = vadd.f32 %v3195, %v3387
        %v3389 = vpop.f32.mrb[0].mxu0
        %3390 = vmatprep.mubr.f32.mxu0 0.0
        %3391 = vmatmul.mubr.f32.gmra.mrb[0].mxu0 %v3263
        %v3392 = vpop.f32.mrb[0].mxu0
        %v3393 = vadd.f32 %v3200, %v3392
        %v3394 = vpop.f32.mrb[0].mxu0
        %3395 = vmatprep.mubr.f32.mxu0 0.0
        %3396 = vmatmul.mubr.f32.gmra.mrb[0].mxu0 %v3266
        %v3397 = vpop.f32.mrb[0].mxu0
        %v3398 = vadd.f32 %v3205, %v3397
        %v3399 = vpop.f32.mrb[0].mxu0
        %3400 = vmatprep.mubr.f32.mxu0 0.0
        %3401 = vmatmul.mubr.f32.gmra.mrb[0].mxu0 %v3269
        %v3402 = vpop.f32.mrb[0].mxu0
        %v3403 = vadd.f32 %v3210, %v3402
        %v3404 = vpop.f32.mrb[0].mxu0
        %3405 = vmatprep.mubr.f32.mxu0 0.0
        %3406 = vmatmul.mubr.f32.gmra.mrb[0].mxu0 %v3272
        %v3407 = vpop.f32.mrb[0].mxu0
        %v3408 = vadd.f32 %v3215, %v3407
        %v3409 = vpop.f32.mrb[0].mxu0
        %3410 = vmatprep.mubr.f32.mxu0 0.0
        %3411 = vmatmul.mubr.f32.gmra.mrb[0].mxu0 %v3275
        %v3412 = vpop.f32.mrb[0].mxu0
        %v3413 = vadd.f32 %v3220, %v3412
        %v3414 = vpop.f32.mrb[0].mxu0
        %3415 = vmatprep.mubr.f32.mxu0 0.0
        %3416 = vmatmul.mubr.f32.gmra.mrb[0].mxu0 %v3278
        %v3417 = vpop.f32.mrb[0].mxu0
        %v3418 = vadd.f32 %v3225, %v3417
        %v3419 = vpop.f32.mrb[0].mxu0
        %3420 = vmatprep.mubr.f32.mxu0 0.0
        %3421 = vmatmul.mubr.f32.gmra.mrb[0].mxu0 %v3281
        %v3422 = vpop.f32.mrb[0].mxu0
        %v3423 = vadd.f32 %v3230, %v3422
        %v3424 = vpop.f32.mrb[0].mxu0
        %3425 = vmatprep.mubr.f32.mxu0 0.0
        %3426 = vmatmul.mubr.f32.gmra.mrb[0].mxu0 %v3284
        %v3427 = vpop.f32.mrb[0].mxu0
        %v3428 = vadd.f32 %v3235, %v3427
        %v3429 = vpop.f32.mrb[0].mxu0
        %3430 = vdwg.mxu0
        %v3431 = vld [vmem:[%s8] sm:$0x1]
        %v3433 = vlaneseq
        %v3434 = vshrl.u32 %v3433, 7
        %v3435 = vsub.s32 0, %v3434
        %v3436 = vrot.slane %v3431, %v3435
        %v3438 = vadd.f32 %v3353, %v3436
        %v3439 = vadd.f32 %v3358, %v3436
        %v3440 = vadd.f32 %v3363, %v3436
        %v3441 = vadd.f32 %v3368, %v3436
        %v3442 = vadd.f32 %v3373, %v3436
        %v3443 = vadd.f32 %v3378, %v3436
        %v3444 = vadd.f32 %v3383, %v3436
        %v3445 = vadd.f32 %v3388, %v3436
        %v3446 = vadd.f32 %v3393, %v3436
        %v3447 = vadd.f32 %v3398, %v3436
        %v3448 = vadd.f32 %v3403, %v3436
        %v3449 = vadd.f32 %v3408, %v3436
        %v3450 = vadd.f32 %v3413, %v3436
        %v3451 = vadd.f32 %v3418, %v3436
        %v3452 = vadd.f32 %v3423, %v3436
        %v3453 = vadd.f32 %v3428, %v3436
        %v3454 = vmax.f32 %v3438, 0.0
        %v3455 = vmax.f32 %v3439, 0.0
        %v3456 = vmax.f32 %v3440, 0.0
        %v3457 = vmax.f32 %v3441, 0.0
        %v3458 = vmax.f32 %v3442, 0.0
        %v3459 = vmax.f32 %v3443, 0.0
        %v3460 = vmax.f32 %v3444, 0.0
        %v3461 = vmax.f32 %v3445, 0.0
        %v3462 = vmax.f32 %v3446, 0.0
        %v3463 = vmax.f32 %v3447, 0.0
        %v3464 = vmax.f32 %v3448, 0.0
        %v3465 = vmax.f32 %v3449, 0.0
        %v3466 = vmax.f32 %v3450, 0.0
        %v3467 = vmax.f32 %v3451, 0.0
        %v3468 = vmax.f32 %v3452, 0.0
        %v3469 = vmax.f32 %v3453, 0.0
        %3470 = vst.msk [vmem:[%s449] sm:$0xff] %vm3044, %v3454
        %3471 = vst.msk [vmem:[%s449 + $0x8] sm:$0xff] %vm3044, %v3455
        %3472 = vst.msk [vmem:[%s449 + $0x10] sm:$0xff] %vm3044, %v3456
        %3473 = vst.msk [vmem:[%s449 + $0x18] sm:$0xff] %vm3044, %v3457
        %3474 = vst.msk [vmem:[%s449 + $0x20] sm:$0xff] %vm3044, %v3458
        %3475 = vst.msk [vmem:[%s449 + $0x28] sm:$0xff] %vm3044, %v3459
        %3476 = vst.msk [vmem:[%s449 + $0x30] sm:$0xff] %vm3044, %v3460
        %3477 = vst.msk [vmem:[%s449 + $0x38] sm:$0xff] %vm3044, %v3461
        %3478 = vst.msk [vmem:[%s449 + $0x40] sm:$0xff] %vm3044, %v3462
        %3479 = vst.msk [vmem:[%s449 + $0x48] sm:$0xff] %vm3044, %v3463
        %3480 = vst.msk [vmem:[%s449 + $0x50] sm:$0xff] %vm3044, %v3464
        %3481 = vst.msk [vmem:[%s449 + $0x58] sm:$0xff] %vm3044, %v3465
        %3482 = vst.msk [vmem:[%s449 + $0x60] sm:$0xff] %vm3044, %v3466
        %3483 = vst.msk [vmem:[%s449 + $0x68] sm:$0xff] %vm3044, %v3467
        %3484 = vst.msk [vmem:[%s449 + $0x70] sm:$0xff] %vm3044, %v3468
        %3485 = vst.msk [vmem:[%s449 + $0x78] sm:$0xff] %vm3044, %v3469
        %s3486 = smul.u32 16, %s25
        %p3487 = scmp.lt.s32.totalorder %s24, 1
        %s3488 = scalar_select %p3487, %s24, 1
        %p3489 = scmp.lt.s32.totalorder %s3486, 31
        %s3490 = scalar_select %p3489, %s3486, 31
        %s3491 = smul.addr %s3488, 32
        %s3492 = sadd.s32 %s3490, %s3491
        %s3493 = smul.addr %s3492, 8
        %s3494 = scalar_lea.vmem %s9, %s3493
        // Predicated region
        $region95: #{tpu_custom_call.1} parent=89 // pred_check
          %p3495 = pneg %p258
        $region96: #{tpu_custom_call.1} parent=89 // pred_check_branch
          %3497 = sbr.rel (%p3495) target = $region98
        $region97: #{tpu_custom_call.1} parent=89 // pred_region
          %s3498 = smul.u32 16, %s25
        $region98: #{tpu_custom_call.1} parent=89 // pred_fallthru
          _
      $region90: #{tpu_custom_call.1} parent=5 // pred_fallthru
        _
      %p3499 = scmp.le.s32.totalorder 2, %s15
      // Predicated region
      $region99: #{tpu_custom_call.1} parent=5 // pred_check
        %p3500 = pneg %p3499
      $region100: #{tpu_custom_call.1} parent=5 // pred_check_branch
        %3502 = sbr.rel (%p3500) target = $region102
      $region101: #{tpu_custom_call.1} parent=5 // pred_region
        %s3503 = ssub.s32 %s15, 2
        // Predicated region
        $region103: #{tpu_custom_call.1} parent=101 // pred_check
          %p3504 = pneg %p264
        $region104: #{tpu_custom_call.1} parent=101 // pred_check_branch
          %3506 = sbr.rel (%p3504) target = $region106
        $region105: #{tpu_custom_call.1} parent=101 // pred_region
          %s3507 = smul.u32 16, %s27
          %p3508 = scmp.lt.s32.totalorder %s26, 1
          %s3509 = scalar_select %p3508, %s26, 1
          %p3510 = scmp.lt.s32.totalorder %s3507, 31
          %s3511 = scalar_select %p3510, %s3507, 31
          %s3512 = smul.addr %s3509, 32
          %s3513 = sadd.s32 %s3511, %s3512
          %s3514 = smul.addr %s3513, 8
          %s3515 = scalar_lea.vmem %s9, %s3514
        $region106: #{tpu_custom_call.1} parent=101 // pred_fallthru
          _
      $region102: #{tpu_custom_call.1} parent=5 // pred_fallthru
        _
    $region6: #{tpu_custom_call.1} parent=1 // loop_footer
      %s19 = sadd.s32 1, %s15
    $region7: #{tpu_custom_call.1} parent=1 // loop_footer_branch
      %14 = sbr.rel target = $region3
    $region8: #{tpu_custom_call.1} parent=1 // loop_exit
      _

</llo_original>
